<compile_context>
chip_gen: v7x
topology: tpu7x:2x2x1
jax: 0.10.0
libtpu: 0.0.40
codegen_flags: <defaults>
</compile_context>

<pallas_src>
import functools
import numpy as np
import jax
import jax.numpy as jnp
from jax.experimental import pallas as pl
from jax.experimental.pallas import tpu as pltpu


def _bilinear_matrix(out_size, in_size):
    """PyTorch Upsample(mode='bilinear', align_corners=True) along one axis."""
    A = np.zeros((out_size, in_size), np.float32)
    if out_size == 1 or in_size == 1:
        A[:, 0] = 1.0
        return A
    scale = (in_size - 1) / (out_size - 1)
    for i in range(out_size):
        src = i * scale
        f = min(int(np.floor(src)), in_size - 1)
        fr = src - f
        f2 = min(f + 1, in_size - 1)
        A[i, f] += 1.0 - fr
        A[i, f2] += fr
    return A


def _row_taps(A):
    """Static (src0, w0, src1, w1) 2-tap decomposition of each interp row."""
    taps = []
    for r in range(A.shape[0]):
        nz = np.nonzero(A[r])[0]
        if len(nz) == 1:
            taps.append((int(nz[0]), float(A[r, nz[0]]), int(nz[0]), 0.0))
        else:
            taps.append((int(nz[0]), float(A[r, nz[0]]),
                         int(nz[1]), float(A[r, nz[1]])))
    return tuple(taps)


def _up_unet_kernel(x1_ref, x2_ref, awt_ref, w1_ref, b1_ref, w2_ref, b2_ref,
                    mask_ref, sel_ref, o_ref, cat_ref, y1_ref, *,
                    WP, L, MG, C1, C2, row0, h_taps):
    f32 = jnp.float32
    bf16 = jnp.bfloat16
    Cin = C1 + C2
    Cm = w1_ref.shape[1]

    # Margins / halo of the flat padded grids must be zero every step (scratch
    # persists across grid steps; with a "parallel" batch axis a pid==0-only
    # init would be skipped on the second core).  Only ~14 KiB of bf16.
    cat_ref[...] = jnp.zeros_like(cat_ref)
    y1_ref[...] = jnp.zeros_like(y1_ref)

    # ---- skip connection x2: ONE lane-dense store (pre-padded on host) -----
    cat_ref[0:C2, MG:MG + L] = x2_ref[0]

    # ---- separable bilinear upsample of x1 (align_corners=True) ------------
    # W direction: one matmul (awt folds the diffX pad + 1px conv halo).
    # H direction: static 2-tap blend; all Hu rows coalesced into ONE store.
    t_all = jnp.dot(x1_ref[0], awt_ref[...],
                    preferred_element_type=f32)            # (H1*C1, WP)
    rows = []
    for (h0, a0, h1, a1) in h_taps:
        u = t_all[h0 * C1:(h0 + 1) * C1, :]                # (C1, WP)
        if a0 != 1.0:
            u = a0 * u
        if a1 != 0.0:
            u = u + a1 * t_all[h1 * C1:(h1 + 1) * C1, :]
        rows.append(u)
    up = jnp.concatenate(rows, axis=1)                     # (C1, Hu*WP)
    col0 = MG + row0 * WP
    cat_ref[C2:Cin, col0:col0 + up.shape[1]] = up.astype(bf16)

    # Tap k=(dy,dx) of a 3x3 conv on the flat padded grid is a pure lane shift.
    shifts = [(dy - 1) * WP + (dx - 1) for dy in range(3) for dx in range(3)]

    # ---- conv1: 9 accumulated bf16 MXU dots (no materialized im2col slab) --
    acc1 = None
    for k, s in enumerate(shifts):
        t = jnp.dot(w1_ref[k], cat_ref[:, MG + s:MG + s + L],
                    preferred_element_type=f32)            # (Cm, L)
        acc1 = t if acc1 is None else acc1 + t
    # bias + ReLU, then zero the halo columns (they are conv2's zero padding).
    y1 = jnp.maximum(acc1 + b1_ref[...], 0.0) * mask_ref[...]
    y1_ref[:, MG:MG + L] = y1.astype(bf16)

    # ---- conv2: 9 accumulated bf16 MXU dots ---------------------------------
    acc2 = None
    for k, s in enumerate(shifts):
        t = jnp.dot(w2_ref[k], y1_ref[:, MG + s:MG + s + L],
                    preferred_element_type=f32)            # (Co, L)
        acc2 = t if acc2 is None else acc2 + t

    # ---- interior gather as a 0/1 selection matmul -> lane-dense store -----
    # (selection picks columns, so bias+ReLU commute with it; MXU default
    #  precision rounding of the f32 select is well inside the tolerance)
    o = jnp.dot(acc2, sel_ref[...], preferred_element_type=f32)   # (Co, H*W)
    o_ref[0] = jnp.maximum(o + b2_ref[...], 0.0)


def up_unet_forward(x1_nchw, x2_nchw, params):
    """Up_unet(in_channels=C1+C2, out_channels=Co, bilinear=True).forward(x1, x2)."""
    w1, b1, w2, b2 = params['w1'], params['b1'], params['w2'], params['b2']
    N, C1, H1, W1 = x1_nchw.shape
    N2, C2, H2, W2 = x2_nchw.shape
    assert N == N2
    Cin = C1 + C2
    Cm = w1.shape[-1]                     # DoubleConv mid == out channels
    Co = w2.shape[-1]

    H, W = H2, W2
    HP, WP = H + 2, W + 2                 # conv-halo padded grid
    L = HP * WP                           # flat padded-grid length (lanes)
    HW = H * W
    Hu, Wu = 2 * H1, 2 * W1
    diffY, diffX = H2 - Hu, W2 - Wu
    # PyTorch's F.pad with negative values would crop; that path is not handled.
    assert diffY >= 0 and diffX >= 0, "x2 must be spatially >= 2 * x1"

    # 128-lane aligned shift margin (>= WP+1 so every tap slice is in-bounds).
    MG = ((WP + 1 + 127) // 128) * 128
    LE = MG + L + (WP + 1)

    # ---- static interpolation / selection data ------------------------------
    h_taps = _row_taps(_bilinear_matrix(Hu, H1))
    row0 = 1 + diffY // 2
    Aw_pad = np.zeros((WP, W1), np.float32)
    Aw_pad[1 + diffX // 2: 1 + diffX // 2 + Wu, :] = _bilinear_matrix(Wu, W1)
    awt = jnp.asarray(Aw_pad.T)                               # (W1, WP) f32

    # interior mask of the padded flat grid (1 inside HxW, 0 on the halo)
    m2d = np.zeros((HP, WP), np.float32)
    m2d[1:H + 1, 1:W + 1] = 1.0
    maskv = jnp.asarray(m2d.reshape(1, L))

    # 0/1 matrix selecting the HxW interior columns of the flat padded grid
    sel_np = np.zeros((L, HW), np.float32)
    cols = (np.arange(H)[:, None] + 1) * WP + (np.arange(W)[None, :] + 1)
    sel_np[cols.reshape(-1), np.arange(HW)] = 1.0
    selm = jnp.asarray(sel_np)

    # ---- layout glue: channel-major / lane-dense kernel inputs -------------
    bf16 = jnp.bfloat16
    x1t = jnp.transpose(x1_nchw, (0, 2, 1, 3)).reshape(
        N, H1 * C1, W1).astype(jnp.float32)                   # rows = h*C1 + c
    x2p = jnp.pad(x2_nchw, ((0, 0), (0, 0), (1, 1), (1, 1))).reshape(
        N, C2, L).astype(bf16)                                # flat padded grid

    def _pack_w_taps(w_hwio):             # HWIO -> (9, Cout, Cin), tap-major
        kh, kw, ci, co = w_hwio.shape
        return jnp.transpose(w_hwio, (0, 1, 3, 2)).reshape(
            kh * kw, co, ci).astype(bf16)

    w1m = _pack_w_taps(w1)                # (9, Cm, Cin)
    w2m = _pack_w_taps(w2)                # (9, Co, Cm)
    b1c = b1.reshape(Cm, 1).astype(jnp.float32)
    b2c = b2.reshape(Co, 1).astype(jnp.float32)

    kernel = functools.partial(_up_unet_kernel, WP=WP, L=L, MG=MG,
                               C1=C1, C2=C2, row0=row0, h_taps=h_taps)

    out_flat = pl.pallas_call(
        kernel,
        out_shape=jax.ShapeDtypeStruct((N, Co, HW), jnp.float32),
        grid_spec=pltpu.PrefetchScalarGridSpec(
            num_scalar_prefetch=0,
            grid=(N,),
            in_specs=[
                pl.BlockSpec((1, H1 * C1, W1), lambda n: (n, 0, 0)),
                pl.BlockSpec((1, C2, L), lambda n: (n, 0, 0)),
                pl.BlockSpec((W1, WP), lambda n: (0, 0)),
                pl.BlockSpec((9, Cm, Cin), lambda n: (0, 0, 0)),
                pl.BlockSpec((Cm, 1), lambda n: (0, 0)),
                pl.BlockSpec((9, Co, Cm), lambda n: (0, 0, 0)),
                pl.BlockSpec((Co, 1), lambda n: (0, 0)),
                pl.BlockSpec((1, L), lambda n: (0, 0)),
                pl.BlockSpec((L, HW), lambda n: (0, 0)),
            ],
            out_specs=pl.BlockSpec((1, Co, HW), lambda n: (n, 0, 0)),
            scratch_shapes=[
                pltpu.VMEM((Cin, LE), bf16),   # flat padded cat([x2, up(x1)])
                pltpu.VMEM((Cm, LE), bf16),    # flat padded conv1 output
            ],
        ),
        compiler_params=pltpu.CompilerParams(
            dimension_semantics=("parallel",)),
    )(x1t, x2p, awt, w1m, b1c, w2m, b2c, maskv, selm)

    return out_flat.reshape(N, Co, H2, W2)                # already NCHW


def ref_forward(x1_nchw, x2_nchw, params):
    """Pure-JAX f32 reference of Up_unet.forward (PyTorch semantics)."""
    w1, b1, w2, b2 = params['w1'], params['b1'], params['w2'], params['b2']
    N, C1, H1, W1 = x1_nchw.shape
    _, C2, H2, W2 = x2_nchw.shape
    x1 = jnp.transpose(x1_nchw, (0, 2, 3, 1))
    x2 = jnp.transpose(x2_nchw, (0, 2, 3, 1))
    Hu, Wu = 2 * H1, 2 * W1
    Ah = jnp.asarray(_bilinear_matrix(Hu, H1))
    Aw = jnp.asarray(_bilinear_matrix(Wu, W1))
    x1u = jnp.einsum('oh,pw,nhwc->nopc', Ah, Aw, x1)
    diffY, diffX = H2 - Hu, W2 - Wu
    x1u = jnp.pad(x1u, ((0, 0), (diffY // 2, diffY - diffY // 2),
                        (diffX // 2, diffX - diffX // 2), (0, 0)))
    x = jnp.concatenate([x2, x1u], axis=-1)
    dn = ('NHWC', 'HWIO', 'NHWC')
    y = jax.lax.conv_general_dilated(x, w1, (1, 1), ((1, 1), (1, 1)),
                                     dimension_numbers=dn) + b1
    y = jnp.maximum(y, 0.0)
    y = jax.lax.conv_general_dilated(y, w2, (1, 1), ((1, 1), (1, 1)),
                                     dimension_numbers=dn) + b2
    y = jnp.maximum(y, 0.0)
    return jnp.transpose(y, (0, 3, 1, 2))


if __name__ == "__main__":
    key = jax.random.PRNGKey(0)
    kx1, kx2, kw1, kb1, kw2, kb2 = jax.random.split(key, 6)

    # Up_unet(in_channels=8, out_channels=4, bilinear=True)
    N, C1, H1, W1 = 2, 4, 8, 8      # x1 (gets upsampled x2)
    C2, H2, W2 = 4, 16, 16          # x2 (skip connection)
    Cin, Cout = C1 + C2, 4

    def _bf16_round(x):             # kernel feeds these to the bf16 MXU
        return x.astype(jnp.bfloat16).astype(jnp.float32)

    x1 = jax.random.normal(kx1, (N, C1, H1, W1), jnp.float32)
    x2 = _bf16_round(jax.random.normal(kx2, (N, C2, H2, W2), jnp.float32))
    params = {
        'w1': _bf16_round(jax.random.normal(kw1, (3, 3, Cin, Cout),
                                            jnp.float32) * 0.1),   # HWIO
        'b1': jax.random.normal(kb1, (Cout,), jnp.float32) * 0.1,
        'w2': _bf16_round(jax.random.normal(kw2, (3, 3, Cout, Cout),
                                            jnp.float32) * 0.1),   # HWIO
        'b2': jax.random.normal(kb2, (Cout,), jnp.float32) * 0.1,
    }

    out = jax.block_until_ready(up_unet_forward(x1, x2, params))
    ref = jax.block_until_ready(ref_forward(x1, x2, params))

    assert out.shape == (N, Cout, H2, W2), out.shape
    np.testing.assert_allclose(np.asarray(out), np.asarray(ref),
                               rtol=2e-2, atol=2e-2)
    print("KERNEL_OK")
</pallas_src>

<mosaic_0001>
module attributes {stable_mosaic.version = 11 : i64} {
  func.func @_up_unet_kernel(%arg0: i32, %arg1: memref<1x32x8xf32, #tpu.memory_space<vmem>>, %arg2: memref<1x4x324xbf16, #tpu.memory_space<vmem>>, %arg3: memref<8x18xf32, #tpu.memory_space<vmem>>, %arg4: memref<9x4x8xbf16, #tpu.memory_space<vmem>>, %arg5: memref<4x1xf32, #tpu.memory_space<vmem>>, %arg6: memref<9x4x4xbf16, #tpu.memory_space<vmem>>, %arg7: memref<4x1xf32, #tpu.memory_space<vmem>>, %arg8: memref<1x324xf32, #tpu.memory_space<vmem>>, %arg9: memref<324x256xf32, #tpu.memory_space<vmem>>, %arg10: memref<1x4x256xf32, #tpu.memory_space<vmem>>, %arg11: memref<8x471xbf16, #tpu.memory_space<vmem>>, %arg12: memref<4x471xbf16, #tpu.memory_space<vmem>>) attributes {dimension_semantics = [#tpu.dimension_semantics<parallel>], iteration_bounds = array<i64: 2>, scalar_prefetch = 0 : i64, scratch_operands = 2 : i64, tpu.core_type = #tpu.core_type<tc>, window_params = [{transform_indices = @transform_0, window_bounds = array<i64: 1, 32, 8>}, {transform_indices = @transform_1, window_bounds = array<i64: 1, 4, 324>}, {pipeline_mode = #tpu.pipeline_mode<synchronous>, transform_indices = @transform_2, window_bounds = array<i64: 8, 18>}, {pipeline_mode = #tpu.pipeline_mode<synchronous>, transform_indices = @transform_3, window_bounds = array<i64: 9, 4, 8>}, {pipeline_mode = #tpu.pipeline_mode<synchronous>, transform_indices = @transform_4, window_bounds = array<i64: 4, 1>}, {pipeline_mode = #tpu.pipeline_mode<synchronous>, transform_indices = @transform_5, window_bounds = array<i64: 9, 4, 4>}, {pipeline_mode = #tpu.pipeline_mode<synchronous>, transform_indices = @transform_6, window_bounds = array<i64: 4, 1>}, {pipeline_mode = #tpu.pipeline_mode<synchronous>, transform_indices = @transform_7, window_bounds = array<i64: 1, 324>}, {pipeline_mode = #tpu.pipeline_mode<synchronous>, transform_indices = @transform_8, window_bounds = array<i64: 324, 256>}, {transform_indices = @transform_9, window_bounds = array<i64: 1, 4, 256>}]} {
    %cst = arith.constant 0.000000e+00 : bf16
    %0 = vector.broadcast %cst : bf16 to vector<8x471xbf16>
    %c0 = arith.constant 0 : index
    %c0_0 = arith.constant 0 : index
    %1 = vector.load %arg11[%c0, %c0_0] : memref<8x471xbf16, #tpu.memory_space<vmem>>, vector<8x471xbf16>
    tpu.vector_store %arg11[%c0, %c0_0], %0 {strides = array<i32>} : memref<8x471xbf16, #tpu.memory_space<vmem>>, vector<8x471xbf16>,
    %cst_1 = arith.constant 0.000000e+00 : bf16
    %2 = vector.broadcast %cst_1 : bf16 to vector<4x471xbf16>
    %c0_2 = arith.constant 0 : index
    %c0_3 = arith.constant 0 : index
    %3 = vector.load %arg12[%c0_2, %c0_3] : memref<4x471xbf16, #tpu.memory_space<vmem>>, vector<4x471xbf16>
    tpu.vector_store %arg12[%c0_2, %c0_3], %2 {strides = array<i32>} : memref<4x471xbf16, #tpu.memory_space<vmem>>, vector<4x471xbf16>,
    %c0_4 = arith.constant 0 : index
    %c0_5 = arith.constant 0 : index
    %c0_6 = arith.constant 0 : index
    %4 = vector.load %arg2[%c0_4, %c0_5, %c0_6] : memref<1x4x324xbf16, #tpu.memory_space<vmem>>, vector<1x4x324xbf16>
    %5 = vector.shape_cast %4 : vector<1x4x324xbf16> to vector<4x324xbf16>
    %c0_7 = arith.constant 0 : index
    %c128 = arith.constant 128 : index
    %6 = vector.load %arg11[%c0_7, %c128] : memref<8x471xbf16, #tpu.memory_space<vmem>>, vector<4x324xbf16>
    tpu.vector_store %arg11[%c0_7, %c128], %5 {strides = array<i32>} : memref<8x471xbf16, #tpu.memory_space<vmem>>, vector<4x324xbf16>,
    %c0_8 = arith.constant 0 : index
    %c0_9 = arith.constant 0 : index
    %c0_10 = arith.constant 0 : index
    %7 = vector.load %arg1[%c0_8, %c0_9, %c0_10] : memref<1x32x8xf32, #tpu.memory_space<vmem>>, vector<1x32x8xf32>
    %8 = vector.shape_cast %7 : vector<1x32x8xf32> to vector<32x8xf32>
    %c0_11 = arith.constant 0 : index
    %c0_12 = arith.constant 0 : index
    %9 = vector.load %arg3[%c0_11, %c0_12] : memref<8x18xf32, #tpu.memory_space<vmem>>, vector<8x18xf32>
    %cst_13 = arith.constant dense<0.000000e+00> : vector<32x18xf32>
    %10 = tpu.matmul %8, %9, %cst_13 {dimension_numbers = #tpu.dot_dimension_numbers<[1], [0], [0], [1], [0, 0, 1, 1], [], []>} : vector<32x8xf32>, vector<8x18xf32>, vector<32x18xf32> -> vector<32x18xf32>
    %11 = vector.extract_strided_slice %10 {offsets = [0, 0], sizes = [4, 18], strides = [1, 1]} : vector<32x18xf32> to vector<4x18xf32>
    %12 = vector.extract_strided_slice %10 {offsets = [0, 0], sizes = [4, 18], strides = [1, 1]} : vector<32x18xf32> to vector<4x18xf32>
    %cst_14 = arith.constant 0.533333361 : f32
    %13 = vector.broadcast %cst_14 : f32 to vector<4x18xf32>
    %14 = arith.mulf %13, %12 : vector<4x18xf32>
    %15 = vector.extract_strided_slice %10 {offsets = [4, 0], sizes = [4, 18], strides = [1, 1]} : vector<32x18xf32> to vector<4x18xf32>
    %cst_15 = arith.constant 0.466666669 : f32
    %16 = vector.broadcast %cst_15 : f32 to vector<4x18xf32>
    %17 = arith.mulf %16, %15 : vector<4x18xf32>
    %18 = arith.addf %14, %17 : vector<4x18xf32>
    %19 = vector.extract_strided_slice %10 {offsets = [0, 0], sizes = [4, 18], strides = [1, 1]} : vector<32x18xf32> to vector<4x18xf32>
    %cst_16 = arith.constant 0.0666666701 : f32
    %20 = vector.broadcast %cst_16 : f32 to vector<4x18xf32>
    %21 = arith.mulf %20, %19 : vector<4x18xf32>
    %22 = vector.extract_strided_slice %10 {offsets = [4, 0], sizes = [4, 18], strides = [1, 1]} : vector<32x18xf32> to vector<4x18xf32>
    %cst_17 = arith.constant 0.933333337 : f32
    %23 = vector.broadcast %cst_17 : f32 to vector<4x18xf32>
    %24 = arith.mulf %23, %22 : vector<4x18xf32>
    %25 = arith.addf %21, %24 : vector<4x18xf32>
    %26 = vector.extract_strided_slice %10 {offsets = [4, 0], sizes = [4, 18], strides = [1, 1]} : vector<32x18xf32> to vector<4x18xf32>
    %cst_18 = arith.constant 6.000000e-01 : f32
    %27 = vector.broadcast %cst_18 : f32 to vector<4x18xf32>
    %28 = arith.mulf %27, %26 : vector<4x18xf32>
    %29 = vector.extract_strided_slice %10 {offsets = [8, 0], sizes = [4, 18], strides = [1, 1]} : vector<32x18xf32> to vector<4x18xf32>
    %cst_19 = arith.constant 4.000000e-01 : f32
    %30 = vector.broadcast %cst_19 : f32 to vector<4x18xf32>
    %31 = arith.mulf %30, %29 : vector<4x18xf32>
    %32 = arith.addf %28, %31 : vector<4x18xf32>
    %33 = vector.extract_strided_slice %10 {offsets = [4, 0], sizes = [4, 18], strides = [1, 1]} : vector<32x18xf32> to vector<4x18xf32>
    %cst_20 = arith.constant 0.13333334 : f32
    %34 = vector.broadcast %cst_20 : f32 to vector<4x18xf32>
    %35 = arith.mulf %34, %33 : vector<4x18xf32>
    %36 = vector.extract_strided_slice %10 {offsets = [8, 0], sizes = [4, 18], strides = [1, 1]} : vector<32x18xf32> to vector<4x18xf32>
    %cst_21 = arith.constant 0.866666674 : f32
    %37 = vector.broadcast %cst_21 : f32 to vector<4x18xf32>
    %38 = arith.mulf %37, %36 : vector<4x18xf32>
    %39 = arith.addf %35, %38 : vector<4x18xf32>
    %40 = vector.extract_strided_slice %10 {offsets = [8, 0], sizes = [4, 18], strides = [1, 1]} : vector<32x18xf32> to vector<4x18xf32>
    %cst_22 = arith.constant 0.666666686 : f32
    %41 = vector.broadcast %cst_22 : f32 to vector<4x18xf32>
    %42 = arith.mulf %41, %40 : vector<4x18xf32>
    %43 = vector.extract_strided_slice %10 {offsets = [12, 0], sizes = [4, 18], strides = [1, 1]} : vector<32x18xf32> to vector<4x18xf32>
    %cst_23 = arith.constant 0.333333343 : f32
    %44 = vector.broadcast %cst_23 : f32 to vector<4x18xf32>
    %45 = arith.mulf %44, %43 : vector<4x18xf32>
    %46 = arith.addf %42, %45 : vector<4x18xf32>
    %47 = vector.extract_strided_slice %10 {offsets = [8, 0], sizes = [4, 18], strides = [1, 1]} : vector<32x18xf32> to vector<4x18xf32>
    %cst_24 = arith.constant 2.000000e-01 : f32
    %48 = vector.broadcast %cst_24 : f32 to vector<4x18xf32>
    %49 = arith.mulf %48, %47 : vector<4x18xf32>
    %50 = vector.extract_strided_slice %10 {offsets = [12, 0], sizes = [4, 18], strides = [1, 1]} : vector<32x18xf32> to vector<4x18xf32>
    %cst_25 = arith.constant 8.000000e-01 : f32
    %51 = vector.broadcast %cst_25 : f32 to vector<4x18xf32>
    %52 = arith.mulf %51, %50 : vector<4x18xf32>
    %53 = arith.addf %49, %52 : vector<4x18xf32>
    %54 = vector.extract_strided_slice %10 {offsets = [12, 0], sizes = [4, 18], strides = [1, 1]} : vector<32x18xf32> to vector<4x18xf32>
    %cst_26 = arith.constant 0.733333349 : f32
    %55 = vector.broadcast %cst_26 : f32 to vector<4x18xf32>
    %56 = arith.mulf %55, %54 : vector<4x18xf32>
    %57 = vector.extract_strided_slice %10 {offsets = [16, 0], sizes = [4, 18], strides = [1, 1]} : vector<32x18xf32> to vector<4x18xf32>
    %cst_27 = arith.constant 0.266666681 : f32
    %58 = vector.broadcast %cst_27 : f32 to vector<4x18xf32>
    %59 = arith.mulf %58, %57 : vector<4x18xf32>
    %60 = arith.addf %56, %59 : vector<4x18xf32>
    %61 = vector.extract_strided_slice %10 {offsets = [12, 0], sizes = [4, 18], strides = [1, 1]} : vector<32x18xf32> to vector<4x18xf32>
    %cst_28 = arith.constant 0.266666681 : f32
    %62 = vector.broadcast %cst_28 : f32 to vector<4x18xf32>
    %63 = arith.mulf %62, %61 : vector<4x18xf32>
    %64 = vector.extract_strided_slice %10 {offsets = [16, 0], sizes = [4, 18], strides = [1, 1]} : vector<32x18xf32> to vector<4x18xf32>
    %cst_29 = arith.constant 0.733333349 : f32
    %65 = vector.broadcast %cst_29 : f32 to vector<4x18xf32>
    %66 = arith.mulf %65, %64 : vector<4x18xf32>
    %67 = arith.addf %63, %66 : vector<4x18xf32>
    %68 = vector.extract_strided_slice %10 {offsets = [16, 0], sizes = [4, 18], strides = [1, 1]} : vector<32x18xf32> to vector<4x18xf32>
    %cst_30 = arith.constant 8.000000e-01 : f32
    %69 = vector.broadcast %cst_30 : f32 to vector<4x18xf32>
    %70 = arith.mulf %69, %68 : vector<4x18xf32>
    %71 = vector.extract_strided_slice %10 {offsets = [20, 0], sizes = [4, 18], strides = [1, 1]} : vector<32x18xf32> to vector<4x18xf32>
    %cst_31 = arith.constant 2.000000e-01 : f32
    %72 = vector.broadcast %cst_31 : f32 to vector<4x18xf32>
    %73 = arith.mulf %72, %71 : vector<4x18xf32>
    %74 = arith.addf %70, %73 : vector<4x18xf32>
    %75 = vector.extract_strided_slice %10 {offsets = [16, 0], sizes = [4, 18], strides = [1, 1]} : vector<32x18xf32> to vector<4x18xf32>
    %cst_32 = arith.constant 0.333333343 : f32
    %76 = vector.broadcast %cst_32 : f32 to vector<4x18xf32>
    %77 = arith.mulf %76, %75 : vector<4x18xf32>
    %78 = vector.extract_strided_slice %10 {offsets = [20, 0], sizes = [4, 18], strides = [1, 1]} : vector<32x18xf32> to vector<4x18xf32>
    %cst_33 = arith.constant 0.666666686 : f32
    %79 = vector.broadcast %cst_33 : f32 to vector<4x18xf32>
    %80 = arith.mulf %79, %78 : vector<4x18xf32>
    %81 = arith.addf %77, %80 : vector<4x18xf32>
    %82 = vector.extract_strided_slice %10 {offsets = [20, 0], sizes = [4, 18], strides = [1, 1]} : vector<32x18xf32> to vector<4x18xf32>
    %cst_34 = arith.constant 0.866666674 : f32
    %83 = vector.broadcast %cst_34 : f32 to vector<4x18xf32>
    %84 = arith.mulf %83, %82 : vector<4x18xf32>
    %85 = vector.extract_strided_slice %10 {offsets = [24, 0], sizes = [4, 18], strides = [1, 1]} : vector<32x18xf32> to vector<4x18xf32>
    %cst_35 = arith.constant 0.13333334 : f32
    %86 = vector.broadcast %cst_35 : f32 to vector<4x18xf32>
    %87 = arith.mulf %86, %85 : vector<4x18xf32>
    %88 = arith.addf %84, %87 : vector<4x18xf32>
    %89 = vector.extract_strided_slice %10 {offsets = [20, 0], sizes = [4, 18], strides = [1, 1]} : vector<32x18xf32> to vector<4x18xf32>
    %cst_36 = arith.constant 4.000000e-01 : f32
    %90 = vector.broadcast %cst_36 : f32 to vector<4x18xf32>
    %91 = arith.mulf %90, %89 : vector<4x18xf32>
    %92 = vector.extract_strided_slice %10 {offsets = [24, 0], sizes = [4, 18], strides = [1, 1]} : vector<32x18xf32> to vector<4x18xf32>
    %cst_37 = arith.constant 6.000000e-01 : f32
    %93 = vector.broadcast %cst_37 : f32 to vector<4x18xf32>
    %94 = arith.mulf %93, %92 : vector<4x18xf32>
    %95 = arith.addf %91, %94 : vector<4x18xf32>
    %96 = vector.extract_strided_slice %10 {offsets = [24, 0], sizes = [4, 18], strides = [1, 1]} : vector<32x18xf32> to vector<4x18xf32>
    %cst_38 = arith.constant 0.933333337 : f32
    %97 = vector.broadcast %cst_38 : f32 to vector<4x18xf32>
    %98 = arith.mulf %97, %96 : vector<4x18xf32>
    %99 = vector.extract_strided_slice %10 {offsets = [28, 0], sizes = [4, 18], strides = [1, 1]} : vector<32x18xf32> to vector<4x18xf32>
    %cst_39 = arith.constant 0.0666666701 : f32
    %100 = vector.broadcast %cst_39 : f32 to vector<4x18xf32>
    %101 = arith.mulf %100, %99 : vector<4x18xf32>
    %102 = arith.addf %98, %101 : vector<4x18xf32>
    %103 = vector.extract_strided_slice %10 {offsets = [24, 0], sizes = [4, 18], strides = [1, 1]} : vector<32x18xf32> to vector<4x18xf32>
    %cst_40 = arith.constant 0.466666669 : f32
    %104 = vector.broadcast %cst_40 : f32 to vector<4x18xf32>
    %105 = arith.mulf %104, %103 : vector<4x18xf32>
    %106 = vector.extract_strided_slice %10 {offsets = [28, 0], sizes = [4, 18], strides = [1, 1]} : vector<32x18xf32> to vector<4x18xf32>
    %cst_41 = arith.constant 0.533333361 : f32
    %107 = vector.broadcast %cst_41 : f32 to vector<4x18xf32>
    %108 = arith.mulf %107, %106 : vector<4x18xf32>
    %109 = arith.addf %105, %108 : vector<4x18xf32>
    %110 = vector.extract_strided_slice %10 {offsets = [28, 0], sizes = [4, 18], strides = [1, 1]} : vector<32x18xf32> to vector<4x18xf32>
    %111 = tpu.concatenate %11, %18, %25, %32, %39, %46, %53, %60, %67, %74, %81, %88, %95, %102, %109, %110 in 1 : vector<4x18xf32>, vector<4x18xf32>, vector<4x18xf32>, vector<4x18xf32>, vector<4x18xf32>, vector<4x18xf32>, vector<4x18xf32>, vector<4x18xf32>, vector<4x18xf32>, vector<4x18xf32>, vector<4x18xf32>, vector<4x18xf32>, vector<4x18xf32>, vector<4x18xf32>, vector<4x18xf32>, vector<4x18xf32> -> vector<4x288xf32>
    %112 = arith.truncf %111 : vector<4x288xf32> to vector<4x288xbf16>
    %c4 = arith.constant 4 : index
    %c146 = arith.constant 146 : index
    %113 = vector.load %arg11[%c4, %c146] : memref<8x471xbf16, #tpu.memory_space<vmem>>, vector<4x288xbf16>
    tpu.vector_store %arg11[%c4, %c146], %112 {strides = array<i32>} : memref<8x471xbf16, #tpu.memory_space<vmem>>, vector<4x288xbf16>,
    %c0_42 = arith.constant 0 : index
    %c0_43 = arith.constant 0 : index
    %c0_44 = arith.constant 0 : index
    %114 = vector.load %arg4[%c0_42, %c0_43, %c0_44] : memref<9x4x8xbf16, #tpu.memory_space<vmem>>, vector<1x4x8xbf16>
    %115 = vector.shape_cast %114 : vector<1x4x8xbf16> to vector<4x8xbf16>
    %c0_45 = arith.constant 0 : index
    %c109 = arith.constant 109 : index
    %116 = vector.load %arg11[%c0_45, %c109] : memref<8x471xbf16, #tpu.memory_space<vmem>>, vector<8x324xbf16>
    %cst_46 = arith.constant dense<0.000000e+00> : vector<4x324xf32>
    %117 = tpu.matmul %115, %116, %cst_46 {dimension_numbers = #tpu.dot_dimension_numbers<[1], [0], [0], [1], [0, 0, 1, 1], [], []>} : vector<4x8xbf16>, vector<8x324xbf16>, vector<4x324xf32> -> vector<4x324xf32>
    %c1 = arith.constant 1 : index
    %c0_47 = arith.constant 0 : index
    %c0_48 = arith.constant 0 : index
    %118 = vector.load %arg4[%c1, %c0_47, %c0_48] : memref<9x4x8xbf16, #tpu.memory_space<vmem>>, vector<1x4x8xbf16>
    %119 = vector.shape_cast %118 : vector<1x4x8xbf16> to vector<4x8xbf16>
    %c0_49 = arith.constant 0 : index
    %c110 = arith.constant 110 : index
    %120 = vector.load %arg11[%c0_49, %c110] : memref<8x471xbf16, #tpu.memory_space<vmem>>, vector<8x324xbf16>
    %cst_50 = arith.constant dense<0.000000e+00> : vector<4x324xf32>
    %121 = tpu.matmul %119, %120, %cst_50 {dimension_numbers = #tpu.dot_dimension_numbers<[1], [0], [0], [1], [0, 0, 1, 1], [], []>} : vector<4x8xbf16>, vector<8x324xbf16>, vector<4x324xf32> -> vector<4x324xf32>
    %122 = arith.addf %117, %121 : vector<4x324xf32>
    %c2 = arith.constant 2 : index
    %c0_51 = arith.constant 0 : index
    %c0_52 = arith.constant 0 : index
    %123 = vector.load %arg4[%c2, %c0_51, %c0_52] : memref<9x4x8xbf16, #tpu.memory_space<vmem>>, vector<1x4x8xbf16>
    %124 = vector.shape_cast %123 : vector<1x4x8xbf16> to vector<4x8xbf16>
    %c0_53 = arith.constant 0 : index
    %c111 = arith.constant 111 : index
    %125 = vector.load %arg11[%c0_53, %c111] : memref<8x471xbf16, #tpu.memory_space<vmem>>, vector<8x324xbf16>
    %cst_54 = arith.constant dense<0.000000e+00> : vector<4x324xf32>
    %126 = tpu.matmul %124, %125, %cst_54 {dimension_numbers = #tpu.dot_dimension_numbers<[1], [0], [0], [1], [0, 0, 1, 1], [], []>} : vector<4x8xbf16>, vector<8x324xbf16>, vector<4x324xf32> -> vector<4x324xf32>
    %127 = arith.addf %122, %126 : vector<4x324xf32>
    %c3 = arith.constant 3 : index
    %c0_55 = arith.constant 0 : index
    %c0_56 = arith.constant 0 : index
    %128 = vector.load %arg4[%c3, %c0_55, %c0_56] : memref<9x4x8xbf16, #tpu.memory_space<vmem>>, vector<1x4x8xbf16>
    %129 = vector.shape_cast %128 : vector<1x4x8xbf16> to vector<4x8xbf16>
    %c0_57 = arith.constant 0 : index
    %c127 = arith.constant 127 : index
    %130 = vector.load %arg11[%c0_57, %c127] : memref<8x471xbf16, #tpu.memory_space<vmem>>, vector<8x324xbf16>
    %cst_58 = arith.constant dense<0.000000e+00> : vector<4x324xf32>
    %131 = tpu.matmul %129, %130, %cst_58 {dimension_numbers = #tpu.dot_dimension_numbers<[1], [0], [0], [1], [0, 0, 1, 1], [], []>} : vector<4x8xbf16>, vector<8x324xbf16>, vector<4x324xf32> -> vector<4x324xf32>
    %132 = arith.addf %127, %131 : vector<4x324xf32>
    %c4_59 = arith.constant 4 : index
    %c0_60 = arith.constant 0 : index
    %c0_61 = arith.constant 0 : index
    %133 = vector.load %arg4[%c4_59, %c0_60, %c0_61] : memref<9x4x8xbf16, #tpu.memory_space<vmem>>, vector<1x4x8xbf16>
    %134 = vector.shape_cast %133 : vector<1x4x8xbf16> to vector<4x8xbf16>
    %c0_62 = arith.constant 0 : index
    %c128_63 = arith.constant 128 : index
    %135 = vector.load %arg11[%c0_62, %c128_63] : memref<8x471xbf16, #tpu.memory_space<vmem>>, vector<8x324xbf16>
    %cst_64 = arith.constant dense<0.000000e+00> : vector<4x324xf32>
    %136 = tpu.matmul %134, %135, %cst_64 {dimension_numbers = #tpu.dot_dimension_numbers<[1], [0], [0], [1], [0, 0, 1, 1], [], []>} : vector<4x8xbf16>, vector<8x324xbf16>, vector<4x324xf32> -> vector<4x324xf32>
    %137 = arith.addf %132, %136 : vector<4x324xf32>
    %c5 = arith.constant 5 : index
    %c0_65 = arith.constant 0 : index
    %c0_66 = arith.constant 0 : index
    %138 = vector.load %arg4[%c5, %c0_65, %c0_66] : memref<9x4x8xbf16, #tpu.memory_space<vmem>>, vector<1x4x8xbf16>
    %139 = vector.shape_cast %138 : vector<1x4x8xbf16> to vector<4x8xbf16>
    %c0_67 = arith.constant 0 : index
    %c129 = arith.constant 129 : index
    %140 = vector.load %arg11[%c0_67, %c129] : memref<8x471xbf16, #tpu.memory_space<vmem>>, vector<8x324xbf16>
    %cst_68 = arith.constant dense<0.000000e+00> : vector<4x324xf32>
    %141 = tpu.matmul %139, %140, %cst_68 {dimension_numbers = #tpu.dot_dimension_numbers<[1], [0], [0], [1], [0, 0, 1, 1], [], []>} : vector<4x8xbf16>, vector<8x324xbf16>, vector<4x324xf32> -> vector<4x324xf32>
    %142 = arith.addf %137, %141 : vector<4x324xf32>
    %c6 = arith.constant 6 : index
    %c0_69 = arith.constant 0 : index
    %c0_70 = arith.constant 0 : index
    %143 = vector.load %arg4[%c6, %c0_69, %c0_70] : memref<9x4x8xbf16, #tpu.memory_space<vmem>>, vector<1x4x8xbf16>
    %144 = vector.shape_cast %143 : vector<1x4x8xbf16> to vector<4x8xbf16>
    %c0_71 = arith.constant 0 : index
    %c145 = arith.constant 145 : index
    %145 = vector.load %arg11[%c0_71, %c145] : memref<8x471xbf16, #tpu.memory_space<vmem>>, vector<8x324xbf16>
    %cst_72 = arith.constant dense<0.000000e+00> : vector<4x324xf32>
    %146 = tpu.matmul %144, %145, %cst_72 {dimension_numbers = #tpu.dot_dimension_numbers<[1], [0], [0], [1], [0, 0, 1, 1], [], []>} : vector<4x8xbf16>, vector<8x324xbf16>, vector<4x324xf32> -> vector<4x324xf32>
    %147 = arith.addf %142, %146 : vector<4x324xf32>
    %c7 = arith.constant 7 : index
    %c0_73 = arith.constant 0 : index
    %c0_74 = arith.constant 0 : index
    %148 = vector.load %arg4[%c7, %c0_73, %c0_74] : memref<9x4x8xbf16, #tpu.memory_space<vmem>>, vector<1x4x8xbf16>
    %149 = vector.shape_cast %148 : vector<1x4x8xbf16> to vector<4x8xbf16>
    %c0_75 = arith.constant 0 : index
    %c146_76 = arith.constant 146 : index
    %150 = vector.load %arg11[%c0_75, %c146_76] : memref<8x471xbf16, #tpu.memory_space<vmem>>, vector<8x324xbf16>
    %cst_77 = arith.constant dense<0.000000e+00> : vector<4x324xf32>
    %151 = tpu.matmul %149, %150, %cst_77 {dimension_numbers = #tpu.dot_dimension_numbers<[1], [0], [0], [1], [0, 0, 1, 1], [], []>} : vector<4x8xbf16>, vector<8x324xbf16>, vector<4x324xf32> -> vector<4x324xf32>
    %152 = arith.addf %147, %151 : vector<4x324xf32>
    %c8 = arith.constant 8 : index
    %c0_78 = arith.constant 0 : index
    %c0_79 = arith.constant 0 : index
    %153 = vector.load %arg4[%c8, %c0_78, %c0_79] : memref<9x4x8xbf16, #tpu.memory_space<vmem>>, vector<1x4x8xbf16>
    %154 = vector.shape_cast %153 : vector<1x4x8xbf16> to vector<4x8xbf16>
    %c0_80 = arith.constant 0 : index
    %c147 = arith.constant 147 : index
    %155 = vector.load %arg11[%c0_80, %c147] : memref<8x471xbf16, #tpu.memory_space<vmem>>, vector<8x324xbf16>
    %cst_81 = arith.constant dense<0.000000e+00> : vector<4x324xf32>
    %156 = tpu.matmul %154, %155, %cst_81 {dimension_numbers = #tpu.dot_dimension_numbers<[1], [0], [0], [1], [0, 0, 1, 1], [], []>} : vector<4x8xbf16>, vector<8x324xbf16>, vector<4x324xf32> -> vector<4x324xf32>
    %157 = arith.addf %152, %156 : vector<4x324xf32>
    %c0_82 = arith.constant 0 : index
    %c0_83 = arith.constant 0 : index
    %158 = vector.load %arg5[%c0_82, %c0_83] : memref<4x1xf32, #tpu.memory_space<vmem>>, vector<4x1xf32>
    %159 = vector.broadcast %158 : vector<4x1xf32> to vector<4x324xf32>
    %160 = arith.addf %157, %159 : vector<4x324xf32>
    %cst_84 = arith.constant 0.000000e+00 : f32
    %161 = vector.broadcast %cst_84 : f32 to vector<4x324xf32>
    %162 = arith.maximumf %160, %161 : vector<4x324xf32>
    %c0_85 = arith.constant 0 : index
    %c0_86 = arith.constant 0 : index
    %163 = vector.load %arg8[%c0_85, %c0_86] : memref<1x324xf32, #tpu.memory_space<vmem>>, vector<1x324xf32>
    %164 = vector.broadcast %163 : vector<1x324xf32> to vector<4x324xf32>
    %165 = arith.mulf %162, %164 : vector<4x324xf32>
    %166 = arith.truncf %165 : vector<4x324xf32> to vector<4x324xbf16>
    %c0_87 = arith.constant 0 : index
    %c128_88 = arith.constant 128 : index
    %167 = vector.load %arg12[%c0_87, %c128_88] : memref<4x471xbf16, #tpu.memory_space<vmem>>, vector<4x324xbf16>
    tpu.vector_store %arg12[%c0_87, %c128_88], %166 {strides = array<i32>} : memref<4x471xbf16, #tpu.memory_space<vmem>>, vector<4x324xbf16>,
    %c0_89 = arith.constant 0 : index
    %c0_90 = arith.constant 0 : index
    %c0_91 = arith.constant 0 : index
    %168 = vector.load %arg6[%c0_89, %c0_90, %c0_91] : memref<9x4x4xbf16, #tpu.memory_space<vmem>>, vector<1x4x4xbf16>
    %169 = vector.shape_cast %168 : vector<1x4x4xbf16> to vector<4x4xbf16>
    %c0_92 = arith.constant 0 : index
    %c109_93 = arith.constant 109 : index
    %170 = vector.load %arg12[%c0_92, %c109_93] : memref<4x471xbf16, #tpu.memory_space<vmem>>, vector<4x324xbf16>
    %cst_94 = arith.constant dense<0.000000e+00> : vector<4x324xf32>
    %171 = tpu.matmul %169, %170, %cst_94 {dimension_numbers = #tpu.dot_dimension_numbers<[1], [0], [0], [1], [0, 0, 1, 1], [], []>} : vector<4x4xbf16>, vector<4x324xbf16>, vector<4x324xf32> -> vector<4x324xf32>
    %c1_95 = arith.constant 1 : index
    %c0_96 = arith.constant 0 : index
    %c0_97 = arith.constant 0 : index
    %172 = vector.load %arg6[%c1_95, %c0_96, %c0_97] : memref<9x4x4xbf16, #tpu.memory_space<vmem>>, vector<1x4x4xbf16>
    %173 = vector.shape_cast %172 : vector<1x4x4xbf16> to vector<4x4xbf16>
    %c0_98 = arith.constant 0 : index
    %c110_99 = arith.constant 110 : index
    %174 = vector.load %arg12[%c0_98, %c110_99] : memref<4x471xbf16, #tpu.memory_space<vmem>>, vector<4x324xbf16>
    %cst_100 = arith.constant dense<0.000000e+00> : vector<4x324xf32>
    %175 = tpu.matmul %173, %174, %cst_100 {dimension_numbers = #tpu.dot_dimension_numbers<[1], [0], [0], [1], [0, 0, 1, 1], [], []>} : vector<4x4xbf16>, vector<4x324xbf16>, vector<4x324xf32> -> vector<4x324xf32>
    %176 = arith.addf %171, %175 : vector<4x324xf32>
    %c2_101 = arith.constant 2 : index
    %c0_102 = arith.constant 0 : index
    %c0_103 = arith.constant 0 : index
    %177 = vector.load %arg6[%c2_101, %c0_102, %c0_103] : memref<9x4x4xbf16, #tpu.memory_space<vmem>>, vector<1x4x4xbf16>
    %178 = vector.shape_cast %177 : vector<1x4x4xbf16> to vector<4x4xbf16>
    %c0_104 = arith.constant 0 : index
    %c111_105 = arith.constant 111 : index
    %179 = vector.load %arg12[%c0_104, %c111_105] : memref<4x471xbf16, #tpu.memory_space<vmem>>, vector<4x324xbf16>
    %cst_106 = arith.constant dense<0.000000e+00> : vector<4x324xf32>
    %180 = tpu.matmul %178, %179, %cst_106 {dimension_numbers = #tpu.dot_dimension_numbers<[1], [0], [0], [1], [0, 0, 1, 1], [], []>} : vector<4x4xbf16>, vector<4x324xbf16>, vector<4x324xf32> -> vector<4x324xf32>
    %181 = arith.addf %176, %180 : vector<4x324xf32>
    %c3_107 = arith.constant 3 : index
    %c0_108 = arith.constant 0 : index
    %c0_109 = arith.constant 0 : index
    %182 = vector.load %arg6[%c3_107, %c0_108, %c0_109] : memref<9x4x4xbf16, #tpu.memory_space<vmem>>, vector<1x4x4xbf16>
    %183 = vector.shape_cast %182 : vector<1x4x4xbf16> to vector<4x4xbf16>
    %c0_110 = arith.constant 0 : index
    %c127_111 = arith.constant 127 : index
    %184 = vector.load %arg12[%c0_110, %c127_111] : memref<4x471xbf16, #tpu.memory_space<vmem>>, vector<4x324xbf16>
    %cst_112 = arith.constant dense<0.000000e+00> : vector<4x324xf32>
    %185 = tpu.matmul %183, %184, %cst_112 {dimension_numbers = #tpu.dot_dimension_numbers<[1], [0], [0], [1], [0, 0, 1, 1], [], []>} : vector<4x4xbf16>, vector<4x324xbf16>, vector<4x324xf32> -> vector<4x324xf32>
    %186 = arith.addf %181, %185 : vector<4x324xf32>
    %c4_113 = arith.constant 4 : index
    %c0_114 = arith.constant 0 : index
    %c0_115 = arith.constant 0 : index
    %187 = vector.load %arg6[%c4_113, %c0_114, %c0_115] : memref<9x4x4xbf16, #tpu.memory_space<vmem>>, vector<1x4x4xbf16>
    %188 = vector.shape_cast %187 : vector<1x4x4xbf16> to vector<4x4xbf16>
    %c0_116 = arith.constant 0 : index
    %c128_117 = arith.constant 128 : index
    %189 = vector.load %arg12[%c0_116, %c128_117] : memref<4x471xbf16, #tpu.memory_space<vmem>>, vector<4x324xbf16>
    %cst_118 = arith.constant dense<0.000000e+00> : vector<4x324xf32>
    %190 = tpu.matmul %188, %189, %cst_118 {dimension_numbers = #tpu.dot_dimension_numbers<[1], [0], [0], [1], [0, 0, 1, 1], [], []>} : vector<4x4xbf16>, vector<4x324xbf16>, vector<4x324xf32> -> vector<4x324xf32>
    %191 = arith.addf %186, %190 : vector<4x324xf32>
    %c5_119 = arith.constant 5 : index
    %c0_120 = arith.constant 0 : index
    %c0_121 = arith.constant 0 : index
    %192 = vector.load %arg6[%c5_119, %c0_120, %c0_121] : memref<9x4x4xbf16, #tpu.memory_space<vmem>>, vector<1x4x4xbf16>
    %193 = vector.shape_cast %192 : vector<1x4x4xbf16> to vector<4x4xbf16>
    %c0_122 = arith.constant 0 : index
    %c129_123 = arith.constant 129 : index
    %194 = vector.load %arg12[%c0_122, %c129_123] : memref<4x471xbf16, #tpu.memory_space<vmem>>, vector<4x324xbf16>
    %cst_124 = arith.constant dense<0.000000e+00> : vector<4x324xf32>
    %195 = tpu.matmul %193, %194, %cst_124 {dimension_numbers = #tpu.dot_dimension_numbers<[1], [0], [0], [1], [0, 0, 1, 1], [], []>} : vector<4x4xbf16>, vector<4x324xbf16>, vector<4x324xf32> -> vector<4x324xf32>
    %196 = arith.addf %191, %195 : vector<4x324xf32>
    %c6_125 = arith.constant 6 : index
    %c0_126 = arith.constant 0 : index
    %c0_127 = arith.constant 0 : index
    %197 = vector.load %arg6[%c6_125, %c0_126, %c0_127] : memref<9x4x4xbf16, #tpu.memory_space<vmem>>, vector<1x4x4xbf16>
    %198 = vector.shape_cast %197 : vector<1x4x4xbf16> to vector<4x4xbf16>
    %c0_128 = arith.constant 0 : index
    %c145_129 = arith.constant 145 : index
    %199 = vector.load %arg12[%c0_128, %c145_129] : memref<4x471xbf16, #tpu.memory_space<vmem>>, vector<4x324xbf16>
    %cst_130 = arith.constant dense<0.000000e+00> : vector<4x324xf32>
    %200 = tpu.matmul %198, %199, %cst_130 {dimension_numbers = #tpu.dot_dimension_numbers<[1], [0], [0], [1], [0, 0, 1, 1], [], []>} : vector<4x4xbf16>, vector<4x324xbf16>, vector<4x324xf32> -> vector<4x324xf32>
    %201 = arith.addf %196, %200 : vector<4x324xf32>
    %c7_131 = arith.constant 7 : index
    %c0_132 = arith.constant 0 : index
    %c0_133 = arith.constant 0 : index
    %202 = vector.load %arg6[%c7_131, %c0_132, %c0_133] : memref<9x4x4xbf16, #tpu.memory_space<vmem>>, vector<1x4x4xbf16>
    %203 = vector.shape_cast %202 : vector<1x4x4xbf16> to vector<4x4xbf16>
    %c0_134 = arith.constant 0 : index
    %c146_135 = arith.constant 146 : index
    %204 = vector.load %arg12[%c0_134, %c146_135] : memref<4x471xbf16, #tpu.memory_space<vmem>>, vector<4x324xbf16>
    %cst_136 = arith.constant dense<0.000000e+00> : vector<4x324xf32>
    %205 = tpu.matmul %203, %204, %cst_136 {dimension_numbers = #tpu.dot_dimension_numbers<[1], [0], [0], [1], [0, 0, 1, 1], [], []>} : vector<4x4xbf16>, vector<4x324xbf16>, vector<4x324xf32> -> vector<4x324xf32>
    %206 = arith.addf %201, %205 : vector<4x324xf32>
    %c8_137 = arith.constant 8 : index
    %c0_138 = arith.constant 0 : index
    %c0_139 = arith.constant 0 : index
    %207 = vector.load %arg6[%c8_137, %c0_138, %c0_139] : memref<9x4x4xbf16, #tpu.memory_space<vmem>>, vector<1x4x4xbf16>
    %208 = vector.shape_cast %207 : vector<1x4x4xbf16> to vector<4x4xbf16>
    %c0_140 = arith.constant 0 : index
    %c147_141 = arith.constant 147 : index
    %209 = vector.load %arg12[%c0_140, %c147_141] : memref<4x471xbf16, #tpu.memory_space<vmem>>, vector<4x324xbf16>
    %cst_142 = arith.constant dense<0.000000e+00> : vector<4x324xf32>
    %210 = tpu.matmul %208, %209, %cst_142 {dimension_numbers = #tpu.dot_dimension_numbers<[1], [0], [0], [1], [0, 0, 1, 1], [], []>} : vector<4x4xbf16>, vector<4x324xbf16>, vector<4x324xf32> -> vector<4x324xf32>
    %211 = arith.addf %206, %210 : vector<4x324xf32>
    %c0_143 = arith.constant 0 : index
    %c0_144 = arith.constant 0 : index
    %212 = vector.load %arg9[%c0_143, %c0_144] : memref<324x256xf32, #tpu.memory_space<vmem>>, vector<324x256xf32>
    %cst_145 = arith.constant dense<0.000000e+00> : vector<4x256xf32>
    %213 = tpu.matmul %211, %212, %cst_145 {dimension_numbers = #tpu.dot_dimension_numbers<[1], [0], [0], [1], [0, 0, 1, 1], [], []>} : vector<4x324xf32>, vector<324x256xf32>, vector<4x256xf32> -> vector<4x256xf32>
    %c0_146 = arith.constant 0 : index
    %c0_147 = arith.constant 0 : index
    %214 = vector.load %arg7[%c0_146, %c0_147] : memref<4x1xf32, #tpu.memory_space<vmem>>, vector<4x1xf32>
    %215 = vector.broadcast %214 : vector<4x1xf32> to vector<4x256xf32>
    %216 = arith.addf %213, %215 : vector<4x256xf32>
    %cst_148 = arith.constant 0.000000e+00 : f32
    %217 = vector.broadcast %cst_148 : f32 to vector<4x256xf32>
    %218 = arith.maximumf %216, %217 : vector<4x256xf32>
    %c0_149 = arith.constant 0 : index
    %c0_150 = arith.constant 0 : index
    %c0_151 = arith.constant 0 : index
    %219 = vector.load %arg10[%c0_149, %c0_150, %c0_151] : memref<1x4x256xf32, #tpu.memory_space<vmem>>, vector<1x4x256xf32>
    %220 = vector.shape_cast %219 : vector<1x4x256xf32> to vector<4x256xf32>
    %221 = vector.shape_cast %218 : vector<4x256xf32> to vector<1x4x256xf32>
    tpu.vector_store %arg10[%c0_149, %c0_150, %c0_151], %221 {strides = array<i32>} : memref<1x4x256xf32, #tpu.memory_space<vmem>>, vector<1x4x256xf32>,
    return
  }
  func.func @transform_0(%arg0: i32) -> (i32, i32, i32) {
    %c0_i32 = arith.constant 0 : i32
    %c0_i32_0 = arith.constant 0 : i32
    %c0_i32_1 = arith.constant 0 : i32
    return %arg0, %c0_i32, %c0_i32_0 : i32, i32, i32
  }
  func.func @transform_1(%arg0: i32) -> (i32, i32, i32) {
    %c0_i32 = arith.constant 0 : i32
    %c0_i32_0 = arith.constant 0 : i32
    %c0_i32_1 = arith.constant 0 : i32
    return %arg0, %c0_i32, %c0_i32_0 : i32, i32, i32
  }
  func.func @transform_2(%arg0: i32) -> (i32, i32) {
    %c0_i32 = arith.constant 0 : i32
    %c0_i32_0 = arith.constant 0 : i32
    %c0_i32_1 = arith.constant 0 : i32
    return %c0_i32, %c0_i32_0 : i32, i32
  }
  func.func @transform_3(%arg0: i32) -> (i32, i32, i32) {
    %c0_i32 = arith.constant 0 : i32
    %c0_i32_0 = arith.constant 0 : i32
    %c0_i32_1 = arith.constant 0 : i32
    %c0_i32_2 = arith.constant 0 : i32
    return %c0_i32, %c0_i32_0, %c0_i32_1 : i32, i32, i32
  }
  func.func @transform_4(%arg0: i32) -> (i32, i32) {
    %c0_i32 = arith.constant 0 : i32
    %c0_i32_0 = arith.constant 0 : i32
    %c0_i32_1 = arith.constant 0 : i32
    return %c0_i32, %c0_i32_0 : i32, i32
  }
  func.func @transform_5(%arg0: i32) -> (i32, i32, i32) {
    %c0_i32 = arith.constant 0 : i32
    %c0_i32_0 = arith.constant 0 : i32
    %c0_i32_1 = arith.constant 0 : i32
    %c0_i32_2 = arith.constant 0 : i32
    return %c0_i32, %c0_i32_0, %c0_i32_1 : i32, i32, i32
  }
  func.func @transform_6(%arg0: i32) -> (i32, i32) {
    %c0_i32 = arith.constant 0 : i32
    %c0_i32_0 = arith.constant 0 : i32
    %c0_i32_1 = arith.constant 0 : i32
    return %c0_i32, %c0_i32_0 : i32, i32
  }
  func.func @transform_7(%arg0: i32) -> (i32, i32) {
    %c0_i32 = arith.constant 0 : i32
    %c0_i32_0 = arith.constant 0 : i32
    %c0_i32_1 = arith.constant 0 : i32
    return %c0_i32, %c0_i32_0 : i32, i32
  }
  func.func @transform_8(%arg0: i32) -> (i32, i32) {
    %c0_i32 = arith.constant 0 : i32
    %c0_i32_0 = arith.constant 0 : i32
    %c0_i32_1 = arith.constant 0 : i32
    return %c0_i32, %c0_i32_0 : i32, i32
  }
  func.func @transform_9(%arg0: i32) -> (i32, i32, i32) {
    %c0_i32 = arith.constant 0 : i32
    %c0_i32_0 = arith.constant 0 : i32
    %c0_i32_1 = arith.constant 0 : i32
    return %arg0, %c0_i32, %c0_i32_0 : i32, i32, i32
  }
}

</mosaic_0001>

<llo_original>
// kernel: tpu_custom_call.1
$region0: #{tpu_custom_call.1}
  #allocation0 [shape = 'u32[]', space=smem, size = 0x4, offset = 0x4, fixed_abs, tag = 'smem constant byte address 0x4 - core index']
  #allocation1 [shape = 'u32[144,128]{1,0:T(1,128)}', space=vmem, size = 0x12000, scoped, tag = 'internal scratch']
  #allocation2 [shape = 'bf16[8,471]{1,0:T(8,128)(2,1)}', space=vmem, size = 0x2000, scoped, tag = 'scratch operand']
  #allocation3 [shape = 'bf16[4,471]{1,0:T(4,128)(2,1)}', space=vmem, size = 0x1000, scoped, tag = 'scratch operand']
  %s0 = inlined_call_operand.vmem [shape: f32[2,32,8], index: 0, kind: input, shape index: {}]
  %s1 = inlined_call_operand.vmem [shape: bf16[2,4,324], index: 1, kind: input, shape index: {}]
  %s2 = inlined_call_operand.vmem [shape: f32[8,18], index: 2, kind: input, shape index: {}]
  %s3 = inlined_call_operand.vmem [shape: bf16[9,4,8], index: 3, kind: input, shape index: {}]
  %s4 = inlined_call_operand.vmem [shape: f32[4,1], index: 4, kind: input, shape index: {}]
  %s5 = inlined_call_operand.vmem [shape: bf16[9,4,4], index: 5, kind: input, shape index: {}]
  %s6 = inlined_call_operand.vmem [shape: f32[4,1], index: 6, kind: input, shape index: {}]
  %s7 = inlined_call_operand.vmem [shape: f32[1,324], index: 7, kind: input, shape index: {}]
  %s8 = inlined_call_operand.hbm [shape: f32[324,256], index: 8, kind: input, shape index: {}]
  %s9 = inlined_call_operand.hbm [shape: f32[2,4,256], index: 9, kind: output, shape index: {}]
  %s10 = sld [smem:[#allocation0]]
  $region73: #{tpu_custom_call.1} parent=0
    _
  %s12 = ssub.s32 1, %s10
  %s13 = scalar_select 0, %s12, %s10
  $region1: #{tpu_custom_call.1} parent=0
    #allocation4 [shape = 'u8[335872]{0}', space=vmem, size = 0x52000, scoped, tag = 'input window, operand 8, single buffered']
    #allocation5 [shape = 's32[2]{0}', space=sflag, size = 0x8, scoped, tag = 'scoped memory for tpu_custom_call.1']
    #allocation6 [shape = 's32[2]{0}', space=sflag, size = 0x8, scoped, tag = 'scoped memory for tpu_custom_call.1']
    #allocation7 [shape = 'u8[8192]{0}', space=vmem, size = 0x2000, scoped, tag = 'output window, operand 0']
    %14 = vsyncpa [#allocation5], 0
    %15 = vsyncpa [#allocation6], 0
    %s16 = scalar_lea.sflag [#allocation6], 1
    %17 = vsyncpa %s16, 0
    loop: start=0, step=1, limit=4
    $region2: #{tpu_custom_call.1} parent=1 // loop_pre_header
      _
    $region3: #{tpu_custom_call.1} parent=1 // loop_header
      %s19 = sphi 0, %s23
      %p20 = scmp.ge.s32.totalorder %s19, 4
      %s29 = sphi 0, %s31
      %s32 = sphi 0, %s29
      %s33 = sphi 0, %s32
      %s49 = sphi 0, %s33
      %s55 = sphi 0, %s57
      %s58 = sphi 0, %s55
      %s59 = sphi 0, %s58
      %s75 = sphi 0, %s59
      %s79 = sphi 0, %s79
      %s81 = sphi 0, %s79
      %s82 = sphi 0, %s81
      %s96 = sphi 0, %s82
      %s100 = sphi 0, %s100
      %s102 = sphi 0, %s100
      %s103 = sphi 0, %s102
      %s117 = sphi 0, %s103
      %s121 = sphi 0, %s121
      %s123 = sphi 0, %s121
      %s124 = sphi 0, %s123
      %s138 = sphi 0, %s124
      %s142 = sphi 0, %s142
      %s144 = sphi 0, %s142
      %s145 = sphi 0, %s144
      %s159 = sphi 0, %s145
      %s163 = sphi 0, %s163
      %s165 = sphi 0, %s163
      %s166 = sphi 0, %s165
      %s180 = sphi 0, %s166
      %s184 = sphi 0, %s184
      %s186 = sphi 0, %s184
      %s187 = sphi 0, %s186
      %s201 = sphi 0, %s187
      %s205 = sphi 0, %s205
      %s207 = sphi 0, %s205
      %s208 = sphi 0, %s207
      %s222 = sphi 0, %s208
      %s228 = sphi 0, %s230
      %s231 = sphi 0, %s228
      %s232 = sphi 0, %s231
      %s248 = sphi 0, %s232
    $region4: #{tpu_custom_call.1} parent=1 // loop_header_branch
      %22 = sbr.rel (%p20) target = $region8
    $region5: #{tpu_custom_call.1} parent=1 // loop_body
      %s24 = ssub.s32 %s19, 1
      %s25 = ssub.s32 %s19, 2
      %s26 = sadd.s32 %s19, 1
      %s27 = ssub.s32 %s19, %s26
      %p28 = scmp.eq.s32.totalorder %s27, 0
      %s30 = sadd.s32 %s29, 1
      %s31 = scalar_select %p28, %s29, %s30
      %p34 = pneg %p28
      %p35 = scmp.eq.s32.totalorder %s19, 1
      %p36 = por %p34, %p35
      %p37 = scmp.ne.s32.totalorder %s29, %s32
      %p38 = scmp.eq.s32.totalorder %s19, 0
      %p39 = por %p37, %p38
      %p40 = scmp.ne.s32.totalorder %s29, %s32
      %p41 = scmp.eq.s32.totalorder %s24, 1
      %p42 = por %p40, %p41
      %p43 = scmp.ne.s32.totalorder %s32, %s33
      %p44 = scmp.eq.s32.totalorder %s24, 0
      %p45 = por %p43, %p44
      %p46 = scmp.ne.s32.totalorder %s32, %s33
      %p47 = scmp.eq.s32.totalorder %s25, 1
      %p48 = por %p46, %p47
      %p50 = scmp.ne.s32.totalorder %s33, %s49
      %p51 = scmp.eq.s32.totalorder %s25, 0
      %p52 = por %p50, %p51
      %s53 = ssub.s32 %s19, %s26
      %p54 = scmp.eq.s32.totalorder %s53, 0
      %s56 = sadd.s32 %s55, 1
      %s57 = scalar_select %p54, %s55, %s56
      %p60 = pneg %p54
      %p61 = scmp.eq.s32.totalorder %s19, 1
      %p62 = por %p60, %p61
      %p63 = scmp.ne.s32.totalorder %s55, %s58
      %p64 = scmp.eq.s32.totalorder %s19, 0
      %p65 = por %p63, %p64
      %p66 = scmp.ne.s32.totalorder %s55, %s58
      %p67 = scmp.eq.s32.totalorder %s24, 1
      %p68 = por %p66, %p67
      %p69 = scmp.ne.s32.totalorder %s58, %s59
      %p70 = scmp.eq.s32.totalorder %s24, 0
      %p71 = por %p69, %p70
      %p72 = scmp.ne.s32.totalorder %s58, %s59
      %p73 = scmp.eq.s32.totalorder %s25, 1
      %p74 = por %p72, %p73
      %p76 = scmp.ne.s32.totalorder %s59, %s75
      %p77 = scmp.eq.s32.totalorder %s25, 0
      %p78 = por %p76, %p77
      %s80 = sadd.s32 %s79, 1
      %p83 = scmp.eq.s32.totalorder %s19, 1
      %p84 = scmp.ne.s32.totalorder %s79, %s81
      %p85 = scmp.eq.s32.totalorder %s19, 0
      %p86 = por %p84, %p85
      %p87 = scmp.ne.s32.totalorder %s79, %s81
      %p88 = scmp.eq.s32.totalorder %s24, 1
      %p89 = por %p87, %p88
      %p90 = scmp.ne.s32.totalorder %s81, %s82
      %p91 = scmp.eq.s32.totalorder %s24, 0
      %p92 = por %p90, %p91
      %p93 = scmp.ne.s32.totalorder %s81, %s82
      %p94 = scmp.eq.s32.totalorder %s25, 1
      %p95 = por %p93, %p94
      %p97 = scmp.ne.s32.totalorder %s82, %s96
      %p98 = scmp.eq.s32.totalorder %s25, 0
      %p99 = por %p97, %p98
      %s101 = sadd.s32 %s100, 1
      %p104 = scmp.eq.s32.totalorder %s19, 1
      %p105 = scmp.ne.s32.totalorder %s100, %s102
      %p106 = scmp.eq.s32.totalorder %s19, 0
      %p107 = por %p105, %p106
      %p108 = scmp.ne.s32.totalorder %s100, %s102
      %p109 = scmp.eq.s32.totalorder %s24, 1
      %p110 = por %p108, %p109
      %p111 = scmp.ne.s32.totalorder %s102, %s103
      %p112 = scmp.eq.s32.totalorder %s24, 0
      %p113 = por %p111, %p112
      %p114 = scmp.ne.s32.totalorder %s102, %s103
      %p115 = scmp.eq.s32.totalorder %s25, 1
      %p116 = por %p114, %p115
      %p118 = scmp.ne.s32.totalorder %s103, %s117
      %p119 = scmp.eq.s32.totalorder %s25, 0
      %p120 = por %p118, %p119
      %s122 = sadd.s32 %s121, 1
      %p125 = scmp.eq.s32.totalorder %s19, 1
      %p126 = scmp.ne.s32.totalorder %s121, %s123
      %p127 = scmp.eq.s32.totalorder %s19, 0
      %p128 = por %p126, %p127
      %p129 = scmp.ne.s32.totalorder %s121, %s123
      %p130 = scmp.eq.s32.totalorder %s24, 1
      %p131 = por %p129, %p130
      %p132 = scmp.ne.s32.totalorder %s123, %s124
      %p133 = scmp.eq.s32.totalorder %s24, 0
      %p134 = por %p132, %p133
      %p135 = scmp.ne.s32.totalorder %s123, %s124
      %p136 = scmp.eq.s32.totalorder %s25, 1
      %p137 = por %p135, %p136
      %p139 = scmp.ne.s32.totalorder %s124, %s138
      %p140 = scmp.eq.s32.totalorder %s25, 0
      %p141 = por %p139, %p140
      %s143 = sadd.s32 %s142, 1
      %p146 = scmp.eq.s32.totalorder %s19, 1
      %p147 = scmp.ne.s32.totalorder %s142, %s144
      %p148 = scmp.eq.s32.totalorder %s19, 0
      %p149 = por %p147, %p148
      %p150 = scmp.ne.s32.totalorder %s142, %s144
      %p151 = scmp.eq.s32.totalorder %s24, 1
      %p152 = por %p150, %p151
      %p153 = scmp.ne.s32.totalorder %s144, %s145
      %p154 = scmp.eq.s32.totalorder %s24, 0
      %p155 = por %p153, %p154
      %p156 = scmp.ne.s32.totalorder %s144, %s145
      %p157 = scmp.eq.s32.totalorder %s25, 1
      %p158 = por %p156, %p157
      %p160 = scmp.ne.s32.totalorder %s145, %s159
      %p161 = scmp.eq.s32.totalorder %s25, 0
      %p162 = por %p160, %p161
      %s164 = sadd.s32 %s163, 1
      %p167 = scmp.eq.s32.totalorder %s19, 1
      %p168 = scmp.ne.s32.totalorder %s163, %s165
      %p169 = scmp.eq.s32.totalorder %s19, 0
      %p170 = por %p168, %p169
      %p171 = scmp.ne.s32.totalorder %s163, %s165
      %p172 = scmp.eq.s32.totalorder %s24, 1
      %p173 = por %p171, %p172
      %p174 = scmp.ne.s32.totalorder %s165, %s166
      %p175 = scmp.eq.s32.totalorder %s24, 0
      %p176 = por %p174, %p175
      %p177 = scmp.ne.s32.totalorder %s165, %s166
      %p178 = scmp.eq.s32.totalorder %s25, 1
      %p179 = por %p177, %p178
      %p181 = scmp.ne.s32.totalorder %s166, %s180
      %p182 = scmp.eq.s32.totalorder %s25, 0
      %p183 = por %p181, %p182
      %s185 = sadd.s32 %s184, 1
      %p188 = scmp.eq.s32.totalorder %s19, 1
      %p189 = scmp.ne.s32.totalorder %s184, %s186
      %p190 = scmp.eq.s32.totalorder %s19, 0
      %p191 = por %p189, %p190
      %p192 = scmp.ne.s32.totalorder %s184, %s186
      %p193 = scmp.eq.s32.totalorder %s24, 1
      %p194 = por %p192, %p193
      %p195 = scmp.ne.s32.totalorder %s186, %s187
      %p196 = scmp.eq.s32.totalorder %s24, 0
      %p197 = por %p195, %p196
      %p198 = scmp.ne.s32.totalorder %s186, %s187
      %p199 = scmp.eq.s32.totalorder %s25, 1
      %p200 = por %p198, %p199
      %p202 = scmp.ne.s32.totalorder %s187, %s201
      %p203 = scmp.eq.s32.totalorder %s25, 0
      %p204 = por %p202, %p203
      %s206 = sadd.s32 %s205, 1
      %p209 = scmp.eq.s32.totalorder %s19, 1
      %p210 = scmp.ne.s32.totalorder %s205, %s207
      %p211 = scmp.eq.s32.totalorder %s19, 0
      %p212 = por %p210, %p211
      %p213 = scmp.ne.s32.totalorder %s205, %s207
      %p214 = scmp.eq.s32.totalorder %s24, 1
      %p215 = por %p213, %p214
      %p216 = scmp.ne.s32.totalorder %s207, %s208
      %p217 = scmp.eq.s32.totalorder %s24, 0
      %p218 = por %p216, %p217
      %p219 = scmp.ne.s32.totalorder %s207, %s208
      %p220 = scmp.eq.s32.totalorder %s25, 1
      %p221 = por %p219, %p220
      %p223 = scmp.ne.s32.totalorder %s208, %s222
      %p224 = scmp.eq.s32.totalorder %s25, 0
      %p225 = por %p223, %p224
      %s226 = ssub.s32 %s19, %s26
      %p227 = scmp.eq.s32.totalorder %s226, 0
      %s229 = sadd.s32 %s228, 1
      %s230 = scalar_select %p227, %s228, %s229
      %p233 = pneg %p227
      %p234 = scmp.eq.s32.totalorder %s19, 1
      %p235 = por %p233, %p234
      %p236 = scmp.ne.s32.totalorder %s228, %s231
      %p237 = scmp.eq.s32.totalorder %s19, 0
      %p238 = por %p236, %p237
      %p239 = scmp.ne.s32.totalorder %s228, %s231
      %p240 = scmp.eq.s32.totalorder %s24, 1
      %p241 = por %p239, %p240
      %p242 = scmp.ne.s32.totalorder %s231, %s232
      %p243 = scmp.eq.s32.totalorder %s24, 0
      %p244 = por %p242, %p243
      %p245 = scmp.ne.s32.totalorder %s231, %s232
      %p246 = scmp.eq.s32.totalorder %s25, 1
      %p247 = por %p245, %p246
      %p249 = scmp.ne.s32.totalorder %s232, %s248
      %p250 = scmp.eq.s32.totalorder %s25, 0
      %p251 = por %p249, %p250
      %p252 = scmp.le.s32.totalorder 1, %s19
      %p253 = scmp.lt.s32.totalorder %s19, 3
      %p254 = pnand %p252, %p253
      %p255 = pneg %p254
      // Predicated region
      $region9: #{tpu_custom_call.1} parent=5 // pred_check
        _
      $region10: #{tpu_custom_call.1} parent=5 // pred_check_branch
        %257 = sbr.rel (%p254) target = $region12
      $region11: #{tpu_custom_call.1} parent=5 // pred_region
        %s258 = ssub.s32 %s19, 1
        // Predicated region
        $region13: #{tpu_custom_call.1} parent=11 // pred_check
          %p259 = pneg %p92
        $region14: #{tpu_custom_call.1} parent=11 // pred_check_branch
          %261 = sbr.rel (%p259) target = $region16
        $region15: #{tpu_custom_call.1} parent=11 // pred_region
          _
        $region16: #{tpu_custom_call.1} parent=11 // pred_fallthru
          _
        // Predicated region
        $region17: #{tpu_custom_call.1} parent=11 // pred_check
          %p262 = pneg %p113
        $region18: #{tpu_custom_call.1} parent=11 // pred_check_branch
          %264 = sbr.rel (%p262) target = $region20
        $region19: #{tpu_custom_call.1} parent=11 // pred_region
          _
        $region20: #{tpu_custom_call.1} parent=11 // pred_fallthru
          _
        // Predicated region
        $region21: #{tpu_custom_call.1} parent=11 // pred_check
          %p265 = pneg %p134
        $region22: #{tpu_custom_call.1} parent=11 // pred_check_branch
          %267 = sbr.rel (%p265) target = $region24
        $region23: #{tpu_custom_call.1} parent=11 // pred_region
          _
        $region24: #{tpu_custom_call.1} parent=11 // pred_fallthru
          _
        // Predicated region
        $region25: #{tpu_custom_call.1} parent=11 // pred_check
          %p268 = pneg %p155
        $region26: #{tpu_custom_call.1} parent=11 // pred_check_branch
          %270 = sbr.rel (%p268) target = $region28
        $region27: #{tpu_custom_call.1} parent=11 // pred_region
          _
        $region28: #{tpu_custom_call.1} parent=11 // pred_fallthru
          _
        // Predicated region
        $region29: #{tpu_custom_call.1} parent=11 // pred_check
          %p271 = pneg %p176
        $region30: #{tpu_custom_call.1} parent=11 // pred_check_branch
          %273 = sbr.rel (%p271) target = $region32
        $region31: #{tpu_custom_call.1} parent=11 // pred_region
          _
        $region32: #{tpu_custom_call.1} parent=11 // pred_fallthru
          _
        // Predicated region
        $region33: #{tpu_custom_call.1} parent=11 // pred_check
          %p274 = pneg %p197
        $region34: #{tpu_custom_call.1} parent=11 // pred_check_branch
          %276 = sbr.rel (%p274) target = $region36
        $region35: #{tpu_custom_call.1} parent=11 // pred_region
          _
        $region36: #{tpu_custom_call.1} parent=11 // pred_fallthru
          _
        // Predicated region
        $region37: #{tpu_custom_call.1} parent=11 // pred_check
          %p277 = pneg %p218
        $region38: #{tpu_custom_call.1} parent=11 // pred_check_branch
          %279 = sbr.rel (%p277) target = $region40
        $region39: #{tpu_custom_call.1} parent=11 // pred_region
          %s281 = ssub.s32 10496, 10496
          %282 = vsyncadd [#allocation5], %s281
          %s283 = sshll.u32 [#allocation4], 4
          %s284 = int_to_ptr.vmem [resolvable:$true] %s283
          %289 = dma.hbm_to_vmem [thread:$0]  %s8, 10496, %s284, [#allocation5], 256, 256, 16
        $region40: #{tpu_custom_call.1} parent=11 // pred_fallthru
          _
      $region12: #{tpu_custom_call.1} parent=5 // pred_fallthru
        _
      %p290 = scmp.lt.s32.totalorder %s19, 2
      // Predicated region
      $region41: #{tpu_custom_call.1} parent=5 // pred_check
        %p291 = pneg %p290
      $region42: #{tpu_custom_call.1} parent=5 // pred_check_branch
        %293 = sbr.rel (%p291) target = $region44
      $region43: #{tpu_custom_call.1} parent=5 // pred_region
        // Predicated region
        $region45: #{tpu_custom_call.1} parent=43 // pred_check
          %p294 = pneg %p39
        $region46: #{tpu_custom_call.1} parent=43 // pred_check_branch
          %296 = sbr.rel (%p294) target = $region48
        $region47: #{tpu_custom_call.1} parent=43 // pred_region
          %p297 = scmp.lt.s32.totalorder %s19, 1
          %s298 = scalar_select %p297, %s19, 1
          %s299 = smul.addr %s298, 4
          %s300 = smul.addr %s299, 8
          %s301 = scalar_lea.vmem %s0, %s300
        $region48: #{tpu_custom_call.1} parent=43 // pred_fallthru
          _
        // Predicated region
        $region49: #{tpu_custom_call.1} parent=43 // pred_check
          %p302 = pneg %p65
        $region50: #{tpu_custom_call.1} parent=43 // pred_check_branch
          %304 = sbr.rel (%p302) target = $region52
        $region51: #{tpu_custom_call.1} parent=43 // pred_region
          %p305 = scmp.lt.s32.totalorder %s19, 1
          %s306 = scalar_select %p305, %s19, 1
          %s307 = smul.addr %s306, 3
          %s308 = smul.addr %s307, 2
          %s309 = scalar_lea.vmem %s1, %s308
        $region52: #{tpu_custom_call.1} parent=43 // pred_fallthru
          _
      $region44: #{tpu_custom_call.1} parent=5 // pred_fallthru
        _
      %p310 = scmp.le.s32.totalorder 1, %s19
      %p311 = scmp.lt.s32.totalorder %s19, 3
      %p312 = pnand %p310, %p311
      %p313 = pneg %p312
      // Predicated region
      $region53: #{tpu_custom_call.1} parent=5 // pred_check
        _
      $region54: #{tpu_custom_call.1} parent=5 // pred_check_branch
        %315 = sbr.rel (%p312) target = $region56
      $region55: #{tpu_custom_call.1} parent=5 // pred_region
        %s316 = ssub.s32 %s19, 1
        // Predicated region
        $region57: #{tpu_custom_call.1} parent=55 // pred_check
          %p317 = pneg %p218
        $region58: #{tpu_custom_call.1} parent=55 // pred_check_branch
          %319 = sbr.rel (%p317) target = $region60
        $region59: #{tpu_custom_call.1} parent=55 // pred_region
          %320 = dma.done [#allocation5], 10496
        $region60: #{tpu_custom_call.1} parent=55 // pred_fallthru
          _
        %p321 = scmp.lt.s32.totalorder %s24, 1
        %s322 = scalar_select %p321, %s24, 1
        %s323 = smul.addr %s322, 4
        %s324 = smul.addr %s323, 8
        %s325 = scalar_lea.vmem %s0, %s324
        %p326 = pneg %p45
        %p327 = pneg %p42
        %p328 = scmp.lt.s32.totalorder %s24, 1
        %s329 = scalar_select %p328, %s24, 1
        %s330 = smul.addr %s329, 3
        %s331 = smul.addr %s330, 2
        %s332 = scalar_lea.vmem %s1, %s331
        %p333 = pneg %p71
        %p334 = pneg %p68
        %p335 = pneg %p92
        %p336 = pneg %p89
        %p337 = pneg %p113
        %p338 = pneg %p110
        %p339 = pneg %p134
        %p340 = pneg %p131
        %p341 = pneg %p155
        %p342 = pneg %p152
        %p343 = pneg %p176
        %p344 = pneg %p173
        %p345 = pneg %p197
        %p346 = pneg %p194
        %p347 = pneg %p218
        %p348 = pneg %p215
        %p349 = pneg %p244
        %p350 = pneg %p241
        %s351 = sand.u32 %s231, 1
        %s352 = scalar_lea.sflag [#allocation6], %s351
        %s353 = sand.u32 %s231, 1
        %s354 = smul.addr %s353, 8
        %s355 = scalar_lea.vmem [#allocation7], %s354
        %p356 = scmp.lt.s32.totalorder %s24, 1
        %s357 = scalar_select %p356, %s24, 1
        %s358 = smul.addr %s357, 4
        %s359 = smul.addr %s358, 8
        %s360 = scalar_lea.vmem %s0, %s359
        %p361 = scmp.lt.s32.totalorder %s24, 1
        %s362 = scalar_select %p361, %s24, 1
        %s363 = smul.addr %s362, 3
        %s364 = smul.addr %s363, 2
        %s365 = scalar_lea.vmem %s1, %s364
        %367 = vst [vmem:[#allocation2] sm:$0xff] 0
        %vm368 = vcmask 1043456
        %vm369 = vcmask 711684
        %vm370 = vmor %vm369, %vm368
        %371 = vst.msk [vmem:[#allocation2 + $0x8] sm:$0xff] %vm370, 0
        %vm372 = vcmask 1041408
        %vm373 = vcmask 1043458
        %vm374 = vmor %vm373, %vm372
        %vm375 = vcmask 1045508
        %vm376 = vmor %vm375, %vm374
        %vm377 = vcmask 711686
        %vm378 = vmor %vm377, %vm376
        %379 = vst.msk [vmem:[#allocation3] sm:$0xff] %vm378, 0
        %v380 = vld [vmem:[%s365] sm:$0x3f]
        %v382 = vcombine.high %v380, %v380
        %v384 = vunpack.c.l.s4 1983009808
        %v385 = vunpack.c.0.s8 %v384
        %v386 = vlaneseq
        %v387 = vshrl.u32 %v386, 7
        %v388 = vsub.s32 %v385, %v387
        %v389 = vrot.slane %v380, %v388
        %v391 = vunpack.c.l.s4 1983009808
        %v392 = vunpack.c.0.s8 %v391
        %v393 = vlaneseq
        %v394 = vshrl.u32 %v393, 7
        %v395 = vsub.s32 %v392, %v394
        %v396 = vrot.slane %v382, %v395
        %399 = vst [vmem:[#allocation2 + $0x4] sm:$0x33] %v389
        %vm400 = vcmask 549888
        %401 = vst.msk [vmem:[#allocation2 + $0xc] sm:$0x3] %vm400, %v396
        %v402 = vld [vmem:[%s360] sm:$0xff]
        %v403 = vld [vmem:[%s360 + $0x8] sm:$0xff]
        %v404 = vld [vmem:[%s360 + $0x10] sm:$0xff]
        %v405 = vld [vmem:[%s360 + $0x18] sm:$0xff]
        %v406 = vld [vmem:[%s2] sm:$0xff]
        %vm407 = vcmask 64512
        %v409 = vsel %vm407, %v402, 0
        %v412 = vsel %vm407, %v403, 0
        %v415 = vsel %vm407, %v404, 0
        %v418 = vsel %vm407, %v405, 0
        %420 = vmatprep.subr.mxu0 0.0
        %421 = vmatpush1.msra.mxu0 %v406
        %422 = vmatprep.subr.mxu0 0.0
        %423 = vmatpush1.msra.mxu0 0.0
        %424 = vmatprep.subr.mxu0 0.0
        %425 = vmatpush1.msra.mxu0 0.0
        %426 = vmatprep.subr.mxu0 0.0
        %427 = vmatpush1.msra.mxu0 0.0
        %428 = vmatprep.subr.mxu0 0.0
        %429 = vmatpush1.msra.mxu0 0.0
        %430 = vmatprep.subr.mxu0 0.0
        %431 = vmatpush1.msra.mxu0 0.0
        %432 = vmatprep.subr.mxu0 0.0
        %433 = vmatpush1.msra.mxu0 0.0
        %434 = vmatprep.subr.mxu0 0.0
        %435 = vmatpush1.msra.mxu0 0.0
        %436 = vmatprep.subr.mxu0 0.0
        %437 = vmatpush1.msra.mxu0 0.0
        %438 = vmatprep.subr.mxu0 0.0
        %439 = vmatpush1.msra.mxu0 0.0
        %440 = vmatprep.subr.mxu0 0.0
        %441 = vmatpush1.msra.mxu0 0.0
        %442 = vmatprep.subr.mxu0 0.0
        %443 = vmatpush1.msra.mxu0 0.0
        %444 = vmatprep.subr.mxu0 0.0
        %445 = vmatpush1.msra.mxu0 0.0
        %446 = vmatprep.subr.mxu0 0.0
        %447 = vmatpush1.msra.mxu0 0.0
        %448 = vmatprep.subr.mxu0 0.0
        %449 = vmatpush1.msra.mxu0 0.0
        %450 = vmatprep.subr.mxu0 0.0
        %451 = vmatpush1.msra.mxu0 0.0
        %452 = vmatprep.subr.mxu0 0.0
        %453 = vmatpush1.msra.mxu0 0.0
        %454 = vmatprep.subr.mxu0 0.0
        %455 = vmatpush1.msra.mxu0 0.0
        %456 = vmatprep.subr.mxu0 0.0
        %457 = vmatpush1.msra.mxu0 0.0
        %458 = vmatprep.subr.mxu0 0.0
        %459 = vmatpush1.msra.mxu0 0.0
        %460 = vmatprep.subr.mxu0 0.0
        %461 = vmatpush1.msra.mxu0 0.0
        %462 = vmatprep.subr.mxu0 0.0
        %463 = vmatpush1.msra.mxu0 0.0
        %464 = vmatprep.subr.mxu0 0.0
        %465 = vmatpush1.msra.mxu0 0.0
        %466 = vmatprep.subr.mxu0 0.0
        %467 = vmatpush1.msra.mxu0 0.0
        %468 = vmatprep.subr.mxu0 0.0
        %469 = vmatpush1.msra.mxu0 0.0
        %470 = vmatprep.subr.mxu0 0.0
        %471 = vmatpush1.msra.mxu0 0.0
        %472 = vmatprep.subr.mxu0 0.0
        %473 = vmatpush1.msra.mxu0 0.0
        %474 = vmatprep.subr.mxu0 0.0
        %475 = vmatpush1.msra.mxu0 0.0
        %476 = vmatprep.subr.mxu0 0.0
        %477 = vmatpush1.msra.mxu0 0.0
        %478 = vmatprep.subr.mxu0 0.0
        %479 = vmatpush1.msra.mxu0 0.0
        %480 = vmatprep.subr.mxu0 0.0
        %481 = vmatpush1.msra.mxu0 0.0
        %482 = vmatprep.subr.mxu0 0.0
        %483 = vmatpush1.msra.mxu0 0.0
        %484 = vmatprep.mubr.f32.mxu0 0.0
        %485 = vmatmul.mubr.f32.gmra.mrb[0].mxu0 %v409
        %v486 = vpop.f32.mrb[0].mxu0
        %v487 = vadd.f32 0.0, %v486
        %v488 = vpop.f32.mrb[0].mxu0
        %489 = vmatprep.mubr.f32.mxu0 0.0
        %490 = vmatmul.mubr.f32.gmra.mrb[0].mxu0 %v412
        %v491 = vpop.f32.mrb[0].mxu0
        %v492 = vadd.f32 0.0, %v491
        %v493 = vpop.f32.mrb[0].mxu0
        %494 = vmatprep.mubr.f32.mxu0 0.0
        %495 = vmatmul.mubr.f32.gmra.mrb[0].mxu0 %v415
        %v496 = vpop.f32.mrb[0].mxu0
        %v497 = vadd.f32 0.0, %v496
        %v498 = vpop.f32.mrb[0].mxu0
        %499 = vmatprep.mubr.f32.mxu0 0.0
        %500 = vmatmul.mubr.f32.gmra.mrb[0].mxu0 %v418
        %v501 = vpop.f32.mrb[0].mxu0
        %v502 = vadd.f32 0.0, %v501
        %v503 = vpop.f32.mrb[0].mxu0
        %504 = vdwg.mxu0
        %v505 = vmul.f32 %v487, 0.53333336
        %v506 = vmul.f32 %v487, 0.46666667
        %v508 = vrot.slane %v506, 4
        %v510 = vadd.f32 %v505, %v508
        %v511 = vmul.f32 %v487, 0.06666667
        %v512 = vmul.f32 %v487, 0.93333334
        %v514 = vrot.slane %v512, 4
        %v516 = vadd.f32 %v511, %v514
        %v517 = vmul.f32 %v487, 0.6
        %v518 = vmul.f32 %v492, 0.4
        %v520 = vrot.slane %v518, 4
        %v522 = vadd.f32 %v517, %v520
        %v523 = vmul.f32 %v487, 0.13333334
        %v524 = vmul.f32 %v492, 0.8666667
        %v526 = vrot.slane %v524, 4
        %v528 = vadd.f32 %v523, %v526
        %v529 = vmul.f32 %v492, 0.6666667
        %v530 = vmul.f32 %v492, 0.33333334
        %v532 = vrot.slane %v530, 4
        %v534 = vadd.f32 %v529, %v532
        %v535 = vmul.f32 %v492, 0.2
        %v536 = vmul.f32 %v492, 0.8
        %v538 = vrot.slane %v536, 4
        %v540 = vadd.f32 %v535, %v538
        %v541 = vmul.f32 %v492, 0.73333335
        %v542 = vmul.f32 %v497, 0.26666668
        %v544 = vrot.slane %v542, 4
        %v546 = vadd.f32 %v541, %v544
        %v547 = vmul.f32 %v492, 0.26666668
        %v548 = vmul.f32 %v497, 0.73333335
        %v550 = vrot.slane %v548, 4
        %v552 = vadd.f32 %v547, %v550
        %v553 = vmul.f32 %v497, 0.8
        %v554 = vmul.f32 %v497, 0.2
        %v556 = vrot.slane %v554, 4
        %v558 = vadd.f32 %v553, %v556
        %v559 = vmul.f32 %v497, 0.33333334
        %v560 = vmul.f32 %v497, 0.6666667
        %v562 = vrot.slane %v560, 4
        %v564 = vadd.f32 %v559, %v562
        %v565 = vmul.f32 %v497, 0.8666667
        %v566 = vmul.f32 %v502, 0.13333334
        %v568 = vrot.slane %v566, 4
        %v570 = vadd.f32 %v565, %v568
        %v571 = vmul.f32 %v497, 0.4
        %v572 = vmul.f32 %v502, 0.6
        %v574 = vrot.slane %v572, 4
        %v576 = vadd.f32 %v571, %v574
        %v577 = vmul.f32 %v502, 0.93333334
        %v578 = vmul.f32 %v502, 0.06666667
        %v580 = vrot.slane %v578, 4
        %v582 = vadd.f32 %v577, %v580
        %v583 = vmul.f32 %v502, 0.46666667
        %v584 = vmul.f32 %v502, 0.53333336
        %v586 = vrot.slane %v584, 4
        %v588 = vadd.f32 %v583, %v586
        %590 = vrot.lane.b32.xlu0 %v510, 18
        %v591 = vpop.permute.xlu0 %590
        %594 = vrot.lane.b32.xlu0 %v516, 36
        %v595 = vpop.permute.xlu0 %594
        %v598 = vrot.slane %v522, 4
        %599 = vrot.lane.b32.xlu0 %v598, 54
        %v600 = vpop.permute.xlu0 %599
        %v603 = vrot.slane %v528, 4
        %604 = vrot.lane.b32.xlu0 %v603, 72
        %v605 = vpop.permute.xlu0 %604
        %608 = vrot.lane.b32.xlu0 %v534, 90
        %v609 = vpop.permute.xlu0 %608
        %612 = vrot.lane.b32.xlu0 %v540, 108
        %v613 = vpop.permute.xlu0 %612
        %v616 = vrot.slane %v546, 4
        %617 = vrot.lane.b32.xlu0 %v616, 126
        %v618 = vpop.permute.xlu0 %617
        %v621 = vrot.slane %v552, 4
        %622 = vrot.lane.b32.xlu0 %v621, 16
        %v623 = vpop.permute.xlu0 %622
        %626 = vrot.lane.b32.xlu0 %v558, 34
        %v627 = vpop.permute.xlu0 %626
        %630 = vrot.lane.b32.xlu0 %v564, 52
        %v631 = vpop.permute.xlu0 %630
        %v634 = vrot.slane %v570, 4
        %635 = vrot.lane.b32.xlu0 %v634, 70
        %v636 = vpop.permute.xlu0 %635
        %v639 = vrot.slane %v576, 4
        %640 = vrot.lane.b32.xlu0 %v639, 88
        %v641 = vpop.permute.xlu0 %640
        %644 = vrot.lane.b32.xlu0 %v582, 106
        %v645 = vpop.permute.xlu0 %644
        %648 = vrot.lane.b32.xlu0 %v588, 124
        %v649 = vpop.permute.xlu0 %648
        %v652 = vrot.slane %v502, 4
        %653 = vrot.lane.b32.xlu0 %v652, 14
        %v654 = vpop.permute.xlu0 %653
        %vm656 = vcmask 146432
        %v657 = vsel %vm656, %v487, %v591
        %vm658 = vcmask 293888
        %v659 = vsel %vm658, %v657, %v595
        %vm660 = vcmask 441344
        %v661 = vsel %vm660, %v659, %v600
        %vm662 = vcmask 588800
        %v663 = vsel %vm662, %v661, %v605
        %vm664 = vcmask 736256
        %v665 = vsel %vm664, %v663, %v609
        %vm666 = vcmask 883712
        %v667 = vsel %vm666, %v665, %v613
        %vm668 = vcmask 1031168
        %v669 = vsel %vm668, %v667, %v618
        %vm670 = vcmask 130048
        %v671 = vsel %vm670, %v618, %v623
        %vm672 = vcmask 277504
        %v673 = vsel %vm672, %v671, %v627
        %vm674 = vcmask 424960
        %v675 = vsel %vm674, %v673, %v631
        %vm676 = vcmask 572416
        %v677 = vsel %vm676, %v675, %v636
        %vm678 = vcmask 719872
        %v679 = vsel %vm678, %v677, %v641
        %vm680 = vcmask 867328
        %v681 = vsel %vm680, %v679, %v645
        %vm682 = vcmask 1014784
        %v683 = vsel %vm682, %v681, %v649
        %vm684 = vcmask 113664
        %v685 = vsel %vm684, %v649, %v654
        %v686 = vpack.c.bf16 %v669, %v669
        %v687 = vpack.c.bf16 %v683, %v683
        %v688 = vpack.c.bf16 %v685, %v685
        %v692 = vunpack.c.l.b16 %v686
        %v693 = vunpack.c.l.b16 %v687
        %v694 = vunpack.c.l.b16 %v688
        %v695 = vpack.c.b16 %v693, %v692
        %v696 = vpack.c.b16 %v694, %v694
        %v697 = vrot.slane %v695, 6
        %v698 = vrot.slane %v696, 6
        %699 = vrot.lane.b32.xlu0 %v697, 18
        %v700 = vpop.permute.xlu0 %699
        %701 = vrot.lane.b32.xlu0 %v698, 18
        %v702 = vpop.permute.xlu0 %701
        %v703 = vrot.slane %v700, 4
        %vm704 = vcmask 146432
        %v705 = vsel %vm704, %v703, %v700
        %v706 = vsel %vm704, %v703, %v702
        %vm709 = vcmask 1043602
        %vm710 = vcmask 1047558
        %vm711 = vmor %vm710, %vm709
        %712 = vst.msk [vmem:[#allocation2 + $0x4] sm:$0xcc] %vm711, %v705
        %vm713 = vcmask 404482
        %714 = vst.msk [vmem:[#allocation2 + $0xc] sm:$0xc] %vm713, %v706
        %v715 = vld [vmem:[%s3] sm:$0x3]
        %v716 = vld [vmem:[#allocation2] sm:$0xff]
        %v717 = vld [vmem:[#allocation2 + $0x8] sm:$0xff]
        %s718 = scalar_lea.vmem %s3, 2
        %v719 = vld [vmem:[%s718] sm:$0x3]
        %v722 = vunpack.c.l.b16 %v716
        %v723 = vunpack.c.h.b16 %v716
        %v724 = vunpack.c.l.b16 %v717
        %v725 = vunpack.c.h.b16 %v717
        %v726 = vpack.c.b16 %v722, %v722
        %v727 = vpack.c.b16 %v723, %v723
        %v728 = vpack.c.b16 %v724, %v724
        %v729 = vpack.c.b16 %v725, %v725
        %730 = vrot.lane.b32.xlu0 %v726, 18
        %v731 = vpop.permute.xlu0 %730
        %732 = vrot.lane.b32.xlu0 %v727, 18
        %v733 = vpop.permute.xlu0 %732
        %734 = vrot.lane.b32.xlu0 %v728, 18
        %v735 = vpop.permute.xlu0 %734
        %736 = vrot.lane.b32.xlu0 %v729, 18
        %v737 = vpop.permute.xlu0 %736
        %v738 = vsel %vm704, %v731, %v733
        %v739 = vsel %vm704, %v733, %v735
        %v740 = vsel %vm704, %v735, %v737
        %v742 = vsel %vm407, %v719, 0
        %v745 = vsel %vm368, %v738, 0
        %v748 = vsel %vm368, %v739, 0
        %v751 = vsel %vm368, %v740, 0
        %753 = vmatprep.subr.bf16.mxu0 %v748
        %754 = vmatpush1.bf16.msra.mxu0 %v745
        %755 = vmatprep.subr.bf16.mxu0 0
        %756 = vmatpush1.bf16.msra.mxu0 0
        %757 = vmatprep.subr.bf16.mxu0 0
        %758 = vmatpush1.bf16.msra.mxu0 0
        %759 = vmatprep.subr.bf16.mxu0 0
        %760 = vmatpush1.bf16.msra.mxu0 0
        %761 = vmatprep.subr.bf16.mxu0 0
        %762 = vmatpush1.bf16.msra.mxu0 0
        %763 = vmatprep.subr.bf16.mxu0 0
        %764 = vmatpush1.bf16.msra.mxu0 0
        %765 = vmatprep.subr.bf16.mxu0 0
        %766 = vmatpush1.bf16.msra.mxu0 0
        %767 = vmatprep.subr.bf16.mxu0 0
        %768 = vmatpush1.bf16.msra.mxu0 0
        %769 = vmatprep.subr.bf16.mxu0 0
        %770 = vmatpush1.bf16.msra.mxu0 0
        %771 = vmatprep.subr.bf16.mxu0 0
        %772 = vmatpush1.bf16.msra.mxu0 0
        %773 = vmatprep.subr.bf16.mxu0 0
        %774 = vmatpush1.bf16.msra.mxu0 0
        %775 = vmatprep.subr.bf16.mxu0 0
        %776 = vmatpush1.bf16.msra.mxu0 0
        %777 = vmatprep.subr.bf16.mxu0 0
        %778 = vmatpush1.bf16.msra.mxu0 0
        %779 = vmatprep.subr.bf16.mxu0 0
        %780 = vmatpush1.bf16.msra.mxu0 0
        %781 = vmatprep.subr.bf16.mxu0 0
        %782 = vmatpush1.bf16.msra.mxu0 0
        %783 = vmatprep.subr.bf16.mxu0 0
        %784 = vmatpush1.bf16.msra.mxu0 0
        %785 = vmatprep.mubr.bf16.mxu0 0
        %786 = vmatmul.mubr.bf16.gmra.mrb[0].mxu0 %v742
        %v787 = vpop.f32.mrb[0].mxu0
        %v788 = vadd.f32 0.0, %v787
        %v789 = vpop.f32.mrb[0].mxu0
        %v790 = vadd.f32 0.0, %v789
        %v791 = vpop.f32.mrb[0].mxu0
        %v792 = vpop.f32.mrb[0].mxu0
        %793 = vdwg.mxu0
        %794 = vmatprep.subr.bf16.mxu0 0
        %795 = vmatpush1.bf16.msra.mxu0 %v751
        %796 = vmatprep.subr.bf16.mxu0 0
        %797 = vmatpush1.bf16.msra.mxu0 0
        %798 = vmatprep.subr.bf16.mxu0 0
        %799 = vmatpush1.bf16.msra.mxu0 0
        %800 = vmatprep.subr.bf16.mxu0 0
        %801 = vmatpush1.bf16.msra.mxu0 0
        %802 = vmatprep.subr.bf16.mxu0 0
        %803 = vmatpush1.bf16.msra.mxu0 0
        %804 = vmatprep.subr.bf16.mxu0 0
        %805 = vmatpush1.bf16.msra.mxu0 0
        %806 = vmatprep.subr.bf16.mxu0 0
        %807 = vmatpush1.bf16.msra.mxu0 0
        %808 = vmatprep.subr.bf16.mxu0 0
        %809 = vmatpush1.bf16.msra.mxu0 0
        %810 = vmatprep.subr.bf16.mxu0 0
        %811 = vmatpush1.bf16.msra.mxu0 0
        %812 = vmatprep.subr.bf16.mxu0 0
        %813 = vmatpush1.bf16.msra.mxu0 0
        %814 = vmatprep.subr.bf16.mxu0 0
        %815 = vmatpush1.bf16.msra.mxu0 0
        %816 = vmatprep.subr.bf16.mxu0 0
        %817 = vmatpush1.bf16.msra.mxu0 0
        %818 = vmatprep.subr.bf16.mxu0 0
        %819 = vmatpush1.bf16.msra.mxu0 0
        %820 = vmatprep.subr.bf16.mxu0 0
        %821 = vmatpush1.bf16.msra.mxu0 0
        %822 = vmatprep.subr.bf16.mxu0 0
        %823 = vmatpush1.bf16.msra.mxu0 0
        %824 = vmatprep.subr.bf16.mxu0 0
        %825 = vmatpush1.bf16.msra.mxu0 0
        %826 = vmatprep.mubr.bf16.mxu0 0
        %827 = vmatmul.mubr.bf16.gmra.mrb[0].mxu0 %v742
        %v828 = vpop.f32.mrb[0].mxu0
        %v829 = vadd.f32 0.0, %v828
        %v830 = vpop.f32.mrb[0].mxu0
        %v831 = vpop.f32.mrb[0].mxu0
        %v832 = vpop.f32.mrb[0].mxu0
        %833 = vdwg.mxu0
        %834 = vrot.lane.b32.xlu0 %v726, 19
        %v835 = vpop.permute.xlu0 %834
        %836 = vrot.lane.b32.xlu0 %v727, 19
        %v837 = vpop.permute.xlu0 %836
        %838 = vrot.lane.b32.xlu0 %v728, 19
        %v839 = vpop.permute.xlu0 %838
        %840 = vrot.lane.b32.xlu0 %v729, 19
        %v841 = vpop.permute.xlu0 %840
        %vm842 = vcmask 154624
        %v843 = vsel %vm842, %v835, %v837
        %v844 = vsel %vm842, %v837, %v839
        %v845 = vsel %vm842, %v839, %v841
        %v847 = vsel %vm407, %v715, 0
        %v850 = vsel %vm368, %v843, 0
        %v853 = vsel %vm368, %v844, 0
        %v856 = vsel %vm368, %v845, 0
        %858 = vmatprep.subr.bf16.mxu0 %v853
        %859 = vmatpush1.bf16.msra.mxu0 %v850
        %860 = vmatprep.subr.bf16.mxu0 0
        %861 = vmatpush1.bf16.msra.mxu0 0
        %862 = vmatprep.subr.bf16.mxu0 0
        %863 = vmatpush1.bf16.msra.mxu0 0
        %864 = vmatprep.subr.bf16.mxu0 0
        %865 = vmatpush1.bf16.msra.mxu0 0
        %866 = vmatprep.subr.bf16.mxu0 0
        %867 = vmatpush1.bf16.msra.mxu0 0
        %868 = vmatprep.subr.bf16.mxu0 0
        %869 = vmatpush1.bf16.msra.mxu0 0
        %870 = vmatprep.subr.bf16.mxu0 0
        %871 = vmatpush1.bf16.msra.mxu0 0
        %872 = vmatprep.subr.bf16.mxu0 0
        %873 = vmatpush1.bf16.msra.mxu0 0
        %874 = vmatprep.subr.bf16.mxu0 0
        %875 = vmatpush1.bf16.msra.mxu0 0
        %876 = vmatprep.subr.bf16.mxu0 0
        %877 = vmatpush1.bf16.msra.mxu0 0
        %878 = vmatprep.subr.bf16.mxu0 0
        %879 = vmatpush1.bf16.msra.mxu0 0
        %880 = vmatprep.subr.bf16.mxu0 0
        %881 = vmatpush1.bf16.msra.mxu0 0
        %882 = vmatprep.subr.bf16.mxu0 0
        %883 = vmatpush1.bf16.msra.mxu0 0
        %884 = vmatprep.subr.bf16.mxu0 0
        %885 = vmatpush1.bf16.msra.mxu0 0
        %886 = vmatprep.subr.bf16.mxu0 0
        %887 = vmatpush1.bf16.msra.mxu0 0
        %888 = vmatprep.subr.bf16.mxu0 0
        %889 = vmatpush1.bf16.msra.mxu0 0
        %890 = vmatprep.mubr.bf16.mxu0 0
        %891 = vmatmul.mubr.bf16.gmra.mrb[0].mxu0 %v847
        %v892 = vpop.f32.mrb[0].mxu0
        %v893 = vadd.f32 %v788, %v892
        %v894 = vpop.f32.mrb[0].mxu0
        %v895 = vadd.f32 %v790, %v894
        %v896 = vpop.f32.mrb[0].mxu0
        %v897 = vpop.f32.mrb[0].mxu0
        %898 = vdwg.mxu0
        %899 = vmatprep.subr.bf16.mxu0 0
        %900 = vmatpush1.bf16.msra.mxu0 %v856
        %901 = vmatprep.subr.bf16.mxu0 0
        %902 = vmatpush1.bf16.msra.mxu0 0
        %903 = vmatprep.subr.bf16.mxu0 0
        %904 = vmatpush1.bf16.msra.mxu0 0
        %905 = vmatprep.subr.bf16.mxu0 0
        %906 = vmatpush1.bf16.msra.mxu0 0
        %907 = vmatprep.subr.bf16.mxu0 0
        %908 = vmatpush1.bf16.msra.mxu0 0
        %909 = vmatprep.subr.bf16.mxu0 0
        %910 = vmatpush1.bf16.msra.mxu0 0
        %911 = vmatprep.subr.bf16.mxu0 0
        %912 = vmatpush1.bf16.msra.mxu0 0
        %913 = vmatprep.subr.bf16.mxu0 0
        %914 = vmatpush1.bf16.msra.mxu0 0
        %915 = vmatprep.subr.bf16.mxu0 0
        %916 = vmatpush1.bf16.msra.mxu0 0
        %917 = vmatprep.subr.bf16.mxu0 0
        %918 = vmatpush1.bf16.msra.mxu0 0
        %919 = vmatprep.subr.bf16.mxu0 0
        %920 = vmatpush1.bf16.msra.mxu0 0
        %921 = vmatprep.subr.bf16.mxu0 0
        %922 = vmatpush1.bf16.msra.mxu0 0
        %923 = vmatprep.subr.bf16.mxu0 0
        %924 = vmatpush1.bf16.msra.mxu0 0
        %925 = vmatprep.subr.bf16.mxu0 0
        %926 = vmatpush1.bf16.msra.mxu0 0
        %927 = vmatprep.subr.bf16.mxu0 0
        %928 = vmatpush1.bf16.msra.mxu0 0
        %929 = vmatprep.subr.bf16.mxu0 0
        %930 = vmatpush1.bf16.msra.mxu0 0
        %931 = vmatprep.mubr.bf16.mxu0 0
        %932 = vmatmul.mubr.bf16.gmra.mrb[0].mxu0 %v847
        %v933 = vpop.f32.mrb[0].mxu0
        %v934 = vadd.f32 %v829, %v933
        %v935 = vpop.f32.mrb[0].mxu0
        %v936 = vpop.f32.mrb[0].mxu0
        %v937 = vpop.f32.mrb[0].mxu0
        %938 = vdwg.mxu0
        %s939 = scalar_lea.vmem %s3, 4
        %v940 = vld [vmem:[%s939] sm:$0x3]
        %941 = vrot.lane.b32.xlu0 %v726, 17
        %v942 = vpop.permute.xlu0 %941
        %943 = vrot.lane.b32.xlu0 %v727, 17
        %v944 = vpop.permute.xlu0 %943
        %945 = vrot.lane.b32.xlu0 %v728, 17
        %v946 = vpop.permute.xlu0 %945
        %947 = vrot.lane.b32.xlu0 %v729, 17
        %v948 = vpop.permute.xlu0 %947
        %vm949 = vcmask 138240
        %v950 = vsel %vm949, %v942, %v944
        %v951 = vsel %vm949, %v944, %v946
        %v952 = vsel %vm949, %v946, %v948
        %v954 = vsel %vm407, %v940, 0
        %v957 = vsel %vm368, %v950, 0
        %v960 = vsel %vm368, %v951, 0
        %v963 = vsel %vm368, %v952, 0
        %965 = vmatprep.subr.bf16.mxu0 %v960
        %966 = vmatpush1.bf16.msra.mxu0 %v957
        %967 = vmatprep.subr.bf16.mxu0 0
        %968 = vmatpush1.bf16.msra.mxu0 0
        %969 = vmatprep.subr.bf16.mxu0 0
        %970 = vmatpush1.bf16.msra.mxu0 0
        %971 = vmatprep.subr.bf16.mxu0 0
        %972 = vmatpush1.bf16.msra.mxu0 0
        %973 = vmatprep.subr.bf16.mxu0 0
        %974 = vmatpush1.bf16.msra.mxu0 0
        %975 = vmatprep.subr.bf16.mxu0 0
        %976 = vmatpush1.bf16.msra.mxu0 0
        %977 = vmatprep.subr.bf16.mxu0 0
        %978 = vmatpush1.bf16.msra.mxu0 0
        %979 = vmatprep.subr.bf16.mxu0 0
        %980 = vmatpush1.bf16.msra.mxu0 0
        %981 = vmatprep.subr.bf16.mxu0 0
        %982 = vmatpush1.bf16.msra.mxu0 0
        %983 = vmatprep.subr.bf16.mxu0 0
        %984 = vmatpush1.bf16.msra.mxu0 0
        %985 = vmatprep.subr.bf16.mxu0 0
        %986 = vmatpush1.bf16.msra.mxu0 0
        %987 = vmatprep.subr.bf16.mxu0 0
        %988 = vmatpush1.bf16.msra.mxu0 0
        %989 = vmatprep.subr.bf16.mxu0 0
        %990 = vmatpush1.bf16.msra.mxu0 0
        %991 = vmatprep.subr.bf16.mxu0 0
        %992 = vmatpush1.bf16.msra.mxu0 0
        %993 = vmatprep.subr.bf16.mxu0 0
        %994 = vmatpush1.bf16.msra.mxu0 0
        %995 = vmatprep.subr.bf16.mxu0 0
        %996 = vmatpush1.bf16.msra.mxu0 0
        %997 = vmatprep.mubr.bf16.mxu0 0
        %998 = vmatmul.mubr.bf16.gmra.mrb[0].mxu0 %v954
        %v999 = vpop.f32.mrb[0].mxu0
        %v1000 = vadd.f32 0.0, %v999
        %v1001 = vpop.f32.mrb[0].mxu0
        %v1002 = vadd.f32 0.0, %v1001
        %v1003 = vpop.f32.mrb[0].mxu0
        %v1004 = vpop.f32.mrb[0].mxu0
        %1005 = vdwg.mxu0
        %1006 = vmatprep.subr.bf16.mxu0 0
        %1007 = vmatpush1.bf16.msra.mxu0 %v963
        %1008 = vmatprep.subr.bf16.mxu0 0
        %1009 = vmatpush1.bf16.msra.mxu0 0
        %1010 = vmatprep.subr.bf16.mxu0 0
        %1011 = vmatpush1.bf16.msra.mxu0 0
        %1012 = vmatprep.subr.bf16.mxu0 0
        %1013 = vmatpush1.bf16.msra.mxu0 0
        %1014 = vmatprep.subr.bf16.mxu0 0
        %1015 = vmatpush1.bf16.msra.mxu0 0
        %1016 = vmatprep.subr.bf16.mxu0 0
        %1017 = vmatpush1.bf16.msra.mxu0 0
        %1018 = vmatprep.subr.bf16.mxu0 0
        %1019 = vmatpush1.bf16.msra.mxu0 0
        %1020 = vmatprep.subr.bf16.mxu0 0
        %1021 = vmatpush1.bf16.msra.mxu0 0
        %1022 = vmatprep.subr.bf16.mxu0 0
        %1023 = vmatpush1.bf16.msra.mxu0 0
        %1024 = vmatprep.subr.bf16.mxu0 0
        %1025 = vmatpush1.bf16.msra.mxu0 0
        %1026 = vmatprep.subr.bf16.mxu0 0
        %1027 = vmatpush1.bf16.msra.mxu0 0
        %1028 = vmatprep.subr.bf16.mxu0 0
        %1029 = vmatpush1.bf16.msra.mxu0 0
        %1030 = vmatprep.subr.bf16.mxu0 0
        %1031 = vmatpush1.bf16.msra.mxu0 0
        %1032 = vmatprep.subr.bf16.mxu0 0
        %1033 = vmatpush1.bf16.msra.mxu0 0
        %1034 = vmatprep.subr.bf16.mxu0 0
        %1035 = vmatpush1.bf16.msra.mxu0 0
        %1036 = vmatprep.subr.bf16.mxu0 0
        %1037 = vmatpush1.bf16.msra.mxu0 0
        %1038 = vmatprep.mubr.bf16.mxu0 0
        %1039 = vmatmul.mubr.bf16.gmra.mrb[0].mxu0 %v954
        %v1040 = vpop.f32.mrb[0].mxu0
        %v1041 = vadd.f32 0.0, %v1040
        %v1042 = vpop.f32.mrb[0].mxu0
        %v1043 = vpop.f32.mrb[0].mxu0
        %v1044 = vpop.f32.mrb[0].mxu0
        %1045 = vdwg.mxu0
        %v1046 = vadd.f32 %v893, %v1000
        %v1047 = vadd.f32 %v895, %v1002
        %v1048 = vadd.f32 %v934, %v1041
        %s1049 = scalar_lea.vmem %s3, 6
        %v1050 = vld [vmem:[%s1049] sm:$0x3]
        %1051 = vrot.lane.b32.xlu0 %v726, 1
        %v1052 = vpop.permute.xlu0 %1051
        %1053 = vrot.lane.b32.xlu0 %v727, 1
        %v1054 = vpop.permute.xlu0 %1053
        %1055 = vrot.lane.b32.xlu0 %v728, 1
        %v1056 = vpop.permute.xlu0 %1055
        %1057 = vrot.lane.b32.xlu0 %v729, 1
        %v1058 = vpop.permute.xlu0 %1057
        %vm1059 = vcmask 7168
        %v1060 = vsel %vm1059, %v1052, %v1054
        %v1061 = vsel %vm1059, %v1054, %v1056
        %v1062 = vsel %vm1059, %v1056, %v1058
        %v1064 = vsel %vm407, %v1050, 0
        %v1067 = vsel %vm368, %v1060, 0
        %v1070 = vsel %vm368, %v1061, 0
        %v1073 = vsel %vm368, %v1062, 0
        %1075 = vmatprep.subr.bf16.mxu0 %v1070
        %1076 = vmatpush1.bf16.msra.mxu0 %v1067
        %1077 = vmatprep.subr.bf16.mxu0 0
        %1078 = vmatpush1.bf16.msra.mxu0 0
        %1079 = vmatprep.subr.bf16.mxu0 0
        %1080 = vmatpush1.bf16.msra.mxu0 0
        %1081 = vmatprep.subr.bf16.mxu0 0
        %1082 = vmatpush1.bf16.msra.mxu0 0
        %1083 = vmatprep.subr.bf16.mxu0 0
        %1084 = vmatpush1.bf16.msra.mxu0 0
        %1085 = vmatprep.subr.bf16.mxu0 0
        %1086 = vmatpush1.bf16.msra.mxu0 0
        %1087 = vmatprep.subr.bf16.mxu0 0
        %1088 = vmatpush1.bf16.msra.mxu0 0
        %1089 = vmatprep.subr.bf16.mxu0 0
        %1090 = vmatpush1.bf16.msra.mxu0 0
        %1091 = vmatprep.subr.bf16.mxu0 0
        %1092 = vmatpush1.bf16.msra.mxu0 0
        %1093 = vmatprep.subr.bf16.mxu0 0
        %1094 = vmatpush1.bf16.msra.mxu0 0
        %1095 = vmatprep.subr.bf16.mxu0 0
        %1096 = vmatpush1.bf16.msra.mxu0 0
        %1097 = vmatprep.subr.bf16.mxu0 0
        %1098 = vmatpush1.bf16.msra.mxu0 0
        %1099 = vmatprep.subr.bf16.mxu0 0
        %1100 = vmatpush1.bf16.msra.mxu0 0
        %1101 = vmatprep.subr.bf16.mxu0 0
        %1102 = vmatpush1.bf16.msra.mxu0 0
        %1103 = vmatprep.subr.bf16.mxu0 0
        %1104 = vmatpush1.bf16.msra.mxu0 0
        %1105 = vmatprep.subr.bf16.mxu0 0
        %1106 = vmatpush1.bf16.msra.mxu0 0
        %1107 = vmatprep.mubr.bf16.mxu0 0
        %1108 = vmatmul.mubr.bf16.gmra.mrb[0].mxu0 %v1064
        %v1109 = vpop.f32.mrb[0].mxu0
        %v1110 = vadd.f32 0.0, %v1109
        %v1111 = vpop.f32.mrb[0].mxu0
        %v1112 = vadd.f32 0.0, %v1111
        %v1113 = vpop.f32.mrb[0].mxu0
        %v1114 = vpop.f32.mrb[0].mxu0
        %1115 = vdwg.mxu0
        %1116 = vmatprep.subr.bf16.mxu0 0
        %1117 = vmatpush1.bf16.msra.mxu0 %v1073
        %1118 = vmatprep.subr.bf16.mxu0 0
        %1119 = vmatpush1.bf16.msra.mxu0 0
        %1120 = vmatprep.subr.bf16.mxu0 0
        %1121 = vmatpush1.bf16.msra.mxu0 0
        %1122 = vmatprep.subr.bf16.mxu0 0
        %1123 = vmatpush1.bf16.msra.mxu0 0
        %1124 = vmatprep.subr.bf16.mxu0 0
        %1125 = vmatpush1.bf16.msra.mxu0 0
        %1126 = vmatprep.subr.bf16.mxu0 0
        %1127 = vmatpush1.bf16.msra.mxu0 0
        %1128 = vmatprep.subr.bf16.mxu0 0
        %1129 = vmatpush1.bf16.msra.mxu0 0
        %1130 = vmatprep.subr.bf16.mxu0 0
        %1131 = vmatpush1.bf16.msra.mxu0 0
        %1132 = vmatprep.subr.bf16.mxu0 0
        %1133 = vmatpush1.bf16.msra.mxu0 0
        %1134 = vmatprep.subr.bf16.mxu0 0
        %1135 = vmatpush1.bf16.msra.mxu0 0
        %1136 = vmatprep.subr.bf16.mxu0 0
        %1137 = vmatpush1.bf16.msra.mxu0 0
        %1138 = vmatprep.subr.bf16.mxu0 0
        %1139 = vmatpush1.bf16.msra.mxu0 0
        %1140 = vmatprep.subr.bf16.mxu0 0
        %1141 = vmatpush1.bf16.msra.mxu0 0
        %1142 = vmatprep.subr.bf16.mxu0 0
        %1143 = vmatpush1.bf16.msra.mxu0 0
        %1144 = vmatprep.subr.bf16.mxu0 0
        %1145 = vmatpush1.bf16.msra.mxu0 0
        %1146 = vmatprep.subr.bf16.mxu0 0
        %1147 = vmatpush1.bf16.msra.mxu0 0
        %1148 = vmatprep.mubr.bf16.mxu0 0
        %1149 = vmatmul.mubr.bf16.gmra.mrb[0].mxu0 %v1064
        %v1150 = vpop.f32.mrb[0].mxu0
        %v1151 = vadd.f32 0.0, %v1150
        %v1152 = vpop.f32.mrb[0].mxu0
        %v1153 = vpop.f32.mrb[0].mxu0
        %v1154 = vpop.f32.mrb[0].mxu0
        %1155 = vdwg.mxu0
        %v1156 = vadd.f32 %v1046, %v1110
        %v1157 = vadd.f32 %v1047, %v1112
        %v1158 = vadd.f32 %v1048, %v1151
        %s1159 = scalar_lea.vmem %s3, 8
        %v1160 = vld [vmem:[%s1159] sm:$0x3]
        %v1161 = vld [vmem:[#allocation2 + $0x4] sm:$0xff]
        %v1162 = vld [vmem:[#allocation2 + $0xc] sm:$0xf]
        %v1165 = vunpack.c.l.b16 %v1161
        %v1166 = vunpack.c.h.b16 %v1161
        %v1167 = vunpack.c.l.b16 %v1162
        %v1168 = vpack.c.b16 %v1165, %v1165
        %v1169 = vpack.c.b16 %v1166, %v1166
        %v1170 = vpack.c.b16 %v1167, %v1167
        %v1172 = vsel %vm407, %v1160, 0
        %v1175 = vsel %vm368, %v1168, 0
        %v1178 = vsel %vm368, %v1169, 0
        %v1181 = vsel %vm368, %v1170, 0
        %1183 = vmatprep.subr.bf16.mxu0 %v1178
        %1184 = vmatpush1.bf16.msra.mxu0 %v1175
        %1185 = vmatprep.subr.bf16.mxu0 0
        %1186 = vmatpush1.bf16.msra.mxu0 0
        %1187 = vmatprep.subr.bf16.mxu0 0
        %1188 = vmatpush1.bf16.msra.mxu0 0
        %1189 = vmatprep.subr.bf16.mxu0 0
        %1190 = vmatpush1.bf16.msra.mxu0 0
        %1191 = vmatprep.subr.bf16.mxu0 0
        %1192 = vmatpush1.bf16.msra.mxu0 0
        %1193 = vmatprep.subr.bf16.mxu0 0
        %1194 = vmatpush1.bf16.msra.mxu0 0
        %1195 = vmatprep.subr.bf16.mxu0 0
        %1196 = vmatpush1.bf16.msra.mxu0 0
        %1197 = vmatprep.subr.bf16.mxu0 0
        %1198 = vmatpush1.bf16.msra.mxu0 0
        %1199 = vmatprep.subr.bf16.mxu0 0
        %1200 = vmatpush1.bf16.msra.mxu0 0
        %1201 = vmatprep.subr.bf16.mxu0 0
        %1202 = vmatpush1.bf16.msra.mxu0 0
        %1203 = vmatprep.subr.bf16.mxu0 0
        %1204 = vmatpush1.bf16.msra.mxu0 0
        %1205 = vmatprep.subr.bf16.mxu0 0
        %1206 = vmatpush1.bf16.msra.mxu0 0
        %1207 = vmatprep.subr.bf16.mxu0 0
        %1208 = vmatpush1.bf16.msra.mxu0 0
        %1209 = vmatprep.subr.bf16.mxu0 0
        %1210 = vmatpush1.bf16.msra.mxu0 0
        %1211 = vmatprep.subr.bf16.mxu0 0
        %1212 = vmatpush1.bf16.msra.mxu0 0
        %1213 = vmatprep.subr.bf16.mxu0 0
        %1214 = vmatpush1.bf16.msra.mxu0 0
        %1215 = vmatprep.mubr.bf16.mxu0 0
        %1216 = vmatmul.mubr.bf16.gmra.mrb[0].mxu0 %v1172
        %v1217 = vpop.f32.mrb[0].mxu0
        %v1218 = vadd.f32 0.0, %v1217
        %v1219 = vpop.f32.mrb[0].mxu0
        %v1220 = vadd.f32 0.0, %v1219
        %v1221 = vpop.f32.mrb[0].mxu0
        %v1222 = vpop.f32.mrb[0].mxu0
        %1223 = vdwg.mxu0
        %1224 = vmatprep.subr.bf16.mxu0 0
        %1225 = vmatpush1.bf16.msra.mxu0 %v1181
        %1226 = vmatprep.subr.bf16.mxu0 0
        %1227 = vmatpush1.bf16.msra.mxu0 0
        %1228 = vmatprep.subr.bf16.mxu0 0
        %1229 = vmatpush1.bf16.msra.mxu0 0
        %1230 = vmatprep.subr.bf16.mxu0 0
        %1231 = vmatpush1.bf16.msra.mxu0 0
        %1232 = vmatprep.subr.bf16.mxu0 0
        %1233 = vmatpush1.bf16.msra.mxu0 0
        %1234 = vmatprep.subr.bf16.mxu0 0
        %1235 = vmatpush1.bf16.msra.mxu0 0
        %1236 = vmatprep.subr.bf16.mxu0 0
        %1237 = vmatpush1.bf16.msra.mxu0 0
        %1238 = vmatprep.subr.bf16.mxu0 0
        %1239 = vmatpush1.bf16.msra.mxu0 0
        %1240 = vmatprep.subr.bf16.mxu0 0
        %1241 = vmatpush1.bf16.msra.mxu0 0
        %1242 = vmatprep.subr.bf16.mxu0 0
        %1243 = vmatpush1.bf16.msra.mxu0 0
        %1244 = vmatprep.subr.bf16.mxu0 0
        %1245 = vmatpush1.bf16.msra.mxu0 0
        %1246 = vmatprep.subr.bf16.mxu0 0
        %1247 = vmatpush1.bf16.msra.mxu0 0
        %1248 = vmatprep.subr.bf16.mxu0 0
        %1249 = vmatpush1.bf16.msra.mxu0 0
        %1250 = vmatprep.subr.bf16.mxu0 0
        %1251 = vmatpush1.bf16.msra.mxu0 0
        %1252 = vmatprep.subr.bf16.mxu0 0
        %1253 = vmatpush1.bf16.msra.mxu0 0
        %1254 = vmatprep.subr.bf16.mxu0 0
        %1255 = vmatpush1.bf16.msra.mxu0 0
        %1256 = vmatprep.mubr.bf16.mxu0 0
        %1257 = vmatmul.mubr.bf16.gmra.mrb[0].mxu0 %v1172
        %v1258 = vpop.f32.mrb[0].mxu0
        %v1259 = vadd.f32 0.0, %v1258
        %v1260 = vpop.f32.mrb[0].mxu0
        %v1261 = vpop.f32.mrb[0].mxu0
        %v1262 = vpop.f32.mrb[0].mxu0
        %1263 = vdwg.mxu0
        %v1264 = vadd.f32 %v1156, %v1218
        %v1265 = vadd.f32 %v1157, %v1220
        %v1266 = vadd.f32 %v1158, %v1259
        %s1267 = scalar_lea.vmem %s3, 10
        %v1268 = vld [vmem:[%s1267] sm:$0x3]
        %1269 = vrot.lane.b32.xlu0 %v1168, 127
        %v1270 = vpop.permute.xlu0 %1269
        %1271 = vrot.lane.b32.xlu0 %v1169, 127
        %v1272 = vpop.permute.xlu0 %1271
        %1273 = vrot.lane.b32.xlu0 %v1170, 127
        %v1274 = vpop.permute.xlu0 %1273
        %vm1275 = vcmask 1039360
        %v1276 = vsel %vm1275, %v1270, %v1272
        %v1277 = vsel %vm1275, %v1272, %v1274
        %v1279 = vsel %vm407, %v1268, 0
        %v1282 = vsel %vm368, %v1276, 0
        %v1285 = vsel %vm368, %v1277, 0
        %v1288 = vsel %vm368, %v1274, 0
        %1290 = vmatprep.subr.bf16.mxu0 %v1285
        %1291 = vmatpush1.bf16.msra.mxu0 %v1282
        %1292 = vmatprep.subr.bf16.mxu0 0
        %1293 = vmatpush1.bf16.msra.mxu0 0
        %1294 = vmatprep.subr.bf16.mxu0 0
        %1295 = vmatpush1.bf16.msra.mxu0 0
        %1296 = vmatprep.subr.bf16.mxu0 0
        %1297 = vmatpush1.bf16.msra.mxu0 0
        %1298 = vmatprep.subr.bf16.mxu0 0
        %1299 = vmatpush1.bf16.msra.mxu0 0
        %1300 = vmatprep.subr.bf16.mxu0 0
        %1301 = vmatpush1.bf16.msra.mxu0 0
        %1302 = vmatprep.subr.bf16.mxu0 0
        %1303 = vmatpush1.bf16.msra.mxu0 0
        %1304 = vmatprep.subr.bf16.mxu0 0
        %1305 = vmatpush1.bf16.msra.mxu0 0
        %1306 = vmatprep.subr.bf16.mxu0 0
        %1307 = vmatpush1.bf16.msra.mxu0 0
        %1308 = vmatprep.subr.bf16.mxu0 0
        %1309 = vmatpush1.bf16.msra.mxu0 0
        %1310 = vmatprep.subr.bf16.mxu0 0
        %1311 = vmatpush1.bf16.msra.mxu0 0
        %1312 = vmatprep.subr.bf16.mxu0 0
        %1313 = vmatpush1.bf16.msra.mxu0 0
        %1314 = vmatprep.subr.bf16.mxu0 0
        %1315 = vmatpush1.bf16.msra.mxu0 0
        %1316 = vmatprep.subr.bf16.mxu0 0
        %1317 = vmatpush1.bf16.msra.mxu0 0
        %1318 = vmatprep.subr.bf16.mxu0 0
        %1319 = vmatpush1.bf16.msra.mxu0 0
        %1320 = vmatprep.subr.bf16.mxu0 0
        %1321 = vmatpush1.bf16.msra.mxu0 0
        %1322 = vmatprep.mubr.bf16.mxu0 0
        %1323 = vmatmul.mubr.bf16.gmra.mrb[0].mxu0 %v1279
        %v1324 = vpop.f32.mrb[0].mxu0
        %v1325 = vadd.f32 0.0, %v1324
        %v1326 = vpop.f32.mrb[0].mxu0
        %v1327 = vadd.f32 0.0, %v1326
        %v1328 = vpop.f32.mrb[0].mxu0
        %v1329 = vpop.f32.mrb[0].mxu0
        %1330 = vdwg.mxu0
        %1331 = vmatprep.subr.bf16.mxu0 0
        %1332 = vmatpush1.bf16.msra.mxu0 %v1288
        %1333 = vmatprep.subr.bf16.mxu0 0
        %1334 = vmatpush1.bf16.msra.mxu0 0
        %1335 = vmatprep.subr.bf16.mxu0 0
        %1336 = vmatpush1.bf16.msra.mxu0 0
        %1337 = vmatprep.subr.bf16.mxu0 0
        %1338 = vmatpush1.bf16.msra.mxu0 0
        %1339 = vmatprep.subr.bf16.mxu0 0
        %1340 = vmatpush1.bf16.msra.mxu0 0
        %1341 = vmatprep.subr.bf16.mxu0 0
        %1342 = vmatpush1.bf16.msra.mxu0 0
        %1343 = vmatprep.subr.bf16.mxu0 0
        %1344 = vmatpush1.bf16.msra.mxu0 0
        %1345 = vmatprep.subr.bf16.mxu0 0
        %1346 = vmatpush1.bf16.msra.mxu0 0
        %1347 = vmatprep.subr.bf16.mxu0 0
        %1348 = vmatpush1.bf16.msra.mxu0 0
        %1349 = vmatprep.subr.bf16.mxu0 0
        %1350 = vmatpush1.bf16.msra.mxu0 0
        %1351 = vmatprep.subr.bf16.mxu0 0
        %1352 = vmatpush1.bf16.msra.mxu0 0
        %1353 = vmatprep.subr.bf16.mxu0 0
        %1354 = vmatpush1.bf16.msra.mxu0 0
        %1355 = vmatprep.subr.bf16.mxu0 0
        %1356 = vmatpush1.bf16.msra.mxu0 0
        %1357 = vmatprep.subr.bf16.mxu0 0
        %1358 = vmatpush1.bf16.msra.mxu0 0
        %1359 = vmatprep.subr.bf16.mxu0 0
        %1360 = vmatpush1.bf16.msra.mxu0 0
        %1361 = vmatprep.subr.bf16.mxu0 0
        %1362 = vmatpush1.bf16.msra.mxu0 0
        %1363 = vmatprep.mubr.bf16.mxu0 0
        %1364 = vmatmul.mubr.bf16.gmra.mrb[0].mxu0 %v1279
        %v1365 = vpop.f32.mrb[0].mxu0
        %v1366 = vadd.f32 0.0, %v1365
        %v1367 = vpop.f32.mrb[0].mxu0
        %v1368 = vpop.f32.mrb[0].mxu0
        %v1369 = vpop.f32.mrb[0].mxu0
        %1370 = vdwg.mxu0
        %v1371 = vadd.f32 %v1264, %v1325
        %v1372 = vadd.f32 %v1265, %v1327
        %v1373 = vadd.f32 %v1266, %v1366
        %s1374 = scalar_lea.vmem %s3, 12
        %v1375 = vld [vmem:[%s1374] sm:$0x3]
        %1376 = vrot.lane.b32.xlu0 %v1168, 111
        %v1377 = vpop.permute.xlu0 %1376
        %1378 = vrot.lane.b32.xlu0 %v1169, 111
        %v1379 = vpop.permute.xlu0 %1378
        %1380 = vrot.lane.b32.xlu0 %v1170, 111
        %v1381 = vpop.permute.xlu0 %1380
        %vm1382 = vcmask 908288
        %v1383 = vsel %vm1382, %v1377, %v1379
        %v1384 = vsel %vm1382, %v1379, %v1381
        %v1386 = vsel %vm407, %v1375, 0
        %v1389 = vsel %vm368, %v1383, 0
        %v1392 = vsel %vm368, %v1384, 0
        %v1395 = vsel %vm368, %v1381, 0
        %1397 = vmatprep.subr.bf16.mxu0 %v1392
        %1398 = vmatpush1.bf16.msra.mxu0 %v1389
        %1399 = vmatprep.subr.bf16.mxu0 0
        %1400 = vmatpush1.bf16.msra.mxu0 0
        %1401 = vmatprep.subr.bf16.mxu0 0
        %1402 = vmatpush1.bf16.msra.mxu0 0
        %1403 = vmatprep.subr.bf16.mxu0 0
        %1404 = vmatpush1.bf16.msra.mxu0 0
        %1405 = vmatprep.subr.bf16.mxu0 0
        %1406 = vmatpush1.bf16.msra.mxu0 0
        %1407 = vmatprep.subr.bf16.mxu0 0
        %1408 = vmatpush1.bf16.msra.mxu0 0
        %1409 = vmatprep.subr.bf16.mxu0 0
        %1410 = vmatpush1.bf16.msra.mxu0 0
        %1411 = vmatprep.subr.bf16.mxu0 0
        %1412 = vmatpush1.bf16.msra.mxu0 0
        %1413 = vmatprep.subr.bf16.mxu0 0
        %1414 = vmatpush1.bf16.msra.mxu0 0
        %1415 = vmatprep.subr.bf16.mxu0 0
        %1416 = vmatpush1.bf16.msra.mxu0 0
        %1417 = vmatprep.subr.bf16.mxu0 0
        %1418 = vmatpush1.bf16.msra.mxu0 0
        %1419 = vmatprep.subr.bf16.mxu0 0
        %1420 = vmatpush1.bf16.msra.mxu0 0
        %1421 = vmatprep.subr.bf16.mxu0 0
        %1422 = vmatpush1.bf16.msra.mxu0 0
        %1423 = vmatprep.subr.bf16.mxu0 0
        %1424 = vmatpush1.bf16.msra.mxu0 0
        %1425 = vmatprep.subr.bf16.mxu0 0
        %1426 = vmatpush1.bf16.msra.mxu0 0
        %1427 = vmatprep.subr.bf16.mxu0 0
        %1428 = vmatpush1.bf16.msra.mxu0 0
        %1429 = vmatprep.mubr.bf16.mxu0 0
        %1430 = vmatmul.mubr.bf16.gmra.mrb[0].mxu0 %v1386
        %v1431 = vpop.f32.mrb[0].mxu0
        %v1432 = vadd.f32 0.0, %v1431
        %v1433 = vpop.f32.mrb[0].mxu0
        %v1434 = vadd.f32 0.0, %v1433
        %v1435 = vpop.f32.mrb[0].mxu0
        %v1436 = vpop.f32.mrb[0].mxu0
        %1437 = vdwg.mxu0
        %1438 = vmatprep.subr.bf16.mxu0 0
        %1439 = vmatpush1.bf16.msra.mxu0 %v1395
        %1440 = vmatprep.subr.bf16.mxu0 0
        %1441 = vmatpush1.bf16.msra.mxu0 0
        %1442 = vmatprep.subr.bf16.mxu0 0
        %1443 = vmatpush1.bf16.msra.mxu0 0
        %1444 = vmatprep.subr.bf16.mxu0 0
        %1445 = vmatpush1.bf16.msra.mxu0 0
        %1446 = vmatprep.subr.bf16.mxu0 0
        %1447 = vmatpush1.bf16.msra.mxu0 0
        %1448 = vmatprep.subr.bf16.mxu0 0
        %1449 = vmatpush1.bf16.msra.mxu0 0
        %1450 = vmatprep.subr.bf16.mxu0 0
        %1451 = vmatpush1.bf16.msra.mxu0 0
        %1452 = vmatprep.subr.bf16.mxu0 0
        %1453 = vmatpush1.bf16.msra.mxu0 0
        %1454 = vmatprep.subr.bf16.mxu0 0
        %1455 = vmatpush1.bf16.msra.mxu0 0
        %1456 = vmatprep.subr.bf16.mxu0 0
        %1457 = vmatpush1.bf16.msra.mxu0 0
        %1458 = vmatprep.subr.bf16.mxu0 0
        %1459 = vmatpush1.bf16.msra.mxu0 0
        %1460 = vmatprep.subr.bf16.mxu0 0
        %1461 = vmatpush1.bf16.msra.mxu0 0
        %1462 = vmatprep.subr.bf16.mxu0 0
        %1463 = vmatpush1.bf16.msra.mxu0 0
        %1464 = vmatprep.subr.bf16.mxu0 0
        %1465 = vmatpush1.bf16.msra.mxu0 0
        %1466 = vmatprep.subr.bf16.mxu0 0
        %1467 = vmatpush1.bf16.msra.mxu0 0
        %1468 = vmatprep.subr.bf16.mxu0 0
        %1469 = vmatpush1.bf16.msra.mxu0 0
        %1470 = vmatprep.mubr.bf16.mxu0 0
        %1471 = vmatmul.mubr.bf16.gmra.mrb[0].mxu0 %v1386
        %v1472 = vpop.f32.mrb[0].mxu0
        %v1473 = vadd.f32 0.0, %v1472
        %v1474 = vpop.f32.mrb[0].mxu0
        %v1475 = vpop.f32.mrb[0].mxu0
        %v1476 = vpop.f32.mrb[0].mxu0
        %1477 = vdwg.mxu0
        %v1478 = vadd.f32 %v1371, %v1432
        %v1479 = vadd.f32 %v1372, %v1434
        %v1480 = vadd.f32 %v1373, %v1473
        %s1481 = scalar_lea.vmem %s3, 14
        %v1482 = vld [vmem:[%s1481] sm:$0x3]
        %1483 = vrot.lane.b32.xlu0 %v1168, 110
        %v1484 = vpop.permute.xlu0 %1483
        %1485 = vrot.lane.b32.xlu0 %v1169, 110
        %v1486 = vpop.permute.xlu0 %1485
        %1487 = vrot.lane.b32.xlu0 %v1170, 110
        %v1488 = vpop.permute.xlu0 %1487
        %vm1489 = vcmask 900096
        %v1490 = vsel %vm1489, %v1484, %v1486
        %v1491 = vsel %vm1489, %v1486, %v1488
        %v1493 = vsel %vm407, %v1482, 0
        %v1496 = vsel %vm368, %v1490, 0
        %v1499 = vsel %vm368, %v1491, 0
        %v1502 = vsel %vm368, %v1488, 0
        %1504 = vmatprep.subr.bf16.mxu0 %v1499
        %1505 = vmatpush1.bf16.msra.mxu0 %v1496
        %1506 = vmatprep.subr.bf16.mxu0 0
        %1507 = vmatpush1.bf16.msra.mxu0 0
        %1508 = vmatprep.subr.bf16.mxu0 0
        %1509 = vmatpush1.bf16.msra.mxu0 0
        %1510 = vmatprep.subr.bf16.mxu0 0
        %1511 = vmatpush1.bf16.msra.mxu0 0
        %1512 = vmatprep.subr.bf16.mxu0 0
        %1513 = vmatpush1.bf16.msra.mxu0 0
        %1514 = vmatprep.subr.bf16.mxu0 0
        %1515 = vmatpush1.bf16.msra.mxu0 0
        %1516 = vmatprep.subr.bf16.mxu0 0
        %1517 = vmatpush1.bf16.msra.mxu0 0
        %1518 = vmatprep.subr.bf16.mxu0 0
        %1519 = vmatpush1.bf16.msra.mxu0 0
        %1520 = vmatprep.subr.bf16.mxu0 0
        %1521 = vmatpush1.bf16.msra.mxu0 0
        %1522 = vmatprep.subr.bf16.mxu0 0
        %1523 = vmatpush1.bf16.msra.mxu0 0
        %1524 = vmatprep.subr.bf16.mxu0 0
        %1525 = vmatpush1.bf16.msra.mxu0 0
        %1526 = vmatprep.subr.bf16.mxu0 0
        %1527 = vmatpush1.bf16.msra.mxu0 0
        %1528 = vmatprep.subr.bf16.mxu0 0
        %1529 = vmatpush1.bf16.msra.mxu0 0
        %1530 = vmatprep.subr.bf16.mxu0 0
        %1531 = vmatpush1.bf16.msra.mxu0 0
        %1532 = vmatprep.subr.bf16.mxu0 0
        %1533 = vmatpush1.bf16.msra.mxu0 0
        %1534 = vmatprep.subr.bf16.mxu0 0
        %1535 = vmatpush1.bf16.msra.mxu0 0
        %1536 = vmatprep.mubr.bf16.mxu0 0
        %1537 = vmatmul.mubr.bf16.gmra.mrb[0].mxu0 %v1493
        %v1538 = vpop.f32.mrb[0].mxu0
        %v1539 = vadd.f32 0.0, %v1538
        %v1540 = vpop.f32.mrb[0].mxu0
        %v1541 = vadd.f32 0.0, %v1540
        %v1542 = vpop.f32.mrb[0].mxu0
        %v1543 = vpop.f32.mrb[0].mxu0
        %1544 = vdwg.mxu0
        %1545 = vmatprep.subr.bf16.mxu0 0
        %1546 = vmatpush1.bf16.msra.mxu0 %v1502
        %1547 = vmatprep.subr.bf16.mxu0 0
        %1548 = vmatpush1.bf16.msra.mxu0 0
        %1549 = vmatprep.subr.bf16.mxu0 0
        %1550 = vmatpush1.bf16.msra.mxu0 0
        %1551 = vmatprep.subr.bf16.mxu0 0
        %1552 = vmatpush1.bf16.msra.mxu0 0
        %1553 = vmatprep.subr.bf16.mxu0 0
        %1554 = vmatpush1.bf16.msra.mxu0 0
        %1555 = vmatprep.subr.bf16.mxu0 0
        %1556 = vmatpush1.bf16.msra.mxu0 0
        %1557 = vmatprep.subr.bf16.mxu0 0
        %1558 = vmatpush1.bf16.msra.mxu0 0
        %1559 = vmatprep.subr.bf16.mxu0 0
        %1560 = vmatpush1.bf16.msra.mxu0 0
        %1561 = vmatprep.subr.bf16.mxu0 0
        %1562 = vmatpush1.bf16.msra.mxu0 0
        %1563 = vmatprep.subr.bf16.mxu0 0
        %1564 = vmatpush1.bf16.msra.mxu0 0
        %1565 = vmatprep.subr.bf16.mxu0 0
        %1566 = vmatpush1.bf16.msra.mxu0 0
        %1567 = vmatprep.subr.bf16.mxu0 0
        %1568 = vmatpush1.bf16.msra.mxu0 0
        %1569 = vmatprep.subr.bf16.mxu0 0
        %1570 = vmatpush1.bf16.msra.mxu0 0
        %1571 = vmatprep.subr.bf16.mxu0 0
        %1572 = vmatpush1.bf16.msra.mxu0 0
        %1573 = vmatprep.subr.bf16.mxu0 0
        %1574 = vmatpush1.bf16.msra.mxu0 0
        %1575 = vmatprep.subr.bf16.mxu0 0
        %1576 = vmatpush1.bf16.msra.mxu0 0
        %1577 = vmatprep.mubr.bf16.mxu0 0
        %1578 = vmatmul.mubr.bf16.gmra.mrb[0].mxu0 %v1493
        %v1579 = vpop.f32.mrb[0].mxu0
        %v1580 = vadd.f32 0.0, %v1579
        %v1581 = vpop.f32.mrb[0].mxu0
        %v1582 = vpop.f32.mrb[0].mxu0
        %v1583 = vpop.f32.mrb[0].mxu0
        %1584 = vdwg.mxu0
        %v1585 = vadd.f32 %v1478, %v1539
        %v1586 = vadd.f32 %v1479, %v1541
        %v1587 = vadd.f32 %v1480, %v1580
        %s1588 = scalar_lea.vmem %s3, 16
        %v1589 = vld [vmem:[%s1588] sm:$0x3]
        %1590 = vrot.lane.b32.xlu0 %v1168, 109
        %v1591 = vpop.permute.xlu0 %1590
        %1592 = vrot.lane.b32.xlu0 %v1169, 109
        %v1593 = vpop.permute.xlu0 %1592
        %1594 = vrot.lane.b32.xlu0 %v1170, 109
        %v1595 = vpop.permute.xlu0 %1594
        %vm1596 = vcmask 891904
        %v1597 = vsel %vm1596, %v1591, %v1593
        %v1598 = vsel %vm1596, %v1593, %v1595
        %v1600 = vsel %vm407, %v1589, 0
        %v1603 = vsel %vm368, %v1597, 0
        %v1606 = vsel %vm368, %v1598, 0
        %v1609 = vsel %vm368, %v1595, 0
        %1611 = vmatprep.subr.bf16.mxu0 %v1606
        %1612 = vmatpush1.bf16.msra.mxu0 %v1603
        %1613 = vmatprep.subr.bf16.mxu0 0
        %1614 = vmatpush1.bf16.msra.mxu0 0
        %1615 = vmatprep.subr.bf16.mxu0 0
        %1616 = vmatpush1.bf16.msra.mxu0 0
        %1617 = vmatprep.subr.bf16.mxu0 0
        %1618 = vmatpush1.bf16.msra.mxu0 0
        %1619 = vmatprep.subr.bf16.mxu0 0
        %1620 = vmatpush1.bf16.msra.mxu0 0
        %1621 = vmatprep.subr.bf16.mxu0 0
        %1622 = vmatpush1.bf16.msra.mxu0 0
        %1623 = vmatprep.subr.bf16.mxu0 0
        %1624 = vmatpush1.bf16.msra.mxu0 0
        %1625 = vmatprep.subr.bf16.mxu0 0
        %1626 = vmatpush1.bf16.msra.mxu0 0
        %1627 = vmatprep.subr.bf16.mxu0 0
        %1628 = vmatpush1.bf16.msra.mxu0 0
        %1629 = vmatprep.subr.bf16.mxu0 0
        %1630 = vmatpush1.bf16.msra.mxu0 0
        %1631 = vmatprep.subr.bf16.mxu0 0
        %1632 = vmatpush1.bf16.msra.mxu0 0
        %1633 = vmatprep.subr.bf16.mxu0 0
        %1634 = vmatpush1.bf16.msra.mxu0 0
        %1635 = vmatprep.subr.bf16.mxu0 0
        %1636 = vmatpush1.bf16.msra.mxu0 0
        %1637 = vmatprep.subr.bf16.mxu0 0
        %1638 = vmatpush1.bf16.msra.mxu0 0
        %1639 = vmatprep.subr.bf16.mxu0 0
        %1640 = vmatpush1.bf16.msra.mxu0 0
        %1641 = vmatprep.subr.bf16.mxu0 0
        %1642 = vmatpush1.bf16.msra.mxu0 0
        %1643 = vmatprep.mubr.bf16.mxu0 0
        %1644 = vmatmul.mubr.bf16.gmra.mrb[0].mxu0 %v1600
        %v1645 = vpop.f32.mrb[0].mxu0
        %v1646 = vadd.f32 0.0, %v1645
        %v1647 = vpop.f32.mrb[0].mxu0
        %v1648 = vadd.f32 0.0, %v1647
        %v1649 = vpop.f32.mrb[0].mxu0
        %v1650 = vpop.f32.mrb[0].mxu0
        %1651 = vdwg.mxu0
        %1652 = vmatprep.subr.bf16.mxu0 0
        %1653 = vmatpush1.bf16.msra.mxu0 %v1609
        %1654 = vmatprep.subr.bf16.mxu0 0
        %1655 = vmatpush1.bf16.msra.mxu0 0
        %1656 = vmatprep.subr.bf16.mxu0 0
        %1657 = vmatpush1.bf16.msra.mxu0 0
        %1658 = vmatprep.subr.bf16.mxu0 0
        %1659 = vmatpush1.bf16.msra.mxu0 0
        %1660 = vmatprep.subr.bf16.mxu0 0
        %1661 = vmatpush1.bf16.msra.mxu0 0
        %1662 = vmatprep.subr.bf16.mxu0 0
        %1663 = vmatpush1.bf16.msra.mxu0 0
        %1664 = vmatprep.subr.bf16.mxu0 0
        %1665 = vmatpush1.bf16.msra.mxu0 0
        %1666 = vmatprep.subr.bf16.mxu0 0
        %1667 = vmatpush1.bf16.msra.mxu0 0
        %1668 = vmatprep.subr.bf16.mxu0 0
        %1669 = vmatpush1.bf16.msra.mxu0 0
        %1670 = vmatprep.subr.bf16.mxu0 0
        %1671 = vmatpush1.bf16.msra.mxu0 0
        %1672 = vmatprep.subr.bf16.mxu0 0
        %1673 = vmatpush1.bf16.msra.mxu0 0
        %1674 = vmatprep.subr.bf16.mxu0 0
        %1675 = vmatpush1.bf16.msra.mxu0 0
        %1676 = vmatprep.subr.bf16.mxu0 0
        %1677 = vmatpush1.bf16.msra.mxu0 0
        %1678 = vmatprep.subr.bf16.mxu0 0
        %1679 = vmatpush1.bf16.msra.mxu0 0
        %1680 = vmatprep.subr.bf16.mxu0 0
        %1681 = vmatpush1.bf16.msra.mxu0 0
        %1682 = vmatprep.subr.bf16.mxu0 0
        %1683 = vmatpush1.bf16.msra.mxu0 0
        %1684 = vmatprep.mubr.bf16.mxu0 0
        %1685 = vmatmul.mubr.bf16.gmra.mrb[0].mxu0 %v1600
        %v1686 = vpop.f32.mrb[0].mxu0
        %v1687 = vadd.f32 0.0, %v1686
        %v1688 = vpop.f32.mrb[0].mxu0
        %v1689 = vpop.f32.mrb[0].mxu0
        %v1690 = vpop.f32.mrb[0].mxu0
        %1691 = vdwg.mxu0
        %v1692 = vadd.f32 %v1585, %v1646
        %v1693 = vadd.f32 %v1586, %v1648
        %v1694 = vadd.f32 %v1587, %v1687
        %v1695 = vld [vmem:[%s4] sm:$0xf]
        %1697 = vset.pattern.permute.xlu0 0
        %1698 = vperm.xlu0 %1697, %v1695
        %v1699 = vpop.permute.xlu0 %1698
        %v1701 = vadd.f32 %v1692, %v1699
        %v1702 = vadd.f32 %v1693, %v1699
        %v1703 = vadd.f32 %v1694, %v1699
        %v1704 = vmax.f32 %v1701, 0.0
        %v1705 = vmax.f32 %v1702, 0.0
        %v1706 = vmax.f32 %v1703, 0.0
        %v1707 = vld [vmem:[%s7] sm:$0x7]
        %v1709 = vlaneseq
        %v1710 = vshrl.u32 %v1709, 7
        %v1711 = vsub.s32 0, %v1710
        %v1712 = vrot.slane %v1707, %v1711
        %v1713 = vlaneseq
        %v1714 = vshrl.u32 %v1713, 7
        %v1715 = vsub.s32 1, %v1714
        %v1716 = vrot.slane %v1707, %v1715
        %v1717 = vlaneseq
        %v1718 = vshrl.u32 %v1717, 7
        %v1719 = vsub.s32 2, %v1718
        %v1720 = vrot.slane %v1707, %v1719
        %v1724 = vmul.f32 %v1704, %v1712
        %v1725 = vmul.f32 %v1705, %v1716
        %v1726 = vmul.f32 %v1706, %v1720
        %v1727 = vpack.c.bf16 %v1724, %v1724
        %v1728 = vpack.c.bf16 %v1725, %v1725
        %v1729 = vpack.c.bf16 %v1726, %v1726
        %v1733 = vcombine.low %v1727, %v1728
        %v1735 = vunpack.c.l.s4 1983009808
        %v1736 = vunpack.c.0.s8 %v1735
        %v1737 = vlaneseq
        %v1738 = vshrl.u32 %v1737, 7
        %v1739 = vsub.s32 %v1736, %v1738
        %v1740 = vrot.slane %v1733, %v1739
        %v1742 = vunpack.c.l.s4 1983009808
        %v1743 = vunpack.c.0.s8 %v1742
        %v1744 = vlaneseq
        %v1745 = vshrl.u32 %v1744, 7
        %v1746 = vsub.s32 %v1743, %v1745
        %v1747 = vrot.slane %v1729, %v1746
        %v1748 = vcombine.low %v1740, %v1747
        %vm1750 = vcmask 553988
        %vm1751 = vmor %vm1750, %vm374
        %1752 = vst.msk [vmem:[#allocation3 + $0x2] sm:$0x3f] %vm1751, %v1748
        %v1753 = vld [vmem:[%s5] sm:$0x3]
        %v1754 = vld [vmem:[#allocation3] sm:$0xff]
        %s1755 = scalar_lea.vmem %s5, 2
        %v1756 = vld [vmem:[%s1755] sm:$0x3]
        %v1758 = vcombine.high %v1754, %v1754
        %v1760 = vunpack.c.l.s4 1983009808
        %v1761 = vunpack.c.0.s8 %v1760
        %v1762 = vlaneseq
        %v1763 = vshrl.u32 %v1762, 7
        %v1764 = vsub.s32 %v1761, %v1763
        %v1765 = vrot.slane %v1754, %v1764
        %v1767 = vunpack.c.l.s4 1983009808
        %v1768 = vunpack.c.0.s8 %v1767
        %v1769 = vlaneseq
        %v1770 = vshrl.u32 %v1769, 7
        %v1771 = vsub.s32 %v1768, %v1770
        %v1772 = vrot.slane %v1758, %v1771
        %v1773 = vcombine.high %v1765, %v1765
        %v1774 = vcombine.high %v1772, %v1772
        %1775 = vrot.lane.b32.xlu0 %v1765, 18
        %v1776 = vpop.permute.xlu0 %1775
        %1777 = vrot.lane.b32.xlu0 %v1773, 18
        %v1778 = vpop.permute.xlu0 %1777
        %1779 = vrot.lane.b32.xlu0 %v1772, 18
        %v1780 = vpop.permute.xlu0 %1779
        %1781 = vrot.lane.b32.xlu0 %v1774, 18
        %v1782 = vpop.permute.xlu0 %1781
        %v1783 = vsel %vm704, %v1776, %v1778
        %v1784 = vsel %vm704, %v1778, %v1780
        %v1785 = vsel %vm704, %v1780, %v1782
        %vm1786 = vcmask 31744
        %v1788 = vsel %vm1786, %v1756, 0
        %v1791 = vsel %vm372, %v1783, 0
        %v1794 = vsel %vm372, %v1784, 0
        %v1797 = vsel %vm372, %v1785, 0
        %1799 = vmatprep.subr.bf16.mxu0 %v1794
        %1800 = vmatpush1.bf16.msra.mxu0 %v1791
        %1801 = vmatprep.subr.bf16.mxu0 0
        %1802 = vmatpush1.bf16.msra.mxu0 0
        %1803 = vmatprep.subr.bf16.mxu0 0
        %1804 = vmatpush1.bf16.msra.mxu0 0
        %1805 = vmatprep.subr.bf16.mxu0 0
        %1806 = vmatpush1.bf16.msra.mxu0 0
        %1807 = vmatprep.subr.bf16.mxu0 0
        %1808 = vmatpush1.bf16.msra.mxu0 0
        %1809 = vmatprep.subr.bf16.mxu0 0
        %1810 = vmatpush1.bf16.msra.mxu0 0
        %1811 = vmatprep.subr.bf16.mxu0 0
        %1812 = vmatpush1.bf16.msra.mxu0 0
        %1813 = vmatprep.subr.bf16.mxu0 0
        %1814 = vmatpush1.bf16.msra.mxu0 0
        %1815 = vmatprep.subr.bf16.mxu0 0
        %1816 = vmatpush1.bf16.msra.mxu0 0
        %1817 = vmatprep.subr.bf16.mxu0 0
        %1818 = vmatpush1.bf16.msra.mxu0 0
        %1819 = vmatprep.subr.bf16.mxu0 0
        %1820 = vmatpush1.bf16.msra.mxu0 0
        %1821 = vmatprep.subr.bf16.mxu0 0
        %1822 = vmatpush1.bf16.msra.mxu0 0
        %1823 = vmatprep.subr.bf16.mxu0 0
        %1824 = vmatpush1.bf16.msra.mxu0 0
        %1825 = vmatprep.subr.bf16.mxu0 0
        %1826 = vmatpush1.bf16.msra.mxu0 0
        %1827 = vmatprep.subr.bf16.mxu0 0
        %1828 = vmatpush1.bf16.msra.mxu0 0
        %1829 = vmatprep.subr.bf16.mxu0 0
        %1830 = vmatpush1.bf16.msra.mxu0 0
        %1831 = vmatprep.mubr.bf16.mxu0 0
        %1832 = vmatmul.mubr.bf16.gmra.mrb[0].mxu0 %v1788
        %v1833 = vpop.f32.mrb[0].mxu0
        %v1834 = vadd.f32 0.0, %v1833
        %v1835 = vpop.f32.mrb[0].mxu0
        %v1836 = vadd.f32 0.0, %v1835
        %v1837 = vpop.f32.mrb[0].mxu0
        %v1838 = vpop.f32.mrb[0].mxu0
        %1839 = vdwg.mxu0
        %1840 = vmatprep.subr.bf16.mxu0 0
        %1841 = vmatpush1.bf16.msra.mxu0 %v1797
        %1842 = vmatprep.subr.bf16.mxu0 0
        %1843 = vmatpush1.bf16.msra.mxu0 0
        %1844 = vmatprep.subr.bf16.mxu0 0
        %1845 = vmatpush1.bf16.msra.mxu0 0
        %1846 = vmatprep.subr.bf16.mxu0 0
        %1847 = vmatpush1.bf16.msra.mxu0 0
        %1848 = vmatprep.subr.bf16.mxu0 0
        %1849 = vmatpush1.bf16.msra.mxu0 0
        %1850 = vmatprep.subr.bf16.mxu0 0
        %1851 = vmatpush1.bf16.msra.mxu0 0
        %1852 = vmatprep.subr.bf16.mxu0 0
        %1853 = vmatpush1.bf16.msra.mxu0 0
        %1854 = vmatprep.subr.bf16.mxu0 0
        %1855 = vmatpush1.bf16.msra.mxu0 0
        %1856 = vmatprep.subr.bf16.mxu0 0
        %1857 = vmatpush1.bf16.msra.mxu0 0
        %1858 = vmatprep.subr.bf16.mxu0 0
        %1859 = vmatpush1.bf16.msra.mxu0 0
        %1860 = vmatprep.subr.bf16.mxu0 0
        %1861 = vmatpush1.bf16.msra.mxu0 0
        %1862 = vmatprep.subr.bf16.mxu0 0
        %1863 = vmatpush1.bf16.msra.mxu0 0
        %1864 = vmatprep.subr.bf16.mxu0 0
        %1865 = vmatpush1.bf16.msra.mxu0 0
        %1866 = vmatprep.subr.bf16.mxu0 0
        %1867 = vmatpush1.bf16.msra.mxu0 0
        %1868 = vmatprep.subr.bf16.mxu0 0
        %1869 = vmatpush1.bf16.msra.mxu0 0
        %1870 = vmatprep.subr.bf16.mxu0 0
        %1871 = vmatpush1.bf16.msra.mxu0 0
        %1872 = vmatprep.mubr.bf16.mxu0 0
        %1873 = vmatmul.mubr.bf16.gmra.mrb[0].mxu0 %v1788
        %v1874 = vpop.f32.mrb[0].mxu0
        %v1875 = vadd.f32 0.0, %v1874
        %v1876 = vpop.f32.mrb[0].mxu0
        %v1877 = vpop.f32.mrb[0].mxu0
        %v1878 = vpop.f32.mrb[0].mxu0
        %1879 = vdwg.mxu0
        %1880 = vrot.lane.b32.xlu0 %v1765, 19
        %v1881 = vpop.permute.xlu0 %1880
        %1882 = vrot.lane.b32.xlu0 %v1773, 19
        %v1883 = vpop.permute.xlu0 %1882
        %1884 = vrot.lane.b32.xlu0 %v1772, 19
        %v1885 = vpop.permute.xlu0 %1884
        %1886 = vrot.lane.b32.xlu0 %v1774, 19
        %v1887 = vpop.permute.xlu0 %1886
        %v1888 = vsel %vm842, %v1881, %v1883
        %v1889 = vsel %vm842, %v1883, %v1885
        %v1890 = vsel %vm842, %v1885, %v1887
        %v1892 = vsel %vm1786, %v1753, 0
        %v1895 = vsel %vm372, %v1888, 0
        %v1898 = vsel %vm372, %v1889, 0
        %v1901 = vsel %vm372, %v1890, 0
        %1903 = vmatprep.subr.bf16.mxu0 %v1898
        %1904 = vmatpush1.bf16.msra.mxu0 %v1895
        %1905 = vmatprep.subr.bf16.mxu0 0
        %1906 = vmatpush1.bf16.msra.mxu0 0
        %1907 = vmatprep.subr.bf16.mxu0 0
        %1908 = vmatpush1.bf16.msra.mxu0 0
        %1909 = vmatprep.subr.bf16.mxu0 0
        %1910 = vmatpush1.bf16.msra.mxu0 0
        %1911 = vmatprep.subr.bf16.mxu0 0
        %1912 = vmatpush1.bf16.msra.mxu0 0
        %1913 = vmatprep.subr.bf16.mxu0 0
        %1914 = vmatpush1.bf16.msra.mxu0 0
        %1915 = vmatprep.subr.bf16.mxu0 0
        %1916 = vmatpush1.bf16.msra.mxu0 0
        %1917 = vmatprep.subr.bf16.mxu0 0
        %1918 = vmatpush1.bf16.msra.mxu0 0
        %1919 = vmatprep.subr.bf16.mxu0 0
        %1920 = vmatpush1.bf16.msra.mxu0 0
        %1921 = vmatprep.subr.bf16.mxu0 0
        %1922 = vmatpush1.bf16.msra.mxu0 0
        %1923 = vmatprep.subr.bf16.mxu0 0
        %1924 = vmatpush1.bf16.msra.mxu0 0
        %1925 = vmatprep.subr.bf16.mxu0 0
        %1926 = vmatpush1.bf16.msra.mxu0 0
        %1927 = vmatprep.subr.bf16.mxu0 0
        %1928 = vmatpush1.bf16.msra.mxu0 0
        %1929 = vmatprep.subr.bf16.mxu0 0
        %1930 = vmatpush1.bf16.msra.mxu0 0
        %1931 = vmatprep.subr.bf16.mxu0 0
        %1932 = vmatpush1.bf16.msra.mxu0 0
        %1933 = vmatprep.subr.bf16.mxu0 0
        %1934 = vmatpush1.bf16.msra.mxu0 0
        %1935 = vmatprep.mubr.bf16.mxu0 0
        %1936 = vmatmul.mubr.bf16.gmra.mrb[0].mxu0 %v1892
        %v1937 = vpop.f32.mrb[0].mxu0
        %v1938 = vadd.f32 %v1834, %v1937
        %v1939 = vpop.f32.mrb[0].mxu0
        %v1940 = vadd.f32 %v1836, %v1939
        %v1941 = vpop.f32.mrb[0].mxu0
        %v1942 = vpop.f32.mrb[0].mxu0
        %1943 = vdwg.mxu0
        %1944 = vmatprep.subr.bf16.mxu0 0
        %1945 = vmatpush1.bf16.msra.mxu0 %v1901
        %1946 = vmatprep.subr.bf16.mxu0 0
        %1947 = vmatpush1.bf16.msra.mxu0 0
        %1948 = vmatprep.subr.bf16.mxu0 0
        %1949 = vmatpush1.bf16.msra.mxu0 0
        %1950 = vmatprep.subr.bf16.mxu0 0
        %1951 = vmatpush1.bf16.msra.mxu0 0
        %1952 = vmatprep.subr.bf16.mxu0 0
        %1953 = vmatpush1.bf16.msra.mxu0 0
        %1954 = vmatprep.subr.bf16.mxu0 0
        %1955 = vmatpush1.bf16.msra.mxu0 0
        %1956 = vmatprep.subr.bf16.mxu0 0
        %1957 = vmatpush1.bf16.msra.mxu0 0
        %1958 = vmatprep.subr.bf16.mxu0 0
        %1959 = vmatpush1.bf16.msra.mxu0 0
        %1960 = vmatprep.subr.bf16.mxu0 0
        %1961 = vmatpush1.bf16.msra.mxu0 0
        %1962 = vmatprep.subr.bf16.mxu0 0
        %1963 = vmatpush1.bf16.msra.mxu0 0
        %1964 = vmatprep.subr.bf16.mxu0 0
        %1965 = vmatpush1.bf16.msra.mxu0 0
        %1966 = vmatprep.subr.bf16.mxu0 0
        %1967 = vmatpush1.bf16.msra.mxu0 0
        %1968 = vmatprep.subr.bf16.mxu0 0
        %1969 = vmatpush1.bf16.msra.mxu0 0
        %1970 = vmatprep.subr.bf16.mxu0 0
        %1971 = vmatpush1.bf16.msra.mxu0 0
        %1972 = vmatprep.subr.bf16.mxu0 0
        %1973 = vmatpush1.bf16.msra.mxu0 0
        %1974 = vmatprep.subr.bf16.mxu0 0
        %1975 = vmatpush1.bf16.msra.mxu0 0
        %1976 = vmatprep.mubr.bf16.mxu0 0
        %1977 = vmatmul.mubr.bf16.gmra.mrb[0].mxu0 %v1892
        %v1978 = vpop.f32.mrb[0].mxu0
        %v1979 = vadd.f32 %v1875, %v1978
        %v1980 = vpop.f32.mrb[0].mxu0
        %v1981 = vpop.f32.mrb[0].mxu0
        %v1982 = vpop.f32.mrb[0].mxu0
        %1983 = vdwg.mxu0
        %s1984 = scalar_lea.vmem %s5, 4
        %v1985 = vld [vmem:[%s1984] sm:$0x3]
        %v1986 = vld [vmem:[#allocation3] sm:$0xff]
        %v1988 = vcombine.high %v1986, %v1986
        %v1990 = vunpack.c.l.s4 1983009808
        %v1991 = vunpack.c.0.s8 %v1990
        %v1992 = vlaneseq
        %v1993 = vshrl.u32 %v1992, 7
        %v1994 = vsub.s32 %v1991, %v1993
        %v1995 = vrot.slane %v1986, %v1994
        %v1997 = vunpack.c.l.s4 1983009808
        %v1998 = vunpack.c.0.s8 %v1997
        %v1999 = vlaneseq
        %v2000 = vshrl.u32 %v1999, 7
        %v2001 = vsub.s32 %v1998, %v2000
        %v2002 = vrot.slane %v1988, %v2001
        %v2003 = vcombine.high %v1995, %v1995
        %v2004 = vcombine.high %v2002, %v2002
        %2005 = vrot.lane.b32.xlu0 %v1995, 17
        %v2006 = vpop.permute.xlu0 %2005
        %2007 = vrot.lane.b32.xlu0 %v2003, 17
        %v2008 = vpop.permute.xlu0 %2007
        %2009 = vrot.lane.b32.xlu0 %v2002, 17
        %v2010 = vpop.permute.xlu0 %2009
        %2011 = vrot.lane.b32.xlu0 %v2004, 17
        %v2012 = vpop.permute.xlu0 %2011
        %v2013 = vsel %vm949, %v2006, %v2008
        %v2014 = vsel %vm949, %v2008, %v2010
        %v2015 = vsel %vm949, %v2010, %v2012
        %v2017 = vsel %vm1786, %v1985, 0
        %v2020 = vsel %vm372, %v2013, 0
        %v2023 = vsel %vm372, %v2014, 0
        %v2026 = vsel %vm372, %v2015, 0
        %2028 = vmatprep.subr.bf16.mxu0 %v2023
        %2029 = vmatpush1.bf16.msra.mxu0 %v2020
        %2030 = vmatprep.subr.bf16.mxu0 0
        %2031 = vmatpush1.bf16.msra.mxu0 0
        %2032 = vmatprep.subr.bf16.mxu0 0
        %2033 = vmatpush1.bf16.msra.mxu0 0
        %2034 = vmatprep.subr.bf16.mxu0 0
        %2035 = vmatpush1.bf16.msra.mxu0 0
        %2036 = vmatprep.subr.bf16.mxu0 0
        %2037 = vmatpush1.bf16.msra.mxu0 0
        %2038 = vmatprep.subr.bf16.mxu0 0
        %2039 = vmatpush1.bf16.msra.mxu0 0
        %2040 = vmatprep.subr.bf16.mxu0 0
        %2041 = vmatpush1.bf16.msra.mxu0 0
        %2042 = vmatprep.subr.bf16.mxu0 0
        %2043 = vmatpush1.bf16.msra.mxu0 0
        %2044 = vmatprep.subr.bf16.mxu0 0
        %2045 = vmatpush1.bf16.msra.mxu0 0
        %2046 = vmatprep.subr.bf16.mxu0 0
        %2047 = vmatpush1.bf16.msra.mxu0 0
        %2048 = vmatprep.subr.bf16.mxu0 0
        %2049 = vmatpush1.bf16.msra.mxu0 0
        %2050 = vmatprep.subr.bf16.mxu0 0
        %2051 = vmatpush1.bf16.msra.mxu0 0
        %2052 = vmatprep.subr.bf16.mxu0 0
        %2053 = vmatpush1.bf16.msra.mxu0 0
        %2054 = vmatprep.subr.bf16.mxu0 0
        %2055 = vmatpush1.bf16.msra.mxu0 0
        %2056 = vmatprep.subr.bf16.mxu0 0
        %2057 = vmatpush1.bf16.msra.mxu0 0
        %2058 = vmatprep.subr.bf16.mxu0 0
        %2059 = vmatpush1.bf16.msra.mxu0 0
        %2060 = vmatprep.mubr.bf16.mxu0 0
        %2061 = vmatmul.mubr.bf16.gmra.mrb[0].mxu0 %v2017
        %v2062 = vpop.f32.mrb[0].mxu0
        %v2063 = vadd.f32 0.0, %v2062
        %v2064 = vpop.f32.mrb[0].mxu0
        %v2065 = vadd.f32 0.0, %v2064
        %v2066 = vpop.f32.mrb[0].mxu0
        %v2067 = vpop.f32.mrb[0].mxu0
        %2068 = vdwg.mxu0
        %2069 = vmatprep.subr.bf16.mxu0 0
        %2070 = vmatpush1.bf16.msra.mxu0 %v2026
        %2071 = vmatprep.subr.bf16.mxu0 0
        %2072 = vmatpush1.bf16.msra.mxu0 0
        %2073 = vmatprep.subr.bf16.mxu0 0
        %2074 = vmatpush1.bf16.msra.mxu0 0
        %2075 = vmatprep.subr.bf16.mxu0 0
        %2076 = vmatpush1.bf16.msra.mxu0 0
        %2077 = vmatprep.subr.bf16.mxu0 0
        %2078 = vmatpush1.bf16.msra.mxu0 0
        %2079 = vmatprep.subr.bf16.mxu0 0
        %2080 = vmatpush1.bf16.msra.mxu0 0
        %2081 = vmatprep.subr.bf16.mxu0 0
        %2082 = vmatpush1.bf16.msra.mxu0 0
        %2083 = vmatprep.subr.bf16.mxu0 0
        %2084 = vmatpush1.bf16.msra.mxu0 0
        %2085 = vmatprep.subr.bf16.mxu0 0
        %2086 = vmatpush1.bf16.msra.mxu0 0
        %2087 = vmatprep.subr.bf16.mxu0 0
        %2088 = vmatpush1.bf16.msra.mxu0 0
        %2089 = vmatprep.subr.bf16.mxu0 0
        %2090 = vmatpush1.bf16.msra.mxu0 0
        %2091 = vmatprep.subr.bf16.mxu0 0
        %2092 = vmatpush1.bf16.msra.mxu0 0
        %2093 = vmatprep.subr.bf16.mxu0 0
        %2094 = vmatpush1.bf16.msra.mxu0 0
        %2095 = vmatprep.subr.bf16.mxu0 0
        %2096 = vmatpush1.bf16.msra.mxu0 0
        %2097 = vmatprep.subr.bf16.mxu0 0
        %2098 = vmatpush1.bf16.msra.mxu0 0
        %2099 = vmatprep.subr.bf16.mxu0 0
        %2100 = vmatpush1.bf16.msra.mxu0 0
        %2101 = vmatprep.mubr.bf16.mxu0 0
        %2102 = vmatmul.mubr.bf16.gmra.mrb[0].mxu0 %v2017
        %v2103 = vpop.f32.mrb[0].mxu0
        %v2104 = vadd.f32 0.0, %v2103
        %v2105 = vpop.f32.mrb[0].mxu0
        %v2106 = vpop.f32.mrb[0].mxu0
        %v2107 = vpop.f32.mrb[0].mxu0
        %2108 = vdwg.mxu0
        %v2109 = vadd.f32 %v1938, %v2063
        %v2110 = vadd.f32 %v1940, %v2065
        %v2111 = vadd.f32 %v1979, %v2104
        %s2112 = scalar_lea.vmem %s5, 6
        %v2113 = vld [vmem:[%s2112] sm:$0x3]
        %v2114 = vld [vmem:[#allocation3] sm:$0xff]
        %v2116 = vcombine.high %v2114, %v2114
        %v2118 = vunpack.c.l.s4 1983009808
        %v2119 = vunpack.c.0.s8 %v2118
        %v2120 = vlaneseq
        %v2121 = vshrl.u32 %v2120, 7
        %v2122 = vsub.s32 %v2119, %v2121
        %v2123 = vrot.slane %v2114, %v2122
        %v2125 = vunpack.c.l.s4 1983009808
        %v2126 = vunpack.c.0.s8 %v2125
        %v2127 = vlaneseq
        %v2128 = vshrl.u32 %v2127, 7
        %v2129 = vsub.s32 %v2126, %v2128
        %v2130 = vrot.slane %v2116, %v2129
        %v2131 = vcombine.high %v2123, %v2123
        %v2132 = vcombine.high %v2130, %v2130
        %2133 = vrot.lane.b32.xlu0 %v2123, 1
        %v2134 = vpop.permute.xlu0 %2133
        %2135 = vrot.lane.b32.xlu0 %v2131, 1
        %v2136 = vpop.permute.xlu0 %2135
        %2137 = vrot.lane.b32.xlu0 %v2130, 1
        %v2138 = vpop.permute.xlu0 %2137
        %2139 = vrot.lane.b32.xlu0 %v2132, 1
        %v2140 = vpop.permute.xlu0 %2139
        %v2141 = vsel %vm1059, %v2134, %v2136
        %v2142 = vsel %vm1059, %v2136, %v2138
        %v2143 = vsel %vm1059, %v2138, %v2140
        %v2145 = vsel %vm1786, %v2113, 0
        %v2148 = vsel %vm372, %v2141, 0
        %v2151 = vsel %vm372, %v2142, 0
        %v2154 = vsel %vm372, %v2143, 0
        %2156 = vmatprep.subr.bf16.mxu0 %v2151
        %2157 = vmatpush1.bf16.msra.mxu0 %v2148
        %2158 = vmatprep.subr.bf16.mxu0 0
        %2159 = vmatpush1.bf16.msra.mxu0 0
        %2160 = vmatprep.subr.bf16.mxu0 0
        %2161 = vmatpush1.bf16.msra.mxu0 0
        %2162 = vmatprep.subr.bf16.mxu0 0
        %2163 = vmatpush1.bf16.msra.mxu0 0
        %2164 = vmatprep.subr.bf16.mxu0 0
        %2165 = vmatpush1.bf16.msra.mxu0 0
        %2166 = vmatprep.subr.bf16.mxu0 0
        %2167 = vmatpush1.bf16.msra.mxu0 0
        %2168 = vmatprep.subr.bf16.mxu0 0
        %2169 = vmatpush1.bf16.msra.mxu0 0
        %2170 = vmatprep.subr.bf16.mxu0 0
        %2171 = vmatpush1.bf16.msra.mxu0 0
        %2172 = vmatprep.subr.bf16.mxu0 0
        %2173 = vmatpush1.bf16.msra.mxu0 0
        %2174 = vmatprep.subr.bf16.mxu0 0
        %2175 = vmatpush1.bf16.msra.mxu0 0
        %2176 = vmatprep.subr.bf16.mxu0 0
        %2177 = vmatpush1.bf16.msra.mxu0 0
        %2178 = vmatprep.subr.bf16.mxu0 0
        %2179 = vmatpush1.bf16.msra.mxu0 0
        %2180 = vmatprep.subr.bf16.mxu0 0
        %2181 = vmatpush1.bf16.msra.mxu0 0
        %2182 = vmatprep.subr.bf16.mxu0 0
        %2183 = vmatpush1.bf16.msra.mxu0 0
        %2184 = vmatprep.subr.bf16.mxu0 0
        %2185 = vmatpush1.bf16.msra.mxu0 0
        %2186 = vmatprep.subr.bf16.mxu0 0
        %2187 = vmatpush1.bf16.msra.mxu0 0
        %2188 = vmatprep.mubr.bf16.mxu0 0
        %2189 = vmatmul.mubr.bf16.gmra.mrb[0].mxu0 %v2145
        %v2190 = vpop.f32.mrb[0].mxu0
        %v2191 = vadd.f32 0.0, %v2190
        %v2192 = vpop.f32.mrb[0].mxu0
        %v2193 = vadd.f32 0.0, %v2192
        %v2194 = vpop.f32.mrb[0].mxu0
        %v2195 = vpop.f32.mrb[0].mxu0
        %2196 = vdwg.mxu0
        %2197 = vmatprep.subr.bf16.mxu0 0
        %2198 = vmatpush1.bf16.msra.mxu0 %v2154
        %2199 = vmatprep.subr.bf16.mxu0 0
        %2200 = vmatpush1.bf16.msra.mxu0 0
        %2201 = vmatprep.subr.bf16.mxu0 0
        %2202 = vmatpush1.bf16.msra.mxu0 0
        %2203 = vmatprep.subr.bf16.mxu0 0
        %2204 = vmatpush1.bf16.msra.mxu0 0
        %2205 = vmatprep.subr.bf16.mxu0 0
        %2206 = vmatpush1.bf16.msra.mxu0 0
        %2207 = vmatprep.subr.bf16.mxu0 0
        %2208 = vmatpush1.bf16.msra.mxu0 0
        %2209 = vmatprep.subr.bf16.mxu0 0
        %2210 = vmatpush1.bf16.msra.mxu0 0
        %2211 = vmatprep.subr.bf16.mxu0 0
        %2212 = vmatpush1.bf16.msra.mxu0 0
        %2213 = vmatprep.subr.bf16.mxu0 0
        %2214 = vmatpush1.bf16.msra.mxu0 0
        %2215 = vmatprep.subr.bf16.mxu0 0
        %2216 = vmatpush1.bf16.msra.mxu0 0
        %2217 = vmatprep.subr.bf16.mxu0 0
        %2218 = vmatpush1.bf16.msra.mxu0 0
        %2219 = vmatprep.subr.bf16.mxu0 0
        %2220 = vmatpush1.bf16.msra.mxu0 0
        %2221 = vmatprep.subr.bf16.mxu0 0
        %2222 = vmatpush1.bf16.msra.mxu0 0
        %2223 = vmatprep.subr.bf16.mxu0 0
        %2224 = vmatpush1.bf16.msra.mxu0 0
        %2225 = vmatprep.subr.bf16.mxu0 0
        %2226 = vmatpush1.bf16.msra.mxu0 0
        %2227 = vmatprep.subr.bf16.mxu0 0
        %2228 = vmatpush1.bf16.msra.mxu0 0
        %2229 = vmatprep.mubr.bf16.mxu0 0
        %2230 = vmatmul.mubr.bf16.gmra.mrb[0].mxu0 %v2145
        %v2231 = vpop.f32.mrb[0].mxu0
        %v2232 = vadd.f32 0.0, %v2231
        %v2233 = vpop.f32.mrb[0].mxu0
        %v2234 = vpop.f32.mrb[0].mxu0
        %v2235 = vpop.f32.mrb[0].mxu0
        %2236 = vdwg.mxu0
        %v2237 = vadd.f32 %v2109, %v2191
        %v2238 = vadd.f32 %v2110, %v2193
        %v2239 = vadd.f32 %v2111, %v2232
        %s2240 = scalar_lea.vmem %s5, 8
        %v2241 = vld [vmem:[%s2240] sm:$0x3]
        %v2242 = vld [vmem:[#allocation3 + $0x2] sm:$0x3f]
        %v2244 = vcombine.high %v2242, %v2242
        %v2246 = vunpack.c.l.s4 1983009808
        %v2247 = vunpack.c.0.s8 %v2246
        %v2248 = vlaneseq
        %v2249 = vshrl.u32 %v2248, 7
        %v2250 = vsub.s32 %v2247, %v2249
        %v2251 = vrot.slane %v2242, %v2250
        %v2253 = vunpack.c.l.s4 1983009808
        %v2254 = vunpack.c.0.s8 %v2253
        %v2255 = vlaneseq
        %v2256 = vshrl.u32 %v2255, 7
        %v2257 = vsub.s32 %v2254, %v2256
        %v2258 = vrot.slane %v2244, %v2257
        %v2259 = vcombine.high %v2251, %v2251
        %v2261 = vsel %vm1786, %v2241, 0
        %v2264 = vsel %vm372, %v2251, 0
        %v2267 = vsel %vm372, %v2259, 0
        %v2270 = vsel %vm372, %v2258, 0
        %2272 = vmatprep.subr.bf16.mxu0 %v2267
        %2273 = vmatpush1.bf16.msra.mxu0 %v2264
        %2274 = vmatprep.subr.bf16.mxu0 0
        %2275 = vmatpush1.bf16.msra.mxu0 0
        %2276 = vmatprep.subr.bf16.mxu0 0
        %2277 = vmatpush1.bf16.msra.mxu0 0
        %2278 = vmatprep.subr.bf16.mxu0 0
        %2279 = vmatpush1.bf16.msra.mxu0 0
        %2280 = vmatprep.subr.bf16.mxu0 0
        %2281 = vmatpush1.bf16.msra.mxu0 0
        %2282 = vmatprep.subr.bf16.mxu0 0
        %2283 = vmatpush1.bf16.msra.mxu0 0
        %2284 = vmatprep.subr.bf16.mxu0 0
        %2285 = vmatpush1.bf16.msra.mxu0 0
        %2286 = vmatprep.subr.bf16.mxu0 0
        %2287 = vmatpush1.bf16.msra.mxu0 0
        %2288 = vmatprep.subr.bf16.mxu0 0
        %2289 = vmatpush1.bf16.msra.mxu0 0
        %2290 = vmatprep.subr.bf16.mxu0 0
        %2291 = vmatpush1.bf16.msra.mxu0 0
        %2292 = vmatprep.subr.bf16.mxu0 0
        %2293 = vmatpush1.bf16.msra.mxu0 0
        %2294 = vmatprep.subr.bf16.mxu0 0
        %2295 = vmatpush1.bf16.msra.mxu0 0
        %2296 = vmatprep.subr.bf16.mxu0 0
        %2297 = vmatpush1.bf16.msra.mxu0 0
        %2298 = vmatprep.subr.bf16.mxu0 0
        %2299 = vmatpush1.bf16.msra.mxu0 0
        %2300 = vmatprep.subr.bf16.mxu0 0
        %2301 = vmatpush1.bf16.msra.mxu0 0
        %2302 = vmatprep.subr.bf16.mxu0 0
        %2303 = vmatpush1.bf16.msra.mxu0 0
        %2304 = vmatprep.mubr.bf16.mxu0 0
        %2305 = vmatmul.mubr.bf16.gmra.mrb[0].mxu0 %v2261
        %v2306 = vpop.f32.mrb[0].mxu0
        %v2307 = vadd.f32 0.0, %v2306
        %v2308 = vpop.f32.mrb[0].mxu0
        %v2309 = vadd.f32 0.0, %v2308
        %v2310 = vpop.f32.mrb[0].mxu0
        %v2311 = vpop.f32.mrb[0].mxu0
        %2312 = vdwg.mxu0
        %2313 = vmatprep.subr.bf16.mxu0 0
        %2314 = vmatpush1.bf16.msra.mxu0 %v2270
        %2315 = vmatprep.subr.bf16.mxu0 0
        %2316 = vmatpush1.bf16.msra.mxu0 0
        %2317 = vmatprep.subr.bf16.mxu0 0
        %2318 = vmatpush1.bf16.msra.mxu0 0
        %2319 = vmatprep.subr.bf16.mxu0 0
        %2320 = vmatpush1.bf16.msra.mxu0 0
        %2321 = vmatprep.subr.bf16.mxu0 0
        %2322 = vmatpush1.bf16.msra.mxu0 0
        %2323 = vmatprep.subr.bf16.mxu0 0
        %2324 = vmatpush1.bf16.msra.mxu0 0
        %2325 = vmatprep.subr.bf16.mxu0 0
        %2326 = vmatpush1.bf16.msra.mxu0 0
        %2327 = vmatprep.subr.bf16.mxu0 0
        %2328 = vmatpush1.bf16.msra.mxu0 0
        %2329 = vmatprep.subr.bf16.mxu0 0
        %2330 = vmatpush1.bf16.msra.mxu0 0
        %2331 = vmatprep.subr.bf16.mxu0 0
        %2332 = vmatpush1.bf16.msra.mxu0 0
        %2333 = vmatprep.subr.bf16.mxu0 0
        %2334 = vmatpush1.bf16.msra.mxu0 0
        %2335 = vmatprep.subr.bf16.mxu0 0
        %2336 = vmatpush1.bf16.msra.mxu0 0
        %2337 = vmatprep.subr.bf16.mxu0 0
        %2338 = vmatpush1.bf16.msra.mxu0 0
        %2339 = vmatprep.subr.bf16.mxu0 0
        %2340 = vmatpush1.bf16.msra.mxu0 0
        %2341 = vmatprep.subr.bf16.mxu0 0
        %2342 = vmatpush1.bf16.msra.mxu0 0
        %2343 = vmatprep.subr.bf16.mxu0 0
        %2344 = vmatpush1.bf16.msra.mxu0 0
        %2345 = vmatprep.mubr.bf16.mxu0 0
        %2346 = vmatmul.mubr.bf16.gmra.mrb[0].mxu0 %v2261
        %v2347 = vpop.f32.mrb[0].mxu0
        %v2348 = vadd.f32 0.0, %v2347
        %v2349 = vpop.f32.mrb[0].mxu0
        %v2350 = vpop.f32.mrb[0].mxu0
        %v2351 = vpop.f32.mrb[0].mxu0
        %2352 = vdwg.mxu0
        %v2353 = vadd.f32 %v2237, %v2307
        %v2354 = vadd.f32 %v2238, %v2309
        %v2355 = vadd.f32 %v2239, %v2348
        %s2356 = scalar_lea.vmem %s5, 10
        %v2357 = vld [vmem:[%s2356] sm:$0x3]
        %v2358 = vld [vmem:[#allocation3 + $0x2] sm:$0x3f]
        %v2360 = vcombine.high %v2358, %v2358
        %v2362 = vunpack.c.l.s4 1983009808
        %v2363 = vunpack.c.0.s8 %v2362
        %v2364 = vlaneseq
        %v2365 = vshrl.u32 %v2364, 7
        %v2366 = vsub.s32 %v2363, %v2365
        %v2367 = vrot.slane %v2358, %v2366
        %v2369 = vunpack.c.l.s4 1983009808
        %v2370 = vunpack.c.0.s8 %v2369
        %v2371 = vlaneseq
        %v2372 = vshrl.u32 %v2371, 7
        %v2373 = vsub.s32 %v2370, %v2372
        %v2374 = vrot.slane %v2360, %v2373
        %v2375 = vcombine.high %v2367, %v2367
        %2376 = vrot.lane.b32.xlu0 %v2367, 127
        %v2377 = vpop.permute.xlu0 %2376
        %2378 = vrot.lane.b32.xlu0 %v2375, 127
        %v2379 = vpop.permute.xlu0 %2378
        %2380 = vrot.lane.b32.xlu0 %v2374, 127
        %v2381 = vpop.permute.xlu0 %2380
        %v2382 = vsel %vm1275, %v2377, %v2379
        %v2383 = vsel %vm1275, %v2379, %v2381
        %v2385 = vsel %vm1786, %v2357, 0
        %v2388 = vsel %vm372, %v2382, 0
        %v2391 = vsel %vm372, %v2383, 0
        %v2394 = vsel %vm372, %v2381, 0
        %2396 = vmatprep.subr.bf16.mxu0 %v2391
        %2397 = vmatpush1.bf16.msra.mxu0 %v2388
        %2398 = vmatprep.subr.bf16.mxu0 0
        %2399 = vmatpush1.bf16.msra.mxu0 0
        %2400 = vmatprep.subr.bf16.mxu0 0
        %2401 = vmatpush1.bf16.msra.mxu0 0
        %2402 = vmatprep.subr.bf16.mxu0 0
        %2403 = vmatpush1.bf16.msra.mxu0 0
        %2404 = vmatprep.subr.bf16.mxu0 0
        %2405 = vmatpush1.bf16.msra.mxu0 0
        %2406 = vmatprep.subr.bf16.mxu0 0
        %2407 = vmatpush1.bf16.msra.mxu0 0
        %2408 = vmatprep.subr.bf16.mxu0 0
        %2409 = vmatpush1.bf16.msra.mxu0 0
        %2410 = vmatprep.subr.bf16.mxu0 0
        %2411 = vmatpush1.bf16.msra.mxu0 0
        %2412 = vmatprep.subr.bf16.mxu0 0
        %2413 = vmatpush1.bf16.msra.mxu0 0
        %2414 = vmatprep.subr.bf16.mxu0 0
        %2415 = vmatpush1.bf16.msra.mxu0 0
        %2416 = vmatprep.subr.bf16.mxu0 0
        %2417 = vmatpush1.bf16.msra.mxu0 0
        %2418 = vmatprep.subr.bf16.mxu0 0
        %2419 = vmatpush1.bf16.msra.mxu0 0
        %2420 = vmatprep.subr.bf16.mxu0 0
        %2421 = vmatpush1.bf16.msra.mxu0 0
        %2422 = vmatprep.subr.bf16.mxu0 0
        %2423 = vmatpush1.bf16.msra.mxu0 0
        %2424 = vmatprep.subr.bf16.mxu0 0
        %2425 = vmatpush1.bf16.msra.mxu0 0
        %2426 = vmatprep.subr.bf16.mxu0 0
        %2427 = vmatpush1.bf16.msra.mxu0 0
        %2428 = vmatprep.mubr.bf16.mxu0 0
        %2429 = vmatmul.mubr.bf16.gmra.mrb[0].mxu0 %v2385
        %v2430 = vpop.f32.mrb[0].mxu0
        %v2431 = vadd.f32 0.0, %v2430
        %v2432 = vpop.f32.mrb[0].mxu0
        %v2433 = vadd.f32 0.0, %v2432
        %v2434 = vpop.f32.mrb[0].mxu0
        %v2435 = vpop.f32.mrb[0].mxu0
        %2436 = vdwg.mxu0
        %2437 = vmatprep.subr.bf16.mxu0 0
        %2438 = vmatpush1.bf16.msra.mxu0 %v2394
        %2439 = vmatprep.subr.bf16.mxu0 0
        %2440 = vmatpush1.bf16.msra.mxu0 0
        %2441 = vmatprep.subr.bf16.mxu0 0
        %2442 = vmatpush1.bf16.msra.mxu0 0
        %2443 = vmatprep.subr.bf16.mxu0 0
        %2444 = vmatpush1.bf16.msra.mxu0 0
        %2445 = vmatprep.subr.bf16.mxu0 0
        %2446 = vmatpush1.bf16.msra.mxu0 0
        %2447 = vmatprep.subr.bf16.mxu0 0
        %2448 = vmatpush1.bf16.msra.mxu0 0
        %2449 = vmatprep.subr.bf16.mxu0 0
        %2450 = vmatpush1.bf16.msra.mxu0 0
        %2451 = vmatprep.subr.bf16.mxu0 0
        %2452 = vmatpush1.bf16.msra.mxu0 0
        %2453 = vmatprep.subr.bf16.mxu0 0
        %2454 = vmatpush1.bf16.msra.mxu0 0
        %2455 = vmatprep.subr.bf16.mxu0 0
        %2456 = vmatpush1.bf16.msra.mxu0 0
        %2457 = vmatprep.subr.bf16.mxu0 0
        %2458 = vmatpush1.bf16.msra.mxu0 0
        %2459 = vmatprep.subr.bf16.mxu0 0
        %2460 = vmatpush1.bf16.msra.mxu0 0
        %2461 = vmatprep.subr.bf16.mxu0 0
        %2462 = vmatpush1.bf16.msra.mxu0 0
        %2463 = vmatprep.subr.bf16.mxu0 0
        %2464 = vmatpush1.bf16.msra.mxu0 0
        %2465 = vmatprep.subr.bf16.mxu0 0
        %2466 = vmatpush1.bf16.msra.mxu0 0
        %2467 = vmatprep.subr.bf16.mxu0 0
        %2468 = vmatpush1.bf16.msra.mxu0 0
        %2469 = vmatprep.mubr.bf16.mxu0 0
        %2470 = vmatmul.mubr.bf16.gmra.mrb[0].mxu0 %v2385
        %v2471 = vpop.f32.mrb[0].mxu0
        %v2472 = vadd.f32 0.0, %v2471
        %v2473 = vpop.f32.mrb[0].mxu0
        %v2474 = vpop.f32.mrb[0].mxu0
        %v2475 = vpop.f32.mrb[0].mxu0
        %2476 = vdwg.mxu0
        %v2477 = vadd.f32 %v2353, %v2431
        %v2478 = vadd.f32 %v2354, %v2433
        %v2479 = vadd.f32 %v2355, %v2472
        %s2480 = scalar_lea.vmem %s5, 12
        %v2481 = vld [vmem:[%s2480] sm:$0x3]
        %v2482 = vld [vmem:[#allocation3 + $0x2] sm:$0x3f]
        %v2484 = vcombine.high %v2482, %v2482
        %v2486 = vunpack.c.l.s4 1983009808
        %v2487 = vunpack.c.0.s8 %v2486
        %v2488 = vlaneseq
        %v2489 = vshrl.u32 %v2488, 7
        %v2490 = vsub.s32 %v2487, %v2489
        %v2491 = vrot.slane %v2482, %v2490
        %v2493 = vunpack.c.l.s4 1983009808
        %v2494 = vunpack.c.0.s8 %v2493
        %v2495 = vlaneseq
        %v2496 = vshrl.u32 %v2495, 7
        %v2497 = vsub.s32 %v2494, %v2496
        %v2498 = vrot.slane %v2484, %v2497
        %v2499 = vcombine.high %v2491, %v2491
        %2500 = vrot.lane.b32.xlu0 %v2491, 111
        %v2501 = vpop.permute.xlu0 %2500
        %2502 = vrot.lane.b32.xlu0 %v2499, 111
        %v2503 = vpop.permute.xlu0 %2502
        %2504 = vrot.lane.b32.xlu0 %v2498, 111
        %v2505 = vpop.permute.xlu0 %2504
        %v2506 = vsel %vm1382, %v2501, %v2503
        %v2507 = vsel %vm1382, %v2503, %v2505
        %v2509 = vsel %vm1786, %v2481, 0
        %v2512 = vsel %vm372, %v2506, 0
        %v2515 = vsel %vm372, %v2507, 0
        %v2518 = vsel %vm372, %v2505, 0
        %2520 = vmatprep.subr.bf16.mxu0 %v2515
        %2521 = vmatpush1.bf16.msra.mxu0 %v2512
        %2522 = vmatprep.subr.bf16.mxu0 0
        %2523 = vmatpush1.bf16.msra.mxu0 0
        %2524 = vmatprep.subr.bf16.mxu0 0
        %2525 = vmatpush1.bf16.msra.mxu0 0
        %2526 = vmatprep.subr.bf16.mxu0 0
        %2527 = vmatpush1.bf16.msra.mxu0 0
        %2528 = vmatprep.subr.bf16.mxu0 0
        %2529 = vmatpush1.bf16.msra.mxu0 0
        %2530 = vmatprep.subr.bf16.mxu0 0
        %2531 = vmatpush1.bf16.msra.mxu0 0
        %2532 = vmatprep.subr.bf16.mxu0 0
        %2533 = vmatpush1.bf16.msra.mxu0 0
        %2534 = vmatprep.subr.bf16.mxu0 0
        %2535 = vmatpush1.bf16.msra.mxu0 0
        %2536 = vmatprep.subr.bf16.mxu0 0
        %2537 = vmatpush1.bf16.msra.mxu0 0
        %2538 = vmatprep.subr.bf16.mxu0 0
        %2539 = vmatpush1.bf16.msra.mxu0 0
        %2540 = vmatprep.subr.bf16.mxu0 0
        %2541 = vmatpush1.bf16.msra.mxu0 0
        %2542 = vmatprep.subr.bf16.mxu0 0
        %2543 = vmatpush1.bf16.msra.mxu0 0
        %2544 = vmatprep.subr.bf16.mxu0 0
        %2545 = vmatpush1.bf16.msra.mxu0 0
        %2546 = vmatprep.subr.bf16.mxu0 0
        %2547 = vmatpush1.bf16.msra.mxu0 0
        %2548 = vmatprep.subr.bf16.mxu0 0
        %2549 = vmatpush1.bf16.msra.mxu0 0
        %2550 = vmatprep.subr.bf16.mxu0 0
        %2551 = vmatpush1.bf16.msra.mxu0 0
        %2552 = vmatprep.mubr.bf16.mxu0 0
        %2553 = vmatmul.mubr.bf16.gmra.mrb[0].mxu0 %v2509
        %v2554 = vpop.f32.mrb[0].mxu0
        %v2555 = vadd.f32 0.0, %v2554
        %v2556 = vpop.f32.mrb[0].mxu0
        %v2557 = vadd.f32 0.0, %v2556
        %v2558 = vpop.f32.mrb[0].mxu0
        %v2559 = vpop.f32.mrb[0].mxu0
        %2560 = vdwg.mxu0
        %2561 = vmatprep.subr.bf16.mxu0 0
        %2562 = vmatpush1.bf16.msra.mxu0 %v2518
        %2563 = vmatprep.subr.bf16.mxu0 0
        %2564 = vmatpush1.bf16.msra.mxu0 0
        %2565 = vmatprep.subr.bf16.mxu0 0
        %2566 = vmatpush1.bf16.msra.mxu0 0
        %2567 = vmatprep.subr.bf16.mxu0 0
        %2568 = vmatpush1.bf16.msra.mxu0 0
        %2569 = vmatprep.subr.bf16.mxu0 0
        %2570 = vmatpush1.bf16.msra.mxu0 0
        %2571 = vmatprep.subr.bf16.mxu0 0
        %2572 = vmatpush1.bf16.msra.mxu0 0
        %2573 = vmatprep.subr.bf16.mxu0 0
        %2574 = vmatpush1.bf16.msra.mxu0 0
        %2575 = vmatprep.subr.bf16.mxu0 0
        %2576 = vmatpush1.bf16.msra.mxu0 0
        %2577 = vmatprep.subr.bf16.mxu0 0
        %2578 = vmatpush1.bf16.msra.mxu0 0
        %2579 = vmatprep.subr.bf16.mxu0 0
        %2580 = vmatpush1.bf16.msra.mxu0 0
        %2581 = vmatprep.subr.bf16.mxu0 0
        %2582 = vmatpush1.bf16.msra.mxu0 0
        %2583 = vmatprep.subr.bf16.mxu0 0
        %2584 = vmatpush1.bf16.msra.mxu0 0
        %2585 = vmatprep.subr.bf16.mxu0 0
        %2586 = vmatpush1.bf16.msra.mxu0 0
        %2587 = vmatprep.subr.bf16.mxu0 0
        %2588 = vmatpush1.bf16.msra.mxu0 0
        %2589 = vmatprep.subr.bf16.mxu0 0
        %2590 = vmatpush1.bf16.msra.mxu0 0
        %2591 = vmatprep.subr.bf16.mxu0 0
        %2592 = vmatpush1.bf16.msra.mxu0 0
        %2593 = vmatprep.mubr.bf16.mxu0 0
        %2594 = vmatmul.mubr.bf16.gmra.mrb[0].mxu0 %v2509
        %v2595 = vpop.f32.mrb[0].mxu0
        %v2596 = vadd.f32 0.0, %v2595
        %v2597 = vpop.f32.mrb[0].mxu0
        %v2598 = vpop.f32.mrb[0].mxu0
        %v2599 = vpop.f32.mrb[0].mxu0
        %2600 = vdwg.mxu0
        %v2601 = vadd.f32 %v2477, %v2555
        %v2602 = vadd.f32 %v2478, %v2557
        %v2603 = vadd.f32 %v2479, %v2596
        %s2604 = scalar_lea.vmem %s5, 14
        %v2605 = vld [vmem:[%s2604] sm:$0x3]
        %v2606 = vld [vmem:[#allocation3 + $0x2] sm:$0x3f]
        %v2608 = vcombine.high %v2606, %v2606
        %v2610 = vunpack.c.l.s4 1983009808
        %v2611 = vunpack.c.0.s8 %v2610
        %v2612 = vlaneseq
        %v2613 = vshrl.u32 %v2612, 7
        %v2614 = vsub.s32 %v2611, %v2613
        %v2615 = vrot.slane %v2606, %v2614
        %v2617 = vunpack.c.l.s4 1983009808
        %v2618 = vunpack.c.0.s8 %v2617
        %v2619 = vlaneseq
        %v2620 = vshrl.u32 %v2619, 7
        %v2621 = vsub.s32 %v2618, %v2620
        %v2622 = vrot.slane %v2608, %v2621
        %v2623 = vcombine.high %v2615, %v2615
        %2624 = vrot.lane.b32.xlu0 %v2615, 110
        %v2625 = vpop.permute.xlu0 %2624
        %2626 = vrot.lane.b32.xlu0 %v2623, 110
        %v2627 = vpop.permute.xlu0 %2626
        %2628 = vrot.lane.b32.xlu0 %v2622, 110
        %v2629 = vpop.permute.xlu0 %2628
        %v2630 = vsel %vm1489, %v2625, %v2627
        %v2631 = vsel %vm1489, %v2627, %v2629
        %v2633 = vsel %vm1786, %v2605, 0
        %v2636 = vsel %vm372, %v2630, 0
        %v2639 = vsel %vm372, %v2631, 0
        %v2642 = vsel %vm372, %v2629, 0
        %2644 = vmatprep.subr.bf16.mxu0 %v2639
        %2645 = vmatpush1.bf16.msra.mxu0 %v2636
        %2646 = vmatprep.subr.bf16.mxu0 0
        %2647 = vmatpush1.bf16.msra.mxu0 0
        %2648 = vmatprep.subr.bf16.mxu0 0
        %2649 = vmatpush1.bf16.msra.mxu0 0
        %2650 = vmatprep.subr.bf16.mxu0 0
        %2651 = vmatpush1.bf16.msra.mxu0 0
        %2652 = vmatprep.subr.bf16.mxu0 0
        %2653 = vmatpush1.bf16.msra.mxu0 0
        %2654 = vmatprep.subr.bf16.mxu0 0
        %2655 = vmatpush1.bf16.msra.mxu0 0
        %2656 = vmatprep.subr.bf16.mxu0 0
        %2657 = vmatpush1.bf16.msra.mxu0 0
        %2658 = vmatprep.subr.bf16.mxu0 0
        %2659 = vmatpush1.bf16.msra.mxu0 0
        %2660 = vmatprep.subr.bf16.mxu0 0
        %2661 = vmatpush1.bf16.msra.mxu0 0
        %2662 = vmatprep.subr.bf16.mxu0 0
        %2663 = vmatpush1.bf16.msra.mxu0 0
        %2664 = vmatprep.subr.bf16.mxu0 0
        %2665 = vmatpush1.bf16.msra.mxu0 0
        %2666 = vmatprep.subr.bf16.mxu0 0
        %2667 = vmatpush1.bf16.msra.mxu0 0
        %2668 = vmatprep.subr.bf16.mxu0 0
        %2669 = vmatpush1.bf16.msra.mxu0 0
        %2670 = vmatprep.subr.bf16.mxu0 0
        %2671 = vmatpush1.bf16.msra.mxu0 0
        %2672 = vmatprep.subr.bf16.mxu0 0
        %2673 = vmatpush1.bf16.msra.mxu0 0
        %2674 = vmatprep.subr.bf16.mxu0 0
        %2675 = vmatpush1.bf16.msra.mxu0 0
        %2676 = vmatprep.mubr.bf16.mxu0 0
        %2677 = vmatmul.mubr.bf16.gmra.mrb[0].mxu0 %v2633
        %v2678 = vpop.f32.mrb[0].mxu0
        %v2679 = vadd.f32 0.0, %v2678
        %v2680 = vpop.f32.mrb[0].mxu0
        %v2681 = vadd.f32 0.0, %v2680
        %v2682 = vpop.f32.mrb[0].mxu0
        %v2683 = vpop.f32.mrb[0].mxu0
        %2684 = vdwg.mxu0
        %2685 = vmatprep.subr.bf16.mxu0 0
        %2686 = vmatpush1.bf16.msra.mxu0 %v2642
        %2687 = vmatprep.subr.bf16.mxu0 0
        %2688 = vmatpush1.bf16.msra.mxu0 0
        %2689 = vmatprep.subr.bf16.mxu0 0
        %2690 = vmatpush1.bf16.msra.mxu0 0
        %2691 = vmatprep.subr.bf16.mxu0 0
        %2692 = vmatpush1.bf16.msra.mxu0 0
        %2693 = vmatprep.subr.bf16.mxu0 0
        %2694 = vmatpush1.bf16.msra.mxu0 0
        %2695 = vmatprep.subr.bf16.mxu0 0
        %2696 = vmatpush1.bf16.msra.mxu0 0
        %2697 = vmatprep.subr.bf16.mxu0 0
        %2698 = vmatpush1.bf16.msra.mxu0 0
        %2699 = vmatprep.subr.bf16.mxu0 0
        %2700 = vmatpush1.bf16.msra.mxu0 0
        %2701 = vmatprep.subr.bf16.mxu0 0
        %2702 = vmatpush1.bf16.msra.mxu0 0
        %2703 = vmatprep.subr.bf16.mxu0 0
        %2704 = vmatpush1.bf16.msra.mxu0 0
        %2705 = vmatprep.subr.bf16.mxu0 0
        %2706 = vmatpush1.bf16.msra.mxu0 0
        %2707 = vmatprep.subr.bf16.mxu0 0
        %2708 = vmatpush1.bf16.msra.mxu0 0
        %2709 = vmatprep.subr.bf16.mxu0 0
        %2710 = vmatpush1.bf16.msra.mxu0 0
        %2711 = vmatprep.subr.bf16.mxu0 0
        %2712 = vmatpush1.bf16.msra.mxu0 0
        %2713 = vmatprep.subr.bf16.mxu0 0
        %2714 = vmatpush1.bf16.msra.mxu0 0
        %2715 = vmatprep.subr.bf16.mxu0 0
        %2716 = vmatpush1.bf16.msra.mxu0 0
        %2717 = vmatprep.mubr.bf16.mxu0 0
        %2718 = vmatmul.mubr.bf16.gmra.mrb[0].mxu0 %v2633
        %v2719 = vpop.f32.mrb[0].mxu0
        %v2720 = vadd.f32 0.0, %v2719
        %v2721 = vpop.f32.mrb[0].mxu0
        %v2722 = vpop.f32.mrb[0].mxu0
        %v2723 = vpop.f32.mrb[0].mxu0
        %2724 = vdwg.mxu0
        %v2725 = vadd.f32 %v2601, %v2679
        %v2726 = vadd.f32 %v2602, %v2681
        %v2727 = vadd.f32 %v2603, %v2720
        %s2728 = scalar_lea.vmem %s5, 16
        %v2729 = vld [vmem:[%s2728] sm:$0x3]
        %v2730 = vld [vmem:[#allocation3 + $0x2] sm:$0x3f]
        %v2732 = vcombine.high %v2730, %v2730
        %v2734 = vunpack.c.l.s4 1983009808
        %v2735 = vunpack.c.0.s8 %v2734
        %v2736 = vlaneseq
        %v2737 = vshrl.u32 %v2736, 7
        %v2738 = vsub.s32 %v2735, %v2737
        %v2739 = vrot.slane %v2730, %v2738
        %v2741 = vunpack.c.l.s4 1983009808
        %v2742 = vunpack.c.0.s8 %v2741
        %v2743 = vlaneseq
        %v2744 = vshrl.u32 %v2743, 7
        %v2745 = vsub.s32 %v2742, %v2744
        %v2746 = vrot.slane %v2732, %v2745
        %v2747 = vcombine.high %v2739, %v2739
        %2748 = vrot.lane.b32.xlu0 %v2739, 109
        %v2749 = vpop.permute.xlu0 %2748
        %2750 = vrot.lane.b32.xlu0 %v2747, 109
        %v2751 = vpop.permute.xlu0 %2750
        %2752 = vrot.lane.b32.xlu0 %v2746, 109
        %v2753 = vpop.permute.xlu0 %2752
        %v2754 = vsel %vm1596, %v2749, %v2751
        %v2755 = vsel %vm1596, %v2751, %v2753
        %v2757 = vsel %vm1786, %v2729, 0
        %v2760 = vsel %vm372, %v2754, 0
        %v2763 = vsel %vm372, %v2755, 0
        %v2766 = vsel %vm372, %v2753, 0
        %2768 = vmatprep.subr.bf16.mxu0 %v2763
        %2769 = vmatpush1.bf16.msra.mxu0 %v2760
        %2770 = vmatprep.subr.bf16.mxu0 0
        %2771 = vmatpush1.bf16.msra.mxu0 0
        %2772 = vmatprep.subr.bf16.mxu0 0
        %2773 = vmatpush1.bf16.msra.mxu0 0
        %2774 = vmatprep.subr.bf16.mxu0 0
        %2775 = vmatpush1.bf16.msra.mxu0 0
        %2776 = vmatprep.subr.bf16.mxu0 0
        %2777 = vmatpush1.bf16.msra.mxu0 0
        %2778 = vmatprep.subr.bf16.mxu0 0
        %2779 = vmatpush1.bf16.msra.mxu0 0
        %2780 = vmatprep.subr.bf16.mxu0 0
        %2781 = vmatpush1.bf16.msra.mxu0 0
        %2782 = vmatprep.subr.bf16.mxu0 0
        %2783 = vmatpush1.bf16.msra.mxu0 0
        %2784 = vmatprep.subr.bf16.mxu0 0
        %2785 = vmatpush1.bf16.msra.mxu0 0
        %2786 = vmatprep.subr.bf16.mxu0 0
        %2787 = vmatpush1.bf16.msra.mxu0 0
        %2788 = vmatprep.subr.bf16.mxu0 0
        %2789 = vmatpush1.bf16.msra.mxu0 0
        %2790 = vmatprep.subr.bf16.mxu0 0
        %2791 = vmatpush1.bf16.msra.mxu0 0
        %2792 = vmatprep.subr.bf16.mxu0 0
        %2793 = vmatpush1.bf16.msra.mxu0 0
        %2794 = vmatprep.subr.bf16.mxu0 0
        %2795 = vmatpush1.bf16.msra.mxu0 0
        %2796 = vmatprep.subr.bf16.mxu0 0
        %2797 = vmatpush1.bf16.msra.mxu0 0
        %2798 = vmatprep.subr.bf16.mxu0 0
        %2799 = vmatpush1.bf16.msra.mxu0 0
        %2800 = vmatprep.mubr.bf16.mxu0 0
        %2801 = vmatmul.mubr.bf16.gmra.mrb[0].mxu0 %v2757
        %v2802 = vpop.f32.mrb[0].mxu0
        %v2803 = vadd.f32 0.0, %v2802
        %v2804 = vpop.f32.mrb[0].mxu0
        %v2805 = vadd.f32 0.0, %v2804
        %v2806 = vpop.f32.mrb[0].mxu0
        %v2807 = vpop.f32.mrb[0].mxu0
        %2808 = vdwg.mxu0
        %2809 = vmatprep.subr.bf16.mxu0 0
        %2810 = vmatpush1.bf16.msra.mxu0 %v2766
        %2811 = vmatprep.subr.bf16.mxu0 0
        %2812 = vmatpush1.bf16.msra.mxu0 0
        %2813 = vmatprep.subr.bf16.mxu0 0
        %2814 = vmatpush1.bf16.msra.mxu0 0
        %2815 = vmatprep.subr.bf16.mxu0 0
        %2816 = vmatpush1.bf16.msra.mxu0 0
        %2817 = vmatprep.subr.bf16.mxu0 0
        %2818 = vmatpush1.bf16.msra.mxu0 0
        %2819 = vmatprep.subr.bf16.mxu0 0
        %2820 = vmatpush1.bf16.msra.mxu0 0
        %2821 = vmatprep.subr.bf16.mxu0 0
        %2822 = vmatpush1.bf16.msra.mxu0 0
        %2823 = vmatprep.subr.bf16.mxu0 0
        %2824 = vmatpush1.bf16.msra.mxu0 0
        %2825 = vmatprep.subr.bf16.mxu0 0
        %2826 = vmatpush1.bf16.msra.mxu0 0
        %2827 = vmatprep.subr.bf16.mxu0 0
        %2828 = vmatpush1.bf16.msra.mxu0 0
        %2829 = vmatprep.subr.bf16.mxu0 0
        %2830 = vmatpush1.bf16.msra.mxu0 0
        %2831 = vmatprep.subr.bf16.mxu0 0
        %2832 = vmatpush1.bf16.msra.mxu0 0
        %2833 = vmatprep.subr.bf16.mxu0 0
        %2834 = vmatpush1.bf16.msra.mxu0 0
        %2835 = vmatprep.subr.bf16.mxu0 0
        %2836 = vmatpush1.bf16.msra.mxu0 0
        %2837 = vmatprep.subr.bf16.mxu0 0
        %2838 = vmatpush1.bf16.msra.mxu0 0
        %2839 = vmatprep.subr.bf16.mxu0 0
        %2840 = vmatpush1.bf16.msra.mxu0 0
        %2841 = vmatprep.mubr.bf16.mxu0 0
        %2842 = vmatmul.mubr.bf16.gmra.mrb[0].mxu0 %v2757
        %v2843 = vpop.f32.mrb[0].mxu0
        %v2844 = vadd.f32 0.0, %v2843
        %v2845 = vpop.f32.mrb[0].mxu0
        %v2846 = vpop.f32.mrb[0].mxu0
        %v2847 = vpop.f32.mrb[0].mxu0
        %2848 = vdwg.mxu0
        %v2849 = vadd.f32 %v2725, %v2803
        %v2850 = vadd.f32 %v2726, %v2805
        %v2851 = vadd.f32 %v2727, %v2844
        %v2852 = vld [vmem:[#allocation4] sm:$0xff]
        %v2853 = vld [vmem:[#allocation4 + $0x8] sm:$0xff]
        %v2854 = vld [vmem:[#allocation4 + $0x10] sm:$0xff]
        %v2855 = vld [vmem:[#allocation4 + $0x18] sm:$0xff]
        %v2856 = vld [vmem:[#allocation4 + $0x20] sm:$0xff]
        %v2857 = vld [vmem:[#allocation4 + $0x28] sm:$0xff]
        %v2858 = vld [vmem:[#allocation4 + $0x30] sm:$0xff]
        %v2859 = vld [vmem:[#allocation4 + $0x38] sm:$0xff]
        %v2860 = vld [vmem:[#allocation4 + $0x40] sm:$0xff]
        %v2861 = vld [vmem:[#allocation4 + $0x48] sm:$0xff]
        %v2862 = vld [vmem:[#allocation4 + $0x50] sm:$0xff]
        %v2863 = vld [vmem:[#allocation4 + $0x58] sm:$0xff]
        %v2864 = vld [vmem:[#allocation4 + $0x60] sm:$0xff]
        %v2865 = vld [vmem:[#allocation4 + $0x68] sm:$0xff]
        %v2866 = vld [vmem:[#allocation4 + $0x70] sm:$0xff]
        %v2867 = vld [vmem:[#allocation4 + $0x78] sm:$0xff]
        %v2868 = vld [vmem:[#allocation4 + $0x80] sm:$0xff]
        %v2869 = vld [vmem:[#allocation4 + $0x88] sm:$0xff]
        %v2870 = vld [vmem:[#allocation4 + $0x90] sm:$0xff]
        %v2871 = vld [vmem:[#allocation4 + $0x98] sm:$0xff]
        %v2872 = vld [vmem:[#allocation4 + $0xa0] sm:$0xff]
        %v2873 = vld [vmem:[#allocation4 + $0xa8] sm:$0xff]
        %v2874 = vld [vmem:[#allocation4 + $0xb0] sm:$0xff]
        %v2875 = vld [vmem:[#allocation4 + $0xb8] sm:$0xff]
        %v2876 = vld [vmem:[#allocation4 + $0xc0] sm:$0xff]
        %v2877 = vld [vmem:[#allocation4 + $0xc8] sm:$0xff]
        %v2878 = vld [vmem:[#allocation4 + $0xd0] sm:$0xff]
        %v2879 = vld [vmem:[#allocation4 + $0xd8] sm:$0xff]
        %v2880 = vld [vmem:[#allocation4 + $0xe0] sm:$0xff]
        %v2881 = vld [vmem:[#allocation4 + $0xe8] sm:$0xff]
        %v2882 = vld [vmem:[#allocation4 + $0xf0] sm:$0xff]
        %v2883 = vld [vmem:[#allocation4 + $0xf8] sm:$0xff]
        %v2884 = vld [vmem:[#allocation4 + $0x100] sm:$0xff]
        %v2885 = vld [vmem:[#allocation4 + $0x108] sm:$0xff]
        %v2886 = vld [vmem:[#allocation4 + $0x110] sm:$0xff]
        %v2887 = vld [vmem:[#allocation4 + $0x118] sm:$0xff]
        %v2888 = vld [vmem:[#allocation4 + $0x120] sm:$0xff]
        %v2889 = vld [vmem:[#allocation4 + $0x128] sm:$0xff]
        %v2890 = vld [vmem:[#allocation4 + $0x130] sm:$0xff]
        %v2891 = vld [vmem:[#allocation4 + $0x138] sm:$0xff]
        %v2892 = vld [vmem:[#allocation4 + $0x140] sm:$0xff]
        %v2893 = vld [vmem:[#allocation4 + $0x148] sm:$0xff]
        %v2894 = vld [vmem:[#allocation4 + $0x150] sm:$0xff]
        %v2895 = vld [vmem:[#allocation4 + $0x158] sm:$0xff]
        %v2896 = vld [vmem:[#allocation4 + $0x160] sm:$0xff]
        %v2897 = vld [vmem:[#allocation4 + $0x168] sm:$0xff]
        %v2898 = vld [vmem:[#allocation4 + $0x170] sm:$0xff]
        %v2899 = vld [vmem:[#allocation4 + $0x178] sm:$0xff]
        %v2900 = vld [vmem:[#allocation4 + $0x180] sm:$0xff]
        %v2901 = vld [vmem:[#allocation4 + $0x188] sm:$0xff]
        %v2902 = vld [vmem:[#allocation4 + $0x190] sm:$0xff]
        %v2903 = vld [vmem:[#allocation4 + $0x198] sm:$0xff]
        %v2904 = vld [vmem:[#allocation4 + $0x1a0] sm:$0xff]
        %v2905 = vld [vmem:[#allocation4 + $0x1a8] sm:$0xff]
        %v2906 = vld [vmem:[#allocation4 + $0x1b0] sm:$0xff]
        %v2907 = vld [vmem:[#allocation4 + $0x1b8] sm:$0xff]
        %v2908 = vld [vmem:[#allocation4 + $0x1c0] sm:$0xff]
        %v2909 = vld [vmem:[#allocation4 + $0x1c8] sm:$0xff]
        %v2910 = vld [vmem:[#allocation4 + $0x1d0] sm:$0xff]
        %v2911 = vld [vmem:[#allocation4 + $0x1d8] sm:$0xff]
        %v2912 = vld [vmem:[#allocation4 + $0x1e0] sm:$0xff]
        %v2913 = vld [vmem:[#allocation4 + $0x1e8] sm:$0xff]
        %v2914 = vld [vmem:[#allocation4 + $0x1f0] sm:$0xff]
        %v2915 = vld [vmem:[#allocation4 + $0x1f8] sm:$0xff]
        %v2916 = vld [vmem:[#allocation4 + $0x200] sm:$0xff]
        %v2917 = vld [vmem:[#allocation4 + $0x208] sm:$0xff]
        %v2918 = vld [vmem:[#allocation4 + $0x210] sm:$0xff]
        %v2919 = vld [vmem:[#allocation4 + $0x218] sm:$0xff]
        %v2920 = vld [vmem:[#allocation4 + $0x220] sm:$0xff]
        %v2921 = vld [vmem:[#allocation4 + $0x228] sm:$0xff]
        %v2922 = vld [vmem:[#allocation4 + $0x230] sm:$0xff]
        %v2923 = vld [vmem:[#allocation4 + $0x238] sm:$0xff]
        %v2924 = vld [vmem:[#allocation4 + $0x240] sm:$0xff]
        %v2925 = vld [vmem:[#allocation4 + $0x248] sm:$0xff]
        %v2926 = vld [vmem:[#allocation4 + $0x250] sm:$0xff]
        %v2927 = vld [vmem:[#allocation4 + $0x258] sm:$0xff]
        %v2928 = vld [vmem:[#allocation4 + $0x260] sm:$0xff]
        %v2929 = vld [vmem:[#allocation4 + $0x268] sm:$0xff]
        %v2930 = vld [vmem:[#allocation4 + $0x270] sm:$0xff]
        %v2931 = vld [vmem:[#allocation4 + $0x278] sm:$0xff]
        %v2932 = vld [vmem:[#allocation4 + $0x280] sm:$0xf]
        %v2933 = vld [vmem:[#allocation4 + $0x288] sm:$0xf]
        %v2934 = vld [vmem:[%s6] sm:$0xf]
        %2936 = vset.pattern.permute.xlu0 0
        %2937 = vperm.xlu0 %2936, %v2934
        %v2938 = vpop.permute.xlu0 %2937
        %vm2940 = vcmask 556032
        %v2942 = vsel %vm2940, %v2851, 0
        %v2945 = vsel %vm368, %v2932, 0
        %v2948 = vsel %vm368, %v2933, 0
        %2950 = vmatprep.subr.mxu0 %v2853
        %2951 = vmatpush1.msra.mxu0 %v2852
        %2952 = vmatprep.subr.mxu0 %v2855
        %2953 = vmatpush1.msra.mxu0 %v2854
        %2954 = vmatprep.subr.mxu0 %v2857
        %2955 = vmatpush1.msra.mxu0 %v2856
        %2956 = vmatprep.subr.mxu0 %v2859
        %2957 = vmatpush1.msra.mxu0 %v2858
        %2958 = vmatprep.subr.mxu0 %v2861
        %2959 = vmatpush1.msra.mxu0 %v2860
        %2960 = vmatprep.subr.mxu0 %v2863
        %2961 = vmatpush1.msra.mxu0 %v2862
        %2962 = vmatprep.subr.mxu0 %v2865
        %2963 = vmatpush1.msra.mxu0 %v2864
        %2964 = vmatprep.subr.mxu0 %v2867
        %2965 = vmatpush1.msra.mxu0 %v2866
        %2966 = vmatprep.subr.mxu0 %v2869
        %2967 = vmatpush1.msra.mxu0 %v2868
        %2968 = vmatprep.subr.mxu0 %v2871
        %2969 = vmatpush1.msra.mxu0 %v2870
        %2970 = vmatprep.subr.mxu0 %v2873
        %2971 = vmatpush1.msra.mxu0 %v2872
        %2972 = vmatprep.subr.mxu0 %v2875
        %2973 = vmatpush1.msra.mxu0 %v2874
        %2974 = vmatprep.subr.mxu0 %v2877
        %2975 = vmatpush1.msra.mxu0 %v2876
        %2976 = vmatprep.subr.mxu0 %v2879
        %2977 = vmatpush1.msra.mxu0 %v2878
        %2978 = vmatprep.subr.mxu0 %v2881
        %2979 = vmatpush1.msra.mxu0 %v2880
        %2980 = vmatprep.subr.mxu0 %v2883
        %2981 = vmatpush1.msra.mxu0 %v2882
        %2982 = vmatprep.subr.mxu0 %v2885
        %2983 = vmatpush1.msra.mxu0 %v2884
        %2984 = vmatprep.subr.mxu0 %v2887
        %2985 = vmatpush1.msra.mxu0 %v2886
        %2986 = vmatprep.subr.mxu0 %v2889
        %2987 = vmatpush1.msra.mxu0 %v2888
        %2988 = vmatprep.subr.mxu0 %v2891
        %2989 = vmatpush1.msra.mxu0 %v2890
        %2990 = vmatprep.subr.mxu0 %v2893
        %2991 = vmatpush1.msra.mxu0 %v2892
        %2992 = vmatprep.subr.mxu0 %v2895
        %2993 = vmatpush1.msra.mxu0 %v2894
        %2994 = vmatprep.subr.mxu0 %v2897
        %2995 = vmatpush1.msra.mxu0 %v2896
        %2996 = vmatprep.subr.mxu0 %v2899
        %2997 = vmatpush1.msra.mxu0 %v2898
        %2998 = vmatprep.subr.mxu0 %v2901
        %2999 = vmatpush1.msra.mxu0 %v2900
        %3000 = vmatprep.subr.mxu0 %v2903
        %3001 = vmatpush1.msra.mxu0 %v2902
        %3002 = vmatprep.subr.mxu0 %v2905
        %3003 = vmatpush1.msra.mxu0 %v2904
        %3004 = vmatprep.subr.mxu0 %v2907
        %3005 = vmatpush1.msra.mxu0 %v2906
        %3006 = vmatprep.subr.mxu0 %v2909
        %3007 = vmatpush1.msra.mxu0 %v2908
        %3008 = vmatprep.subr.mxu0 %v2911
        %3009 = vmatpush1.msra.mxu0 %v2910
        %3010 = vmatprep.subr.mxu0 %v2913
        %3011 = vmatpush1.msra.mxu0 %v2912
        %3012 = vmatprep.subr.mxu0 %v2915
        %3013 = vmatpush1.msra.mxu0 %v2914
        %3014 = vmatprep.mubr.f32.mxu0 %v2850
        %3015 = vmatmul.mubr.f32.gmra.mrb[0].mxu0 %v2849
        %v3016 = vpop.f32.mrb[0].mxu0
        %v3017 = vadd.f32 %v2938, %v3016
        %v3018 = vpop.f32.mrb[0].mxu0
        %v3019 = vadd.f32 %v2938, %v3018
        %3020 = vdwg.mxu0
        %3021 = vmatprep.subr.mxu0 %v2917
        %3022 = vmatpush1.msra.mxu0 %v2916
        %3023 = vmatprep.subr.mxu0 %v2919
        %3024 = vmatpush1.msra.mxu0 %v2918
        %3025 = vmatprep.subr.mxu0 %v2921
        %3026 = vmatpush1.msra.mxu0 %v2920
        %3027 = vmatprep.subr.mxu0 %v2923
        %3028 = vmatpush1.msra.mxu0 %v2922
        %3029 = vmatprep.subr.mxu0 %v2925
        %3030 = vmatpush1.msra.mxu0 %v2924
        %3031 = vmatprep.subr.mxu0 %v2927
        %3032 = vmatpush1.msra.mxu0 %v2926
        %3033 = vmatprep.subr.mxu0 %v2929
        %3034 = vmatpush1.msra.mxu0 %v2928
        %3035 = vmatprep.subr.mxu0 %v2931
        %3036 = vmatpush1.msra.mxu0 %v2930
        %3037 = vmatprep.subr.mxu0 %v2948
        %3038 = vmatpush1.msra.mxu0 %v2945
        %3039 = vmatprep.subr.mxu0 0.0
        %3040 = vmatpush1.msra.mxu0 0.0
        %3041 = vmatprep.subr.mxu0 0.0
        %3042 = vmatpush1.msra.mxu0 0.0
        %3043 = vmatprep.subr.mxu0 0.0
        %3044 = vmatpush1.msra.mxu0 0.0
        %3045 = vmatprep.subr.mxu0 0.0
        %3046 = vmatpush1.msra.mxu0 0.0
        %3047 = vmatprep.subr.mxu0 0.0
        %3048 = vmatpush1.msra.mxu0 0.0
        %3049 = vmatprep.subr.mxu0 0.0
        %3050 = vmatpush1.msra.mxu0 0.0
        %3051 = vmatprep.subr.mxu0 0.0
        %3052 = vmatpush1.msra.mxu0 0.0
        %3053 = vmatprep.subr.mxu0 0.0
        %3054 = vmatpush1.msra.mxu0 0.0
        %3055 = vmatprep.subr.mxu0 0.0
        %3056 = vmatpush1.msra.mxu0 0.0
        %3057 = vmatprep.subr.mxu0 0.0
        %3058 = vmatpush1.msra.mxu0 0.0
        %3059 = vmatprep.subr.mxu0 0.0
        %3060 = vmatpush1.msra.mxu0 0.0
        %3061 = vmatprep.subr.mxu0 0.0
        %3062 = vmatpush1.msra.mxu0 0.0
        %3063 = vmatprep.subr.mxu0 0.0
        %3064 = vmatpush1.msra.mxu0 0.0
        %3065 = vmatprep.subr.mxu0 0.0
        %3066 = vmatpush1.msra.mxu0 0.0
        %3067 = vmatprep.subr.mxu0 0.0
        %3068 = vmatpush1.msra.mxu0 0.0
        %3069 = vmatprep.subr.mxu0 0.0
        %3070 = vmatpush1.msra.mxu0 0.0
        %3071 = vmatprep.subr.mxu0 0.0
        %3072 = vmatpush1.msra.mxu0 0.0
        %3073 = vmatprep.subr.mxu0 0.0
        %3074 = vmatpush1.msra.mxu0 0.0
        %3075 = vmatprep.subr.mxu0 0.0
        %3076 = vmatpush1.msra.mxu0 0.0
        %3077 = vmatprep.subr.mxu0 0.0
        %3078 = vmatpush1.msra.mxu0 0.0
        %3079 = vmatprep.subr.mxu0 0.0
        %3080 = vmatpush1.msra.mxu0 0.0
        %3081 = vmatprep.subr.mxu0 0.0
        %3082 = vmatpush1.msra.mxu0 0.0
        %3083 = vmatprep.subr.mxu0 0.0
        %3084 = vmatpush1.msra.mxu0 0.0
        %3085 = vmatprep.mubr.f32.mxu0 0.0
        %3086 = vmatmul.mubr.f32.gmra.mrb[0].mxu0 %v2942
        %v3087 = vpop.f32.mrb[0].mxu0
        %v3088 = vadd.f32 %v3017, %v3087
        %v3089 = vpop.f32.mrb[0].mxu0
        %v3090 = vadd.f32 %v3019, %v3089
        %3091 = vdwg.mxu0
        %v3092 = vmax.f32 %v3088, 0.0
        %v3093 = vmax.f32 %v3090, 0.0
        %v3096 = vcombine.low %v3092, %v3093
        %3098 = vst [vmem:[%s355] sm:$0xff] %v3096
        %s3099 = sand.u32 %s231, 1
        %s3100 = scalar_lea.sflag [#allocation6], %s3099
        %s3101 = sand.u32 %s231, 1
        %s3102 = smul.addr %s3101, 8
        %s3103 = scalar_lea.vmem [#allocation7], %s3102
        // Predicated region
        $region61: #{tpu_custom_call.1} parent=55 // pred_check
          %p3104 = pneg %p241
        $region62: #{tpu_custom_call.1} parent=55 // pred_check_branch
          %3106 = sbr.rel (%p3104) target = $region64
        $region63: #{tpu_custom_call.1} parent=55 // pred_region
          %s3108 = ssub.s32 128, 128
          %3109 = vsyncadd %s3100, %s3108
          %s3110 = smul.addr %s24, 2
          %s3111 = smul.addr %s3110, 64
          %s3112 = scalar_lea.hbm %s9, %s3111
          %s3114 = sshll.u32 %s3103, 4
          %s3115 = int_to_ptr.vmem [resolvable:$true] %s3114
          %3117 = dma.vmem_to_hbm [thread:$0]  %s3115, 128, %s3112, %s3100
        $region64: #{tpu_custom_call.1} parent=55 // pred_fallthru
          _
      $region56: #{tpu_custom_call.1} parent=5 // pred_fallthru
        _
      %p3118 = scmp.le.s32.totalorder 2, %s19
      // Predicated region
      $region65: #{tpu_custom_call.1} parent=5 // pred_check
        %p3119 = pneg %p3118
      $region66: #{tpu_custom_call.1} parent=5 // pred_check_branch
        %3121 = sbr.rel (%p3119) target = $region68
      $region67: #{tpu_custom_call.1} parent=5 // pred_region
        %s3122 = ssub.s32 %s19, 2
        // Predicated region
        $region69: #{tpu_custom_call.1} parent=67 // pred_check
          %p3123 = pneg %p247
        $region70: #{tpu_custom_call.1} parent=67 // pred_check_branch
          %3125 = sbr.rel (%p3123) target = $region72
        $region71: #{tpu_custom_call.1} parent=67 // pred_region
          %s3126 = sand.u32 %s232, 1
          %s3127 = scalar_lea.sflag [#allocation6], %s3126
          %s3128 = sand.u32 %s232, 1
          %s3129 = smul.addr %s3128, 8
          %s3130 = scalar_lea.vmem [#allocation7], %s3129
          %3131 = dma.done %s3127, 128
        $region72: #{tpu_custom_call.1} parent=67 // pred_fallthru
          _
      $region68: #{tpu_custom_call.1} parent=5 // pred_fallthru
        _
    $region6: #{tpu_custom_call.1} parent=1 // loop_footer
      %s23 = sadd.s32 1, %s19
    $region7: #{tpu_custom_call.1} parent=1 // loop_footer_branch
      %18 = sbr.rel target = $region3
    $region8: #{tpu_custom_call.1} parent=1 // loop_exit
      _
    %3132 = vsyncpa [#allocation5], 1
    %s3133 = scalar_lea.sflag [#allocation5], 1
    %3134 = vsyncpa %s3133, 1
    %3135 = vsyncpa [#allocation6], 1
    %s3136 = scalar_lea.sflag [#allocation6], 1
    %3137 = vsyncpa %s3136, 1

</llo_original>
